<compile_context>
chip_gen: v6e
topology: v6e:2x2x1
jax: 0.10.0
libtpu: 0.0.40
codegen_flags: <defaults>
</compile_context>

<pallas_src>
import math
import functools

import jax
import jax.numpy as jnp
from jax import lax
from jax.experimental import pallas as pl
from jax.experimental.pallas import tpu as pltpu

BN_EPS = 1e-5
BN_SCALE = 1.0 / math.sqrt(1.0 + BN_EPS)  # eval-mode BN with default running stats

LANE = 128
SUBLANE = 8
NODE_PAD = 512                      # pad node axis to a multiple of the row tile
VMEM_LIMIT = 48 * 1024 * 1024       # safe on v7x (64 MiB physical) and v5e/v6e


def _round_up(x, m):
    return (x + m - 1) // m * m


def _largest_divisor(n, candidates):
    for c in candidates:
        if c <= n and n % c == 0:
            return c
    return n


def _pick_tile_n(n):
    # largest node tile that still leaves >=2 tiles on the parallel axis
    for c in (4096, 2048, 1024, 512, 256):
        if n % c == 0 and n // c >= 2:
            return c
    return 256


# ---------------------------------------------------------------------------
# Kernel 1: support projection   s = x @ W      (BN scale folded into W)
# Grid: (row tiles,) [parallel].  Computed once per layer (hoisted out of the
# adjacency aggregation).
# ---------------------------------------------------------------------------
def _support_kernel(x_ref, w_ref, o_ref):
    o_ref[...] = jnp.dot(x_ref[...], w_ref[...],
                         preferred_element_type=jnp.float32).astype(o_ref.dtype)


def support_matmul(x, w, *, tile_m):
    n, f_in = x.shape
    f_out = w.shape[1]
    return pl.pallas_call(
        _support_kernel,
        out_shape=jax.ShapeDtypeStruct((n, f_out), jnp.bfloat16),
        grid=(n // tile_m,),
        in_specs=[
            pl.BlockSpec((tile_m, f_in), lambda i: (i, 0)),
            pl.BlockSpec((f_in, f_out), lambda i: (0, 0)),
        ],
        out_specs=pl.BlockSpec((tile_m, f_out), lambda i: (i, 0)),
        compiler_params=pltpu.CompilerParams(
            dimension_semantics=("parallel",),
            vmem_limit_bytes=VMEM_LIMIT),
        cost_estimate=pl.CostEstimate(
            flops=int(2 * n * f_in * f_out),
            transcendentals=0,
            bytes_accessed=int(2 * (n * f_in + f_in * f_out + n * f_out))),
    )(x, w)


# ---------------------------------------------------------------------------
# Kernel 2: aggregation   out = tanh(adj @ support + b)
# Grid: (row tiles [parallel], reduction tiles [arbitrary, last]).
# Rectangular adj tiles (tile_m, tile_k); fp32 VMEM accumulator; bias + tanh
# epilogue at the last reduction step.
# ---------------------------------------------------------------------------
def _agg_kernel(s_ref, adj_ref, b_ref, o_ref, acc_ref):
    k = pl.program_id(1)

    @pl.when(k == 0)
    def _init():
        acc_ref[...] = jnp.zeros_like(acc_ref)

    acc_ref[...] += jnp.dot(adj_ref[...], s_ref[...],
                            preferred_element_type=jnp.float32)

    @pl.when(k == pl.num_programs(1) - 1)
    def _fin():
        o_ref[...] = jnp.tanh(acc_ref[...] + b_ref[...]).astype(o_ref.dtype)


def gcn_aggregate(support, adj, b, *, tile_m, tile_k):
    n = adj.shape[0]
    f_out = support.shape[1]
    row_tiles = n // tile_m
    return pl.pallas_call(
        _agg_kernel,
        out_shape=jax.ShapeDtypeStruct((n, f_out), jnp.bfloat16),
        grid=(row_tiles, n // tile_k),
        in_specs=[
            pl.BlockSpec((tile_k, f_out), lambda i, k: (k, 0)),   # support slab
            pl.BlockSpec((tile_m, tile_k), lambda i, k: (i, k)),  # adj tile
            pl.BlockSpec((1, f_out), lambda i, k: (0, 0)),        # bias
        ],
        out_specs=pl.BlockSpec((tile_m, f_out), lambda i, k: (i, 0)),
        scratch_shapes=[pltpu.VMEM((tile_m, f_out), jnp.float32)],
        compiler_params=pltpu.CompilerParams(
            dimension_semantics=("parallel", "arbitrary"),
            vmem_limit_bytes=VMEM_LIMIT),
        cost_estimate=pl.CostEstimate(
            flops=int(2 * n * n * f_out),
            transcendentals=int(n * f_out),
            bytes_accessed=int(2 * n * n + 2 * n * f_out * (row_tiles + 1))),
    )(support, adj, b)


# ---------------------------------------------------------------------------
# Kernel 3: ConvE decoder head (one shot, tiny)
#   feat = relu(conv1d([e1; rel]) + b_conv)         (VPU taps via pltpu.roll)
#   z    = relu(flatten_cmaj(feat) @ fc_W + fc_b)   (MXU)
# Channel-major flatten + lane padding folded into fc_W layout offline.
# ---------------------------------------------------------------------------
def _head_kernel(conv_w_ref, conv_b_ref, e1_ref, rel_ref, fcw_ref, fcb_ref,
                 z_ref, *, channels, ksize, d_real):
    x1 = e1_ref[...].astype(jnp.float32)          # (B_pad, D_pad)
    x2 = rel_ref[...].astype(jnp.float32)
    b_pad, d_pad = x1.shape
    pad = ksize // 2
    lane = lax.broadcasted_iota(jnp.int32, (b_pad, d_pad), 1)

    def tap(x, t):
        # out[d] = x[d + (t - pad)], zero outside [0, d_real)  (Conv1d zero pad)
        off = t - pad
        shift = (-off) % d_pad
        r = pltpu.roll(x, shift=shift, axis=1) if shift else x
        src = lane + off
        return jnp.where((src >= 0) & (src < d_real), r, 0.0)

    taps1 = [tap(x1, t) for t in range(ksize)]
    taps2 = [tap(x2, t) for t in range(ksize)]

    feats = []
    for c in range(channels):                     # tiny static unroll (C=4, K=3)
        acc = jnp.zeros_like(x1)
        for t in range(ksize):
            acc = acc + conv_w_ref[(c * 2 + 0) * ksize + t] * taps1[t]
            acc = acc + conv_w_ref[(c * 2 + 1) * ksize + t] * taps2[t]
        feats.append(jnp.maximum(acc + conv_b_ref[c], 0.0))
    feat = jnp.concatenate(feats, axis=-1).astype(jnp.bfloat16)   # (B_pad, C*D_pad)

    z = jnp.dot(feat, fcw_ref[...], preferred_element_type=jnp.float32)
    z_ref[...] = jnp.maximum(z + fcb_ref[...], 0.0).astype(z_ref.dtype)


def conv_fc_head(conv_w_flat, conv_b, e1_emb, rel_emb, fcw, fcb, *,
                 channels, ksize, d_real):
    b_pad, d_pad = e1_emb.shape
    smem = pl.BlockSpec(memory_space=pltpu.MemorySpace.SMEM)
    return pl.pallas_call(
        functools.partial(_head_kernel, channels=channels, ksize=ksize,
                          d_real=d_real),
        out_shape=jax.ShapeDtypeStruct((b_pad, d_pad), jnp.bfloat16),
        grid=(1,),
        in_specs=[
            smem,                                                   # conv weights
            smem,                                                   # conv bias
            pl.BlockSpec((b_pad, d_pad), lambda i: (0, 0)),         # e1 embeddings
            pl.BlockSpec((b_pad, d_pad), lambda i: (0, 0)),         # rel embeddings
            pl.BlockSpec((channels * d_pad, d_pad), lambda i: (0, 0)),  # fc weight
            pl.BlockSpec((1, d_pad), lambda i: (0, 0)),             # fc bias
        ],
        out_specs=pl.BlockSpec((b_pad, d_pad), lambda i: (0, 0)),
        compiler_params=pltpu.CompilerParams(
            dimension_semantics=("arbitrary",)),
    )(conv_w_flat, conv_b, e1_emb, rel_emb, fcw, fcb)


# ---------------------------------------------------------------------------
# Kernel 4: score   pred = sigmoid(z @ e_all^T)
# Grid: (node tiles,) [parallel]; e_all is streamed in large lane-dense tiles;
# trans-B contraction so e_all is never transposed in the wrapper.
# ---------------------------------------------------------------------------
def _score_kernel(z_ref, e_ref, o_ref):
    s = lax.dot_general(z_ref[...], e_ref[...],
                        dimension_numbers=(((1,), (1,)), ((), ())),
                        preferred_element_type=jnp.float32)
    o_ref[...] = jax.nn.sigmoid(s)


def score_matmul(z, e_all, *, tile_n):
    b_pad, d_pad = z.shape
    n_pad = e_all.shape[0]
    return pl.pallas_call(
        _score_kernel,
        out_shape=jax.ShapeDtypeStruct((b_pad, n_pad), jnp.float32),
        grid=(n_pad // tile_n,),
        in_specs=[
            pl.BlockSpec((b_pad, d_pad), lambda j: (0, 0)),
            pl.BlockSpec((tile_n, d_pad), lambda j: (j, 0)),
        ],
        out_specs=pl.BlockSpec((b_pad, tile_n), lambda j: (0, j)),
        compiler_params=pltpu.CompilerParams(
            dimension_semantics=("parallel",),
            vmem_limit_bytes=VMEM_LIMIT),
        cost_estimate=pl.CostEstimate(
            flops=int(2 * b_pad * d_pad * n_pad),
            transcendentals=int(b_pad * n_pad),
            bytes_accessed=int(2 * n_pad * d_pad + 4 * b_pad * n_pad
                               + 2 * b_pad * d_pad)),
    )(z, e_all)


# ---------------------------------------------------------------------------
# Offline parameter prep: BN folds, lane padding, layout folds, bf16 casts.
# ---------------------------------------------------------------------------
def prepare(params, cfg):
    n_nodes, nfeat = cfg["n_nodes"], cfg["nfeat"]
    nhid, D = cfg["nhid"], cfg["output_dim"]
    C, K = cfg["channels"], cfg["kernel_size"]

    Np = _round_up(n_nodes, NODE_PAD)
    Fp = _round_up(nfeat, LANE)
    Hp = _round_up(nhid, LANE)
    Dp = _round_up(D, LANE)

    def pad2(a, r, c):
        z = jnp.zeros((r, c), jnp.float32)
        return z.at[: a.shape[0], : a.shape[1]].set(a.astype(jnp.float32))

    p = {}
    p["adj"] = pad2(params["adj"], Np, Np).astype(jnp.bfloat16)
    p["emb"] = params["emb"].astype(jnp.float32)            # raw table; gathered at fwd

    # bn3 / bn4 (eval, default running stats) folded into W and b.
    p["w1"] = pad2(params["w1"] * BN_SCALE, Fp, Hp).astype(jnp.bfloat16)
    p["b1"] = pad2((params["b1"] * BN_SCALE)[None, :], 1, Hp)
    p["w2"] = pad2(params["w2"] * BN_SCALE, Hp, Dp).astype(jnp.bfloat16)
    p["b2"] = pad2((params["b2"] * BN_SCALE)[None, :], 1, Dp)

    # Conv1d: bn0 folded into the (linear) conv weights, bn1 into weights+bias.
    p["conv_w"] = (params["conv_w"] * (BN_SCALE * BN_SCALE)).reshape(-1).astype(jnp.float32)
    p["conv_b"] = (params["conv_b"] * BN_SCALE).astype(jnp.float32)

    # fc: bn2 folded in; PyTorch's channel-major view(B, -1) flatten and the
    # lane padding are folded into the weight layout (rows indexed c*Dp + d).
    fcw = (params["fc_w"] * BN_SCALE).astype(jnp.float32).reshape(D, C, D)   # (j, c, d)
    fck = jnp.zeros((C, Dp, Dp), jnp.float32)
    fck = fck.at[:, :D, :D].set(jnp.transpose(fcw, (1, 2, 0)))
    p["fc_w"] = fck.reshape(C * Dp, Dp).astype(jnp.bfloat16)
    p["fc_b"] = pad2((params["fc_b"] * BN_SCALE)[None, :], 1, Dp)

    tile_m = 512 if Np >= 1024 else 256                      # >=2 parallel row tiles
    tile_k = _largest_divisor(Np, (2048, 1024, 512))         # big reduction tiles
    tile_n = _pick_tile_n(Np)                                # decoder node tile

    meta = dict(n_nodes=n_nodes, Np=Np, Fp=Fp, Hp=Hp, Dp=Dp, D=D, C=C, K=K,
                tile_m=tile_m, tile_k=tile_k, tile_n=tile_n)
    return p, meta


# ---------------------------------------------------------------------------
# Full forward (glue in plain JAX, hot paths in the fused Pallas kernels)
# ---------------------------------------------------------------------------
def gcn_forward(p, meta, e1, rel, X):
    Np, Fp = meta["Np"], meta["Fp"]
    tile_m, tile_k, tile_n = meta["tile_m"], meta["tile_k"], meta["tile_n"]

    # Embedding lookup (data-dependent gather: XLA glue), padded + bf16.
    emb = jnp.take(p["emb"], X, axis=0)                      # (n_nodes, nfeat)
    x0 = jnp.zeros((Np, Fp), jnp.float32)
    x0 = x0.at[: emb.shape[0], : emb.shape[1]].set(emb).astype(jnp.bfloat16)

    # x      = tanh(bn3(gc1(emb)))      (dropout = identity, eval mode)
    # e_all  = tanh(bn4(gc2(x)))
    s1 = support_matmul(x0, p["w1"], tile_m=tile_m)                    # (Np, Hp)
    h = gcn_aggregate(s1, p["adj"], p["b1"], tile_m=tile_m, tile_k=tile_k)
    s2 = support_matmul(h, p["w2"], tile_m=tile_m)                     # (Np, Dp)
    e_all = gcn_aggregate(s2, p["adj"], p["b2"], tile_m=tile_m, tile_k=tile_k)

    # Query gathers (XLA glue), batch padded to a sublane multiple.
    B = int(e1.shape[0])
    Bp = max(SUBLANE, _round_up(B, SUBLANE))
    e1_idx = jnp.zeros((Bp,), jnp.int32).at[:B].set(e1.reshape(-1).astype(jnp.int32))
    rel_idx = jnp.zeros((Bp,), jnp.int32).at[:B].set(rel.reshape(-1).astype(jnp.int32))
    e1_emb = jnp.take(e_all, e1_idx, axis=0)                 # (Bp, Dp) bf16
    rel_emb = jnp.take(e_all, rel_idx, axis=0)

    # ConvE head computed once (hoisted out of the node-tile loop).
    z = conv_fc_head(p["conv_w"], p["conv_b"], e1_emb, rel_emb,
                     p["fc_w"], p["fc_b"],
                     channels=meta["C"], ksize=meta["K"], d_real=meta["D"])

    pred = score_matmul(z, e_all, tile_n=tile_n)
    return pred[:B, : meta["n_nodes"]]


# ---------------------------------------------------------------------------
if __name__ == "__main__":
    # Small, deterministic configuration.
    n_nodes, nfeat, nhid, output_dim = 64, 32, 32, 16
    channels, kernel_size, batch = 4, 3, 4

    key = jax.random.PRNGKey(0)
    keys = jax.random.split(key, 10)

    def xavier_normal(k, shape):
        fan_in, fan_out = shape[-2], shape[-1]
        std = math.sqrt(2.0 / (fan_in + fan_out))
        return std * jax.random.normal(k, shape, dtype=jnp.float32)

    # Row-normalized dense adjacency (deterministic).
    raw_adj = jnp.abs(jax.random.normal(keys[0], (n_nodes, n_nodes), dtype=jnp.float32)) + 0.1
    adj = raw_adj / jnp.sum(raw_adj, axis=1, keepdims=True)

    params = {
        "adj": adj,
        "emb": xavier_normal(keys[1], (n_nodes, nfeat)),
        "w1": xavier_normal(keys[2], (nfeat, nhid)),
        "b1": 0.01 * jax.random.normal(keys[3], (nhid,), dtype=jnp.float32),
        "w2": xavier_normal(keys[4], (nhid, output_dim)),
        "b2": 0.01 * jax.random.normal(keys[5], (output_dim,), dtype=jnp.float32),
        "conv_w": 0.1 * jax.random.normal(keys[6], (channels, 2, kernel_size), dtype=jnp.float32),
        "conv_b": 0.01 * jax.random.normal(keys[7], (channels,), dtype=jnp.float32),
        "fc_w": xavier_normal(keys[8], (output_dim, output_dim * channels)),
        "fc_b": 0.01 * jax.random.normal(keys[9], (output_dim,), dtype=jnp.float32),
    }

    cfg = dict(n_nodes=n_nodes, nfeat=nfeat, nhid=nhid, output_dim=output_dim,
               channels=channels, kernel_size=kernel_size)
    prepped, meta = prepare(params, cfg)

    e1 = jnp.array([0, 5, 12, 33], dtype=jnp.int32)    # entity indices, (batch,)
    rel = jnp.array([1, 7, 20, 40], dtype=jnp.int32)   # relation indices, (batch,)
    X = jnp.arange(n_nodes, dtype=jnp.int32)           # node ids for embedding lookup

    @jax.jit
    def fwd(p, e1, rel, X):
        return gcn_forward(p, meta, e1, rel, X)

    pred = fwd(prepped, e1, rel, X)
    pred = jax.block_until_ready(pred)

    assert pred.shape == (batch, n_nodes)
    assert bool(jnp.all(jnp.isfinite(pred)))
    assert bool(jnp.all((pred >= 0.0) & (pred <= 1.0)))
    print("KERNEL_OK")
</pallas_src>

<mosaic_0001>
module attributes {stable_mosaic.version = 11 : i64} {
  func.func @_support_kernel(%arg0: i32, %arg1: memref<256x128xbf16, #tpu.memory_space<vmem>>, %arg2: memref<128x128xbf16, #tpu.memory_space<vmem>>, %arg3: memref<256x128xbf16, #tpu.memory_space<vmem>>) attributes {dimension_semantics = [#tpu.dimension_semantics<parallel>], iteration_bounds = array<i64: 2>, scalar_prefetch = 0 : i64, scratch_operands = 0 : i64, tpu.core_type = #tpu.core_type<tc>, window_params = [{transform_indices = @transform_0, window_bounds = array<i64: 256, 128>}, {pipeline_mode = #tpu.pipeline_mode<synchronous>, transform_indices = @transform_1, window_bounds = array<i64: 128, 128>}, {transform_indices = @transform_2, window_bounds = array<i64: 256, 128>}]} {
    %c0 = arith.constant 0 : index
    %c0_0 = arith.constant 0 : index
    %0 = vector.load %arg1[%c0, %c0_0] : memref<256x128xbf16, #tpu.memory_space<vmem>>, vector<256x128xbf16>
    %c0_1 = arith.constant 0 : index
    %c0_2 = arith.constant 0 : index
    %1 = vector.load %arg2[%c0_1, %c0_2] : memref<128x128xbf16, #tpu.memory_space<vmem>>, vector<128x128xbf16>
    %cst = arith.constant dense<0.000000e+00> : vector<256x128xf32>
    %2 = tpu.matmul %0, %1, %cst {dimension_numbers = #tpu.dot_dimension_numbers<[1], [0], [0], [1], [0, 0, 1, 1], [], []>} : vector<256x128xbf16>, vector<128x128xbf16>, vector<256x128xf32> -> vector<256x128xf32>
    %3 = arith.truncf %2 : vector<256x128xf32> to vector<256x128xbf16>
    %c0_3 = arith.constant 0 : index
    %c0_4 = arith.constant 0 : index
    %4 = vector.load %arg3[%c0_3, %c0_4] : memref<256x128xbf16, #tpu.memory_space<vmem>>, vector<256x128xbf16>
    tpu.vector_store %arg3[%c0_3, %c0_4], %3 {strides = array<i32>} : memref<256x128xbf16, #tpu.memory_space<vmem>>, vector<256x128xbf16>,
    return
  }
  func.func @transform_0(%arg0: i32) -> (i32, i32) {
    %c0_i32 = arith.constant 0 : i32
    %c0_i32_0 = arith.constant 0 : i32
    return %arg0, %c0_i32 : i32, i32
  }
  func.func @transform_1(%arg0: i32) -> (i32, i32) {
    %c0_i32 = arith.constant 0 : i32
    %c0_i32_0 = arith.constant 0 : i32
    %c0_i32_1 = arith.constant 0 : i32
    return %c0_i32, %c0_i32_0 : i32, i32
  }
  func.func @transform_2(%arg0: i32) -> (i32, i32) {
    %c0_i32 = arith.constant 0 : i32
    %c0_i32_0 = arith.constant 0 : i32
    return %arg0, %c0_i32 : i32, i32
  }
}

module attributes {stable_mosaic.version = 11 : i64} {
  func.func @_agg_kernel(%arg0: i32, %arg1: i32, %arg2: memref<512x128xbf16, #tpu.memory_space<vmem>>, %arg3: memref<256x512xbf16, #tpu.memory_space<vmem>>, %arg4: memref<1x128xf32, #tpu.memory_space<vmem>>, %arg5: memref<256x128xbf16, #tpu.memory_space<vmem>>, %arg6: memref<256x128xf32, #tpu.memory_space<vmem>>) attributes {dimension_semantics = [#tpu.dimension_semantics<parallel>, #tpu.dimension_semantics<arbitrary>], iteration_bounds = array<i64: 2, 1>, scalar_prefetch = 0 : i64, scratch_operands = 1 : i64, tpu.core_type = #tpu.core_type<tc>, window_params = [{transform_indices = @transform_0, window_bounds = array<i64: 512, 128>}, {transform_indices = @transform_1, window_bounds = array<i64: 256, 512>}, {pipeline_mode = #tpu.pipeline_mode<synchronous>, transform_indices = @transform_2, window_bounds = array<i64: 1, 128>}, {transform_indices = @transform_3, window_bounds = array<i64: 256, 128>}]} {
    %c0_i32 = arith.constant 0 : i32
    %0 = arith.cmpi eq, %arg1, %c0_i32 : i32
    %1 = arith.extui %0 : i1 to i32
    %c0_i32_0 = arith.constant 0 : i32
    %2 = arith.cmpi ne, %1, %c0_i32_0 : i32
    scf.if %2 {
      %cst_10 = arith.constant 0.000000e+00 : f32
      %12 = vector.broadcast %cst_10 : f32 to vector<256x128xf32>
      %c0_11 = arith.constant 0 : index
      %c0_12 = arith.constant 0 : index
      %13 = vector.load %arg6[%c0_11, %c0_12] : memref<256x128xf32, #tpu.memory_space<vmem>>, vector<256x128xf32>
      tpu.vector_store %arg6[%c0_11, %c0_12], %12 {strides = array<i32>} : memref<256x128xf32, #tpu.memory_space<vmem>>, vector<256x128xf32>,
    } else {
    }
    %c0 = arith.constant 0 : index
    %c0_1 = arith.constant 0 : index
    %3 = vector.load %arg6[%c0, %c0_1] : memref<256x128xf32, #tpu.memory_space<vmem>>, vector<256x128xf32>
    %c0_2 = arith.constant 0 : index
    %c0_3 = arith.constant 0 : index
    %4 = vector.load %arg3[%c0_2, %c0_3] : memref<256x512xbf16, #tpu.memory_space<vmem>>, vector<256x512xbf16>
    %c0_4 = arith.constant 0 : index
    %c0_5 = arith.constant 0 : index
    %5 = vector.load %arg2[%c0_4, %c0_5] : memref<512x128xbf16, #tpu.memory_space<vmem>>, vector<512x128xbf16>
    %cst = arith.constant dense<0.000000e+00> : vector<256x128xf32>
    %6 = tpu.matmul %4, %5, %cst {dimension_numbers = #tpu.dot_dimension_numbers<[1], [0], [0], [1], [0, 0, 1, 1], [], []>} : vector<256x512xbf16>, vector<512x128xbf16>, vector<256x128xf32> -> vector<256x128xf32>
    %7 = arith.addf %3, %6 : vector<256x128xf32>
    %c0_6 = arith.constant 0 : index
    %c0_7 = arith.constant 0 : index
    %8 = vector.load %arg6[%c0_6, %c0_7] : memref<256x128xf32, #tpu.memory_space<vmem>>, vector<256x128xf32>
    tpu.vector_store %arg6[%c0_6, %c0_7], %7 {strides = array<i32>} : memref<256x128xf32, #tpu.memory_space<vmem>>, vector<256x128xf32>,
    %c0_i32_8 = arith.constant 0 : i32
    %9 = arith.cmpi eq, %arg1, %c0_i32_8 : i32
    %10 = arith.extui %9 : i1 to i32
    %c0_i32_9 = arith.constant 0 : i32
    %11 = arith.cmpi ne, %10, %c0_i32_9 : i32
    scf.if %11 {
      %c0_10 = arith.constant 0 : index
      %c0_11 = arith.constant 0 : index
      %12 = vector.load %arg6[%c0_10, %c0_11] : memref<256x128xf32, #tpu.memory_space<vmem>>, vector<256x128xf32>
      %c0_12 = arith.constant 0 : index
      %c0_13 = arith.constant 0 : index
      %13 = vector.load %arg4[%c0_12, %c0_13] : memref<1x128xf32, #tpu.memory_space<vmem>>, vector<1x128xf32>
      %14 = vector.broadcast %13 : vector<1x128xf32> to vector<256x128xf32>
      %15 = arith.addf %12, %14 : vector<256x128xf32>
      %16 = math.tanh %15 : vector<256x128xf32>
      %17 = arith.truncf %16 : vector<256x128xf32> to vector<256x128xbf16>
      %c0_14 = arith.constant 0 : index
      %c0_15 = arith.constant 0 : index
      %18 = vector.load %arg5[%c0_14, %c0_15] : memref<256x128xbf16, #tpu.memory_space<vmem>>, vector<256x128xbf16>
      tpu.vector_store %arg5[%c0_14, %c0_15], %17 {strides = array<i32>} : memref<256x128xbf16, #tpu.memory_space<vmem>>, vector<256x128xbf16>,
    } else {
    }
    return
  }
  func.func @transform_0(%arg0: i32, %arg1: i32) -> (i32, i32) {
    %c0_i32 = arith.constant 0 : i32
    %c0_i32_0 = arith.constant 0 : i32
    return %arg1, %c0_i32 : i32, i32
  }
  func.func @transform_1(%arg0: i32, %arg1: i32) -> (i32, i32) {
    %c0_i32 = arith.constant 0 : i32
    return %arg0, %arg1 : i32, i32
  }
  func.func @transform_2(%arg0: i32, %arg1: i32) -> (i32, i32) {
    %c0_i32 = arith.constant 0 : i32
    %c0_i32_0 = arith.constant 0 : i32
    %c0_i32_1 = arith.constant 0 : i32
    return %c0_i32, %c0_i32_0 : i32, i32
  }
  func.func @transform_3(%arg0: i32, %arg1: i32) -> (i32, i32) {
    %c0_i32 = arith.constant 0 : i32
    %c0_i32_0 = arith.constant 0 : i32
    return %arg0, %c0_i32 : i32, i32
  }
}

module attributes {stable_mosaic.version = 11 : i64} {
  func.func @_head_kernel(%arg0: i32, %arg1: memref<24xf32, #tpu.memory_space<smem>>, %arg2: memref<4xf32, #tpu.memory_space<smem>>, %arg3: memref<8x128xbf16, #tpu.memory_space<vmem>>, %arg4: memref<8x128xbf16, #tpu.memory_space<vmem>>, %arg5: memref<512x128xbf16, #tpu.memory_space<vmem>>, %arg6: memref<1x128xf32, #tpu.memory_space<vmem>>, %arg7: memref<8x128xbf16, #tpu.memory_space<vmem>>) attributes {dimension_semantics = [#tpu.dimension_semantics<arbitrary>], iteration_bounds = array<i64: 1>, scalar_prefetch = 0 : i64, scratch_operands = 0 : i64, tpu.core_type = #tpu.core_type<tc>, window_params = [{transform_indices = @transform_0, window_bounds = array<i64: 24>}, {transform_indices = @transform_1, window_bounds = array<i64: 4>}, {pipeline_mode = #tpu.pipeline_mode<synchronous>, transform_indices = @transform_2, window_bounds = array<i64: 8, 128>}, {pipeline_mode = #tpu.pipeline_mode<synchronous>, transform_indices = @transform_3, window_bounds = array<i64: 8, 128>}, {pipeline_mode = #tpu.pipeline_mode<synchronous>, transform_indices = @transform_4, window_bounds = array<i64: 512, 128>}, {pipeline_mode = #tpu.pipeline_mode<synchronous>, transform_indices = @transform_5, window_bounds = array<i64: 1, 128>}, {pipeline_mode = #tpu.pipeline_mode<synchronous>, transform_indices = @transform_6, window_bounds = array<i64: 8, 128>}]} {
    %c0 = arith.constant 0 : index
    %c0_0 = arith.constant 0 : index
    %0 = vector.load %arg3[%c0, %c0_0] : memref<8x128xbf16, #tpu.memory_space<vmem>>, vector<8x128xbf16>
    %1 = arith.extf %0 : vector<8x128xbf16> to vector<8x128xf32>
    %c0_1 = arith.constant 0 : index
    %c0_2 = arith.constant 0 : index
    %2 = vector.load %arg4[%c0_1, %c0_2] : memref<8x128xbf16, #tpu.memory_space<vmem>>, vector<8x128xbf16>
    %3 = arith.extf %2 : vector<8x128xbf16> to vector<8x128xf32>
    %4 = tpu.iota {dimensions = array<i32: 1>} : vector<8x128xi32>
    %c1_i32 = arith.constant 1 : i32
    %5 = tpu.dynamic_rotate %1 by %c1_i32 dim 1 : vector<8x128xf32>, i32 -> vector<8x128xf32>
    %c-1_i32 = arith.constant -1 : i32
    %6 = vector.broadcast %c-1_i32 : i32 to vector<8x128xi32>
    %7 = arith.addi %4, %6 : vector<8x128xi32>
    %c0_i32 = arith.constant 0 : i32
    %8 = vector.broadcast %c0_i32 : i32 to vector<8x128xi32>
    %9 = arith.cmpi sge, %7, %8 : vector<8x128xi32>
    %c16_i32 = arith.constant 16 : i32
    %10 = vector.broadcast %c16_i32 : i32 to vector<8x128xi32>
    %11 = arith.cmpi slt, %7, %10 : vector<8x128xi32>
    %12 = arith.andi %9, %11 : vector<8x128xi1>
    %cst = arith.constant 0.000000e+00 : f32
    %13 = vector.broadcast %cst : f32 to vector<8x128xf32>
    %14 = arith.select %12, %5, %13 : vector<8x128xi1>, vector<8x128xf32>
    %c0_i32_3 = arith.constant 0 : i32
    %15 = vector.broadcast %c0_i32_3 : i32 to vector<8x128xi32>
    %16 = arith.addi %4, %15 : vector<8x128xi32>
    %c0_i32_4 = arith.constant 0 : i32
    %17 = vector.broadcast %c0_i32_4 : i32 to vector<8x128xi32>
    %18 = arith.cmpi sge, %16, %17 : vector<8x128xi32>
    %c16_i32_5 = arith.constant 16 : i32
    %19 = vector.broadcast %c16_i32_5 : i32 to vector<8x128xi32>
    %20 = arith.cmpi slt, %16, %19 : vector<8x128xi32>
    %21 = arith.andi %18, %20 : vector<8x128xi1>
    %cst_6 = arith.constant 0.000000e+00 : f32
    %22 = vector.broadcast %cst_6 : f32 to vector<8x128xf32>
    %23 = arith.select %21, %1, %22 : vector<8x128xi1>, vector<8x128xf32>
    %c127_i32 = arith.constant 127 : i32
    %24 = tpu.dynamic_rotate %1 by %c127_i32 dim 1 : vector<8x128xf32>, i32 -> vector<8x128xf32>
    %c1_i32_7 = arith.constant 1 : i32
    %25 = vector.broadcast %c1_i32_7 : i32 to vector<8x128xi32>
    %26 = arith.addi %4, %25 : vector<8x128xi32>
    %c0_i32_8 = arith.constant 0 : i32
    %27 = vector.broadcast %c0_i32_8 : i32 to vector<8x128xi32>
    %28 = arith.cmpi sge, %26, %27 : vector<8x128xi32>
    %c16_i32_9 = arith.constant 16 : i32
    %29 = vector.broadcast %c16_i32_9 : i32 to vector<8x128xi32>
    %30 = arith.cmpi slt, %26, %29 : vector<8x128xi32>
    %31 = arith.andi %28, %30 : vector<8x128xi1>
    %cst_10 = arith.constant 0.000000e+00 : f32
    %32 = vector.broadcast %cst_10 : f32 to vector<8x128xf32>
    %33 = arith.select %31, %24, %32 : vector<8x128xi1>, vector<8x128xf32>
    %c1_i32_11 = arith.constant 1 : i32
    %34 = tpu.dynamic_rotate %3 by %c1_i32_11 dim 1 : vector<8x128xf32>, i32 -> vector<8x128xf32>
    %c-1_i32_12 = arith.constant -1 : i32
    %35 = vector.broadcast %c-1_i32_12 : i32 to vector<8x128xi32>
    %36 = arith.addi %4, %35 : vector<8x128xi32>
    %c0_i32_13 = arith.constant 0 : i32
    %37 = vector.broadcast %c0_i32_13 : i32 to vector<8x128xi32>
    %38 = arith.cmpi sge, %36, %37 : vector<8x128xi32>
    %c16_i32_14 = arith.constant 16 : i32
    %39 = vector.broadcast %c16_i32_14 : i32 to vector<8x128xi32>
    %40 = arith.cmpi slt, %36, %39 : vector<8x128xi32>
    %41 = arith.andi %38, %40 : vector<8x128xi1>
    %cst_15 = arith.constant 0.000000e+00 : f32
    %42 = vector.broadcast %cst_15 : f32 to vector<8x128xf32>
    %43 = arith.select %41, %34, %42 : vector<8x128xi1>, vector<8x128xf32>
    %c0_i32_16 = arith.constant 0 : i32
    %44 = vector.broadcast %c0_i32_16 : i32 to vector<8x128xi32>
    %45 = arith.addi %4, %44 : vector<8x128xi32>
    %c0_i32_17 = arith.constant 0 : i32
    %46 = vector.broadcast %c0_i32_17 : i32 to vector<8x128xi32>
    %47 = arith.cmpi sge, %45, %46 : vector<8x128xi32>
    %c16_i32_18 = arith.constant 16 : i32
    %48 = vector.broadcast %c16_i32_18 : i32 to vector<8x128xi32>
    %49 = arith.cmpi slt, %45, %48 : vector<8x128xi32>
    %50 = arith.andi %47, %49 : vector<8x128xi1>
    %cst_19 = arith.constant 0.000000e+00 : f32
    %51 = vector.broadcast %cst_19 : f32 to vector<8x128xf32>
    %52 = arith.select %50, %3, %51 : vector<8x128xi1>, vector<8x128xf32>
    %c127_i32_20 = arith.constant 127 : i32
    %53 = tpu.dynamic_rotate %3 by %c127_i32_20 dim 1 : vector<8x128xf32>, i32 -> vector<8x128xf32>
    %c1_i32_21 = arith.constant 1 : i32
    %54 = vector.broadcast %c1_i32_21 : i32 to vector<8x128xi32>
    %55 = arith.addi %4, %54 : vector<8x128xi32>
    %c0_i32_22 = arith.constant 0 : i32
    %56 = vector.broadcast %c0_i32_22 : i32 to vector<8x128xi32>
    %57 = arith.cmpi sge, %55, %56 : vector<8x128xi32>
    %c16_i32_23 = arith.constant 16 : i32
    %58 = vector.broadcast %c16_i32_23 : i32 to vector<8x128xi32>
    %59 = arith.cmpi slt, %55, %58 : vector<8x128xi32>
    %60 = arith.andi %57, %59 : vector<8x128xi1>
    %cst_24 = arith.constant 0.000000e+00 : f32
    %61 = vector.broadcast %cst_24 : f32 to vector<8x128xf32>
    %62 = arith.select %60, %53, %61 : vector<8x128xi1>, vector<8x128xf32>
    %cst_25 = arith.constant 0.000000e+00 : f32
    %63 = vector.broadcast %cst_25 : f32 to vector<8x128xf32>
    %c0_26 = arith.constant 0 : index
    %64 = memref.load %arg1[%c0_26] : memref<24xf32, #tpu.memory_space<smem>>
    %65 = vector.broadcast %64 : f32 to vector<8x128xf32>
    %66 = arith.mulf %65, %14 : vector<8x128xf32>
    %67 = arith.addf %63, %66 : vector<8x128xf32>
    %c3 = arith.constant 3 : index
    %68 = memref.load %arg1[%c3] : memref<24xf32, #tpu.memory_space<smem>>
    %69 = vector.broadcast %68 : f32 to vector<8x128xf32>
    %70 = arith.mulf %69, %43 : vector<8x128xf32>
    %71 = arith.addf %67, %70 : vector<8x128xf32>
    %c1 = arith.constant 1 : index
    %72 = memref.load %arg1[%c1] : memref<24xf32, #tpu.memory_space<smem>>
    %73 = vector.broadcast %72 : f32 to vector<8x128xf32>
    %74 = arith.mulf %73, %23 : vector<8x128xf32>
    %75 = arith.addf %71, %74 : vector<8x128xf32>
    %c4 = arith.constant 4 : index
    %76 = memref.load %arg1[%c4] : memref<24xf32, #tpu.memory_space<smem>>
    %77 = vector.broadcast %76 : f32 to vector<8x128xf32>
    %78 = arith.mulf %77, %52 : vector<8x128xf32>
    %79 = arith.addf %75, %78 : vector<8x128xf32>
    %c2 = arith.constant 2 : index
    %80 = memref.load %arg1[%c2] : memref<24xf32, #tpu.memory_space<smem>>
    %81 = vector.broadcast %80 : f32 to vector<8x128xf32>
    %82 = arith.mulf %81, %33 : vector<8x128xf32>
    %83 = arith.addf %79, %82 : vector<8x128xf32>
    %c5 = arith.constant 5 : index
    %84 = memref.load %arg1[%c5] : memref<24xf32, #tpu.memory_space<smem>>
    %85 = vector.broadcast %84 : f32 to vector<8x128xf32>
    %86 = arith.mulf %85, %62 : vector<8x128xf32>
    %87 = arith.addf %83, %86 : vector<8x128xf32>
    %c0_27 = arith.constant 0 : index
    %88 = memref.load %arg2[%c0_27] : memref<4xf32, #tpu.memory_space<smem>>
    %89 = vector.broadcast %88 : f32 to vector<8x128xf32>
    %90 = arith.addf %87, %89 : vector<8x128xf32>
    %cst_28 = arith.constant 0.000000e+00 : f32
    %91 = vector.broadcast %cst_28 : f32 to vector<8x128xf32>
    %92 = arith.maximumf %90, %91 : vector<8x128xf32>
    %cst_29 = arith.constant 0.000000e+00 : f32
    %93 = vector.broadcast %cst_29 : f32 to vector<8x128xf32>
    %c6 = arith.constant 6 : index
    %94 = memref.load %arg1[%c6] : memref<24xf32, #tpu.memory_space<smem>>
    %95 = vector.broadcast %94 : f32 to vector<8x128xf32>
    %96 = arith.mulf %95, %14 : vector<8x128xf32>
    %97 = arith.addf %93, %96 : vector<8x128xf32>
    %c9 = arith.constant 9 : index
    %98 = memref.load %arg1[%c9] : memref<24xf32, #tpu.memory_space<smem>>
    %99 = vector.broadcast %98 : f32 to vector<8x128xf32>
    %100 = arith.mulf %99, %43 : vector<8x128xf32>
    %101 = arith.addf %97, %100 : vector<8x128xf32>
    %c7 = arith.constant 7 : index
    %102 = memref.load %arg1[%c7] : memref<24xf32, #tpu.memory_space<smem>>
    %103 = vector.broadcast %102 : f32 to vector<8x128xf32>
    %104 = arith.mulf %103, %23 : vector<8x128xf32>
    %105 = arith.addf %101, %104 : vector<8x128xf32>
    %c10 = arith.constant 10 : index
    %106 = memref.load %arg1[%c10] : memref<24xf32, #tpu.memory_space<smem>>
    %107 = vector.broadcast %106 : f32 to vector<8x128xf32>
    %108 = arith.mulf %107, %52 : vector<8x128xf32>
    %109 = arith.addf %105, %108 : vector<8x128xf32>
    %c8 = arith.constant 8 : index
    %110 = memref.load %arg1[%c8] : memref<24xf32, #tpu.memory_space<smem>>
    %111 = vector.broadcast %110 : f32 to vector<8x128xf32>
    %112 = arith.mulf %111, %33 : vector<8x128xf32>
    %113 = arith.addf %109, %112 : vector<8x128xf32>
    %c11 = arith.constant 11 : index
    %114 = memref.load %arg1[%c11] : memref<24xf32, #tpu.memory_space<smem>>
    %115 = vector.broadcast %114 : f32 to vector<8x128xf32>
    %116 = arith.mulf %115, %62 : vector<8x128xf32>
    %117 = arith.addf %113, %116 : vector<8x128xf32>
    %c1_30 = arith.constant 1 : index
    %118 = memref.load %arg2[%c1_30] : memref<4xf32, #tpu.memory_space<smem>>
    %119 = vector.broadcast %118 : f32 to vector<8x128xf32>
    %120 = arith.addf %117, %119 : vector<8x128xf32>
    %cst_31 = arith.constant 0.000000e+00 : f32
    %121 = vector.broadcast %cst_31 : f32 to vector<8x128xf32>
    %122 = arith.maximumf %120, %121 : vector<8x128xf32>
    %cst_32 = arith.constant 0.000000e+00 : f32
    %123 = vector.broadcast %cst_32 : f32 to vector<8x128xf32>
    %c12 = arith.constant 12 : index
    %124 = memref.load %arg1[%c12] : memref<24xf32, #tpu.memory_space<smem>>
    %125 = vector.broadcast %124 : f32 to vector<8x128xf32>
    %126 = arith.mulf %125, %14 : vector<8x128xf32>
    %127 = arith.addf %123, %126 : vector<8x128xf32>
    %c15 = arith.constant 15 : index
    %128 = memref.load %arg1[%c15] : memref<24xf32, #tpu.memory_space<smem>>
    %129 = vector.broadcast %128 : f32 to vector<8x128xf32>
    %130 = arith.mulf %129, %43 : vector<8x128xf32>
    %131 = arith.addf %127, %130 : vector<8x128xf32>
    %c13 = arith.constant 13 : index
    %132 = memref.load %arg1[%c13] : memref<24xf32, #tpu.memory_space<smem>>
    %133 = vector.broadcast %132 : f32 to vector<8x128xf32>
    %134 = arith.mulf %133, %23 : vector<8x128xf32>
    %135 = arith.addf %131, %134 : vector<8x128xf32>
    %c16 = arith.constant 16 : index
    %136 = memref.load %arg1[%c16] : memref<24xf32, #tpu.memory_space<smem>>
    %137 = vector.broadcast %136 : f32 to vector<8x128xf32>
    %138 = arith.mulf %137, %52 : vector<8x128xf32>
    %139 = arith.addf %135, %138 : vector<8x128xf32>
    %c14 = arith.constant 14 : index
    %140 = memref.load %arg1[%c14] : memref<24xf32, #tpu.memory_space<smem>>
    %141 = vector.broadcast %140 : f32 to vector<8x128xf32>
    %142 = arith.mulf %141, %33 : vector<8x128xf32>
    %143 = arith.addf %139, %142 : vector<8x128xf32>
    %c17 = arith.constant 17 : index
    %144 = memref.load %arg1[%c17] : memref<24xf32, #tpu.memory_space<smem>>
    %145 = vector.broadcast %144 : f32 to vector<8x128xf32>
    %146 = arith.mulf %145, %62 : vector<8x128xf32>
    %147 = arith.addf %143, %146 : vector<8x128xf32>
    %c2_33 = arith.constant 2 : index
    %148 = memref.load %arg2[%c2_33] : memref<4xf32, #tpu.memory_space<smem>>
    %149 = vector.broadcast %148 : f32 to vector<8x128xf32>
    %150 = arith.addf %147, %149 : vector<8x128xf32>
    %cst_34 = arith.constant 0.000000e+00 : f32
    %151 = vector.broadcast %cst_34 : f32 to vector<8x128xf32>
    %152 = arith.maximumf %150, %151 : vector<8x128xf32>
    %cst_35 = arith.constant 0.000000e+00 : f32
    %153 = vector.broadcast %cst_35 : f32 to vector<8x128xf32>
    %c18 = arith.constant 18 : index
    %154 = memref.load %arg1[%c18] : memref<24xf32, #tpu.memory_space<smem>>
    %155 = vector.broadcast %154 : f32 to vector<8x128xf32>
    %156 = arith.mulf %155, %14 : vector<8x128xf32>
    %157 = arith.addf %153, %156 : vector<8x128xf32>
    %c21 = arith.constant 21 : index
    %158 = memref.load %arg1[%c21] : memref<24xf32, #tpu.memory_space<smem>>
    %159 = vector.broadcast %158 : f32 to vector<8x128xf32>
    %160 = arith.mulf %159, %43 : vector<8x128xf32>
    %161 = arith.addf %157, %160 : vector<8x128xf32>
    %c19 = arith.constant 19 : index
    %162 = memref.load %arg1[%c19] : memref<24xf32, #tpu.memory_space<smem>>
    %163 = vector.broadcast %162 : f32 to vector<8x128xf32>
    %164 = arith.mulf %163, %23 : vector<8x128xf32>
    %165 = arith.addf %161, %164 : vector<8x128xf32>
    %c22 = arith.constant 22 : index
    %166 = memref.load %arg1[%c22] : memref<24xf32, #tpu.memory_space<smem>>
    %167 = vector.broadcast %166 : f32 to vector<8x128xf32>
    %168 = arith.mulf %167, %52 : vector<8x128xf32>
    %169 = arith.addf %165, %168 : vector<8x128xf32>
    %c20 = arith.constant 20 : index
    %170 = memref.load %arg1[%c20] : memref<24xf32, #tpu.memory_space<smem>>
    %171 = vector.broadcast %170 : f32 to vector<8x128xf32>
    %172 = arith.mulf %171, %33 : vector<8x128xf32>
    %173 = arith.addf %169, %172 : vector<8x128xf32>
    %c23 = arith.constant 23 : index
    %174 = memref.load %arg1[%c23] : memref<24xf32, #tpu.memory_space<smem>>
    %175 = vector.broadcast %174 : f32 to vector<8x128xf32>
    %176 = arith.mulf %175, %62 : vector<8x128xf32>
    %177 = arith.addf %173, %176 : vector<8x128xf32>
    %c3_36 = arith.constant 3 : index
    %178 = memref.load %arg2[%c3_36] : memref<4xf32, #tpu.memory_space<smem>>
    %179 = vector.broadcast %178 : f32 to vector<8x128xf32>
    %180 = arith.addf %177, %179 : vector<8x128xf32>
    %cst_37 = arith.constant 0.000000e+00 : f32
    %181 = vector.broadcast %cst_37 : f32 to vector<8x128xf32>
    %182 = arith.maximumf %180, %181 : vector<8x128xf32>
    %183 = tpu.concatenate %92, %122, %152, %182 in 1 : vector<8x128xf32>, vector<8x128xf32>, vector<8x128xf32>, vector<8x128xf32> -> vector<8x512xf32>
    %184 = arith.truncf %183 : vector<8x512xf32> to vector<8x512xbf16>
    %c0_38 = arith.constant 0 : index
    %c0_39 = arith.constant 0 : index
    %185 = vector.load %arg5[%c0_38, %c0_39] : memref<512x128xbf16, #tpu.memory_space<vmem>>, vector<512x128xbf16>
    %cst_40 = arith.constant dense<0.000000e+00> : vector<8x128xf32>
    %186 = tpu.matmul %184, %185, %cst_40 {dimension_numbers = #tpu.dot_dimension_numbers<[1], [0], [0], [1], [0, 0, 1, 1], [], []>} : vector<8x512xbf16>, vector<512x128xbf16>, vector<8x128xf32> -> vector<8x128xf32>
    %c0_41 = arith.constant 0 : index
    %c0_42 = arith.constant 0 : index
    %187 = vector.load %arg6[%c0_41, %c0_42] : memref<1x128xf32, #tpu.memory_space<vmem>>, vector<1x128xf32>
    %188 = vector.broadcast %187 : vector<1x128xf32> to vector<8x128xf32>
    %189 = arith.addf %186, %188 : vector<8x128xf32>
    %cst_43 = arith.constant 0.000000e+00 : f32
    %190 = vector.broadcast %cst_43 : f32 to vector<8x128xf32>
    %191 = arith.maximumf %189, %190 : vector<8x128xf32>
    %192 = arith.truncf %191 : vector<8x128xf32> to vector<8x128xbf16>
    %c0_44 = arith.constant 0 : index
    %c0_45 = arith.constant 0 : index
    %193 = vector.load %arg7[%c0_44, %c0_45] : memref<8x128xbf16, #tpu.memory_space<vmem>>, vector<8x128xbf16>
    tpu.vector_store %arg7[%c0_44, %c0_45], %192 {strides = array<i32>} : memref<8x128xbf16, #tpu.memory_space<vmem>>, vector<8x128xbf16>,
    return
  }
  func.func @transform_0(%arg0: i32) -> i32 {
    %c0_i32 = arith.constant 0 : i32
    %c0_i32_0 = arith.constant 0 : i32
    return %c0_i32 : i32
  }
  func.func @transform_1(%arg0: i32) -> i32 {
    %c0_i32 = arith.constant 0 : i32
    %c0_i32_0 = arith.constant 0 : i32
    return %c0_i32 : i32
  }
  func.func @transform_2(%arg0: i32) -> (i32, i32) {
    %c0_i32 = arith.constant 0 : i32
    %c0_i32_0 = arith.constant 0 : i32
    %c0_i32_1 = arith.constant 0 : i32
    return %c0_i32, %c0_i32_0 : i32, i32
  }
  func.func @transform_3(%arg0: i32) -> (i32, i32) {
    %c0_i32 = arith.constant 0 : i32
    %c0_i32_0 = arith.constant 0 : i32
    %c0_i32_1 = arith.constant 0 : i32
    return %c0_i32, %c0_i32_0 : i32, i32
  }
  func.func @transform_4(%arg0: i32) -> (i32, i32) {
    %c0_i32 = arith.constant 0 : i32
    %c0_i32_0 = arith.constant 0 : i32
    %c0_i32_1 = arith.constant 0 : i32
    return %c0_i32, %c0_i32_0 : i32, i32
  }
  func.func @transform_5(%arg0: i32) -> (i32, i32) {
    %c0_i32 = arith.constant 0 : i32
    %c0_i32_0 = arith.constant 0 : i32
    %c0_i32_1 = arith.constant 0 : i32
    return %c0_i32, %c0_i32_0 : i32, i32
  }
  func.func @transform_6(%arg0: i32) -> (i32, i32) {
    %c0_i32 = arith.constant 0 : i32
    %c0_i32_0 = arith.constant 0 : i32
    %c0_i32_1 = arith.constant 0 : i32
    return %c0_i32, %c0_i32_0 : i32, i32
  }
}

module attributes {stable_mosaic.version = 11 : i64} {
  func.func @_score_kernel(%arg0: i32, %arg1: memref<8x128xbf16, #tpu.memory_space<vmem>>, %arg2: memref<256x128xbf16, #tpu.memory_space<vmem>>, %arg3: memref<8x256xf32, #tpu.memory_space<vmem>>) attributes {dimension_semantics = [#tpu.dimension_semantics<parallel>], iteration_bounds = array<i64: 2>, scalar_prefetch = 0 : i64, scratch_operands = 0 : i64, tpu.core_type = #tpu.core_type<tc>, window_params = [{pipeline_mode = #tpu.pipeline_mode<synchronous>, transform_indices = @transform_0, window_bounds = array<i64: 8, 128>}, {transform_indices = @transform_1, window_bounds = array<i64: 256, 128>}, {transform_indices = @transform_2, window_bounds = array<i64: 8, 256>}]} {
    %c0 = arith.constant 0 : index
    %c0_0 = arith.constant 0 : index
    %0 = vector.load %arg1[%c0, %c0_0] : memref<8x128xbf16, #tpu.memory_space<vmem>>, vector<8x128xbf16>
    %c0_1 = arith.constant 0 : index
    %c0_2 = arith.constant 0 : index
    %1 = vector.load %arg2[%c0_1, %c0_2] : memref<256x128xbf16, #tpu.memory_space<vmem>>, vector<256x128xbf16>
    %cst = arith.constant dense<0.000000e+00> : vector<8x256xf32>
    %2 = tpu.matmul %0, %1, %cst {dimension_numbers = #tpu.dot_dimension_numbers<[1], [1], [0], [0], [0, 0, 1, 0], [], []>} : vector<8x128xbf16>, vector<256x128xbf16>, vector<8x256xf32> -> vector<8x256xf32>
    %3 = arith.negf %2 : vector<8x256xf32>
    %4 = math.exp %3 : vector<8x256xf32>
    %cst_3 = arith.constant 1.000000e+00 : f32
    %5 = vector.broadcast %cst_3 : f32 to vector<8x256xf32>
    %6 = arith.addf %5, %4 : vector<8x256xf32>
    %7 = arith.divf %5, %6 : vector<8x256xf32>
    %c0_4 = arith.constant 0 : index
    %c0_5 = arith.constant 0 : index
    %8 = vector.load %arg3[%c0_4, %c0_5] : memref<8x256xf32, #tpu.memory_space<vmem>>, vector<8x256xf32>
    tpu.vector_store %arg3[%c0_4, %c0_5], %7 {strides = array<i32>} : memref<8x256xf32, #tpu.memory_space<vmem>>, vector<8x256xf32>,
    return
  }
  func.func @transform_0(%arg0: i32) -> (i32, i32) {
    %c0_i32 = arith.constant 0 : i32
    %c0_i32_0 = arith.constant 0 : i32
    %c0_i32_1 = arith.constant 0 : i32
    return %c0_i32, %c0_i32_0 : i32, i32
  }
  func.func @transform_1(%arg0: i32) -> (i32, i32) {
    %c0_i32 = arith.constant 0 : i32
    %c0_i32_0 = arith.constant 0 : i32
    return %arg0, %c0_i32 : i32, i32
  }
  func.func @transform_2(%arg0: i32) -> (i32, i32) {
    %c0_i32 = arith.constant 0 : i32
    %c0_i32_0 = arith.constant 0 : i32
    return %c0_i32, %arg0 : i32, i32
  }
}

</mosaic_0001>

<llo_original>
// kernel: fwd.6
$region0: #{fwd.6}
  #allocation0 [shape = 'u32[]', space=smem, size = 0x4, offset = 0x4, fixed_abs, tag = 'smem constant byte address 0x4 - core index']
  #allocation1 [shape = 'u32[144,128]{1,0:T(1,128)}', space=vmem, size = 0x12000, scoped, tag = 'internal scratch']
  %s0 = inlined_call_operand.vmem [shape: bf16[512,128], index: 0, kind: input, shape index: {}]
  %s1 = inlined_call_operand.vmem [shape: bf16[128,128], index: 1, kind: input, shape index: {}]
  %s2 = inlined_call_operand.vmem [shape: bf16[512,128], index: 2, kind: output, shape index: {}]
  %s3 = sld [smem:[#allocation0]]
  $region41: #{fwd.6} parent=0
    _
  %s5 = ssub.s32 1, %s3
  %s6 = scalar_select 0, %s5, %s3
  loop: start=0, step=1, limit=4
  $region2: #{fwd.6} parent=0 // loop_pre_header
    _
  $region3: #{fwd.6} parent=0 // loop_header
    %s8 = sphi 0, %s12
    %p9 = scmp.ge.s32.totalorder %s8, 4
    %s18 = sphi 0, %s20
    %s21 = sphi 0, %s18
    %s22 = sphi 0, %s21
    %s38 = sphi 0, %s22
    %s42 = sphi 0, %s42
    %s44 = sphi 0, %s42
    %s45 = sphi 0, %s44
    %s59 = sphi 0, %s45
    %s65 = sphi 0, %s67
    %s68 = sphi 0, %s65
    %s69 = sphi 0, %s68
    %s85 = sphi 0, %s69
  $region4: #{fwd.6} parent=0 // loop_header_branch
    %11 = sbr.rel (%p9) target = $region8
  $region5: #{fwd.6} parent=0 // loop_body
    %s13 = ssub.s32 %s8, 1
    %s14 = ssub.s32 %s8, 2
    %s15 = sadd.s32 %s8, 1
    %s16 = ssub.s32 %s8, %s15
    %p17 = scmp.eq.s32.totalorder %s16, 0
    %s19 = sadd.s32 %s18, 1
    %s20 = scalar_select %p17, %s18, %s19
    %p23 = pneg %p17
    %p24 = scmp.eq.s32.totalorder %s8, 1
    %p25 = por %p23, %p24
    %p26 = scmp.ne.s32.totalorder %s18, %s21
    %p27 = scmp.eq.s32.totalorder %s8, 0
    %p28 = por %p26, %p27
    %p29 = scmp.ne.s32.totalorder %s18, %s21
    %p30 = scmp.eq.s32.totalorder %s13, 1
    %p31 = por %p29, %p30
    %p32 = scmp.ne.s32.totalorder %s21, %s22
    %p33 = scmp.eq.s32.totalorder %s13, 0
    %p34 = por %p32, %p33
    %p35 = scmp.ne.s32.totalorder %s21, %s22
    %p36 = scmp.eq.s32.totalorder %s14, 1
    %p37 = por %p35, %p36
    %p39 = scmp.ne.s32.totalorder %s22, %s38
    %p40 = scmp.eq.s32.totalorder %s14, 0
    %p41 = por %p39, %p40
    %s43 = sadd.s32 %s42, 1
    %p46 = scmp.eq.s32.totalorder %s8, 1
    %p47 = scmp.ne.s32.totalorder %s42, %s44
    %p48 = scmp.eq.s32.totalorder %s8, 0
    %p49 = por %p47, %p48
    %p50 = scmp.ne.s32.totalorder %s42, %s44
    %p51 = scmp.eq.s32.totalorder %s13, 1
    %p52 = por %p50, %p51
    %p53 = scmp.ne.s32.totalorder %s44, %s45
    %p54 = scmp.eq.s32.totalorder %s13, 0
    %p55 = por %p53, %p54
    %p56 = scmp.ne.s32.totalorder %s44, %s45
    %p57 = scmp.eq.s32.totalorder %s14, 1
    %p58 = por %p56, %p57
    %p60 = scmp.ne.s32.totalorder %s45, %s59
    %p61 = scmp.eq.s32.totalorder %s14, 0
    %p62 = por %p60, %p61
    %s63 = ssub.s32 %s8, %s15
    %p64 = scmp.eq.s32.totalorder %s63, 0
    %s66 = sadd.s32 %s65, 1
    %s67 = scalar_select %p64, %s65, %s66
    %p70 = pneg %p64
    %p71 = scmp.eq.s32.totalorder %s8, 1
    %p72 = por %p70, %p71
    %p73 = scmp.ne.s32.totalorder %s65, %s68
    %p74 = scmp.eq.s32.totalorder %s8, 0
    %p75 = por %p73, %p74
    %p76 = scmp.ne.s32.totalorder %s65, %s68
    %p77 = scmp.eq.s32.totalorder %s13, 1
    %p78 = por %p76, %p77
    %p79 = scmp.ne.s32.totalorder %s68, %s69
    %p80 = scmp.eq.s32.totalorder %s13, 0
    %p81 = por %p79, %p80
    %p82 = scmp.ne.s32.totalorder %s68, %s69
    %p83 = scmp.eq.s32.totalorder %s14, 1
    %p84 = por %p82, %p83
    %p86 = scmp.ne.s32.totalorder %s69, %s85
    %p87 = scmp.eq.s32.totalorder %s14, 0
    %p88 = por %p86, %p87
    %p89 = scmp.le.s32.totalorder 1, %s8
    %p90 = scmp.lt.s32.totalorder %s8, 3
    %p91 = pnand %p89, %p90
    %p92 = pneg %p91
    // Predicated region
    $region9: #{fwd.6} parent=5 // pred_check
      _
    $region10: #{fwd.6} parent=5 // pred_check_branch
      %94 = sbr.rel (%p91) target = $region12
    $region11: #{fwd.6} parent=5 // pred_region
      %s95 = ssub.s32 %s8, 1
      // Predicated region
      $region13: #{fwd.6} parent=11 // pred_check
        %p96 = pneg %p55
      $region14: #{fwd.6} parent=11 // pred_check_branch
        %98 = sbr.rel (%p96) target = $region16
      $region15: #{fwd.6} parent=11 // pred_region
        _
      $region16: #{fwd.6} parent=11 // pred_fallthru
        _
    $region12: #{fwd.6} parent=5 // pred_fallthru
      _
    %p99 = scmp.lt.s32.totalorder %s8, 2
    // Predicated region
    $region17: #{fwd.6} parent=5 // pred_check
      %p100 = pneg %p99
    $region18: #{fwd.6} parent=5 // pred_check_branch
      %102 = sbr.rel (%p100) target = $region20
    $region19: #{fwd.6} parent=5 // pred_region
      // Predicated region
      $region21: #{fwd.6} parent=19 // pred_check
        %p103 = pneg %p28
      $region22: #{fwd.6} parent=19 // pred_check_branch
        %105 = sbr.rel (%p103) target = $region24
      $region23: #{fwd.6} parent=19 // pred_region
        %s106 = smul.u32 32, %s8
        %p107 = scmp.lt.s32.totalorder %s106, 63
        %s108 = scalar_select %p107, %s106, 63
        %s109 = smul.addr %s108, 4
        %s110 = scalar_lea.vmem %s0, %s109
        %s111 = smul.u32 32, %s8
      $region24: #{fwd.6} parent=19 // pred_fallthru
        _
    $region20: #{fwd.6} parent=5 // pred_fallthru
      _
    %p112 = scmp.le.s32.totalorder 1, %s8
    %p113 = scmp.lt.s32.totalorder %s8, 3
    %p114 = pnand %p112, %p113
    %p115 = pneg %p114
    // Predicated region
    $region25: #{fwd.6} parent=5 // pred_check
      _
    $region26: #{fwd.6} parent=5 // pred_check_branch
      %117 = sbr.rel (%p114) target = $region28
    $region27: #{fwd.6} parent=5 // pred_region
      %s118 = ssub.s32 %s8, 1
      %s119 = smul.u32 32, %s13
      %p120 = scmp.lt.s32.totalorder %s119, 63
      %s121 = scalar_select %p120, %s119, 63
      %s122 = smul.addr %s121, 4
      %s123 = scalar_lea.vmem %s0, %s122
      %p124 = pneg %p34
      %p125 = pneg %p31
      %p126 = pneg %p55
      %p127 = pneg %p52
      %p128 = pneg %p81
      %p129 = pneg %p78
      %s130 = smul.u32 32, %s13
      %p131 = scmp.lt.s32.totalorder %s130, 63
      %s132 = scalar_select %p131, %s130, 63
      %s133 = smul.addr %s132, 4
      %s134 = scalar_lea.vmem %s2, %s133
      %s135 = smul.u32 32, %s13
      %p136 = scmp.lt.s32.totalorder %s135, 63
      %s137 = scalar_select %p136, %s135, 63
      %s138 = smul.addr %s137, 4
      %s139 = scalar_lea.vmem %s0, %s138
      %s140 = smul.u32 32, %s13
      %s141 = smul.u32 32, %s13
      %p142 = scmp.lt.s32.totalorder %s141, 63
      %s143 = scalar_select %p142, %s141, 63
      %s144 = smul.addr %s143, 4
      %s145 = scalar_lea.vmem %s2, %s144
      %s146 = smul.u32 32, %s13
      %v148 = vld [vmem:[%s139] sm:$0xf]
      %v149 = vld [vmem:[%s139 + $0x4] sm:$0xf]
      %v150 = vld [vmem:[%s139 + $0x8] sm:$0xf]
      %v151 = vld [vmem:[%s139 + $0xc] sm:$0xf]
      %v152 = vld [vmem:[%s139 + $0x10] sm:$0xf]
      %v153 = vld [vmem:[%s139 + $0x14] sm:$0xf]
      %v154 = vld [vmem:[%s139 + $0x18] sm:$0xf]
      %v155 = vld [vmem:[%s139 + $0x1c] sm:$0xf]
      %v156 = vld [vmem:[%s139 + $0x20] sm:$0xf]
      %v157 = vld [vmem:[%s139 + $0x24] sm:$0xf]
      %v158 = vld [vmem:[%s139 + $0x28] sm:$0xf]
      %v159 = vld [vmem:[%s139 + $0x2c] sm:$0xf]
      %v160 = vld [vmem:[%s139 + $0x30] sm:$0xf]
      %v161 = vld [vmem:[%s139 + $0x34] sm:$0xf]
      %v162 = vld [vmem:[%s139 + $0x38] sm:$0xf]
      %v163 = vld [vmem:[%s139 + $0x3c] sm:$0xf]
      %v164 = vld [vmem:[%s139 + $0x40] sm:$0xf]
      %v165 = vld [vmem:[%s139 + $0x44] sm:$0xf]
      %v166 = vld [vmem:[%s139 + $0x48] sm:$0xf]
      %v167 = vld [vmem:[%s139 + $0x4c] sm:$0xf]
      %v168 = vld [vmem:[%s139 + $0x50] sm:$0xf]
      %v169 = vld [vmem:[%s139 + $0x54] sm:$0xf]
      %v170 = vld [vmem:[%s139 + $0x58] sm:$0xf]
      %v171 = vld [vmem:[%s139 + $0x5c] sm:$0xf]
      %v172 = vld [vmem:[%s139 + $0x60] sm:$0xf]
      %v173 = vld [vmem:[%s139 + $0x64] sm:$0xf]
      %v174 = vld [vmem:[%s139 + $0x68] sm:$0xf]
      %v175 = vld [vmem:[%s139 + $0x6c] sm:$0xf]
      %v176 = vld [vmem:[%s139 + $0x70] sm:$0xf]
      %v177 = vld [vmem:[%s139 + $0x74] sm:$0xf]
      %v178 = vld [vmem:[%s139 + $0x78] sm:$0xf]
      %v179 = vld [vmem:[%s139 + $0x7c] sm:$0xf]
      %v180 = vld [vmem:[%s1] sm:$0xf]
      %v181 = vld [vmem:[%s1 + $0x4] sm:$0xf]
      %v182 = vld [vmem:[%s1 + $0x8] sm:$0xf]
      %v183 = vld [vmem:[%s1 + $0xc] sm:$0xf]
      %v184 = vld [vmem:[%s1 + $0x10] sm:$0xf]
      %v185 = vld [vmem:[%s1 + $0x14] sm:$0xf]
      %v186 = vld [vmem:[%s1 + $0x18] sm:$0xf]
      %v187 = vld [vmem:[%s1 + $0x1c] sm:$0xf]
      %v188 = vld [vmem:[%s1 + $0x20] sm:$0xf]
      %v189 = vld [vmem:[%s1 + $0x24] sm:$0xf]
      %v190 = vld [vmem:[%s1 + $0x28] sm:$0xf]
      %v191 = vld [vmem:[%s1 + $0x2c] sm:$0xf]
      %v192 = vld [vmem:[%s1 + $0x30] sm:$0xf]
      %v193 = vld [vmem:[%s1 + $0x34] sm:$0xf]
      %v194 = vld [vmem:[%s1 + $0x38] sm:$0xf]
      %v195 = vld [vmem:[%s1 + $0x3c] sm:$0xf]
      %v228 = vunpack.c.l.b16 %v148
      %v229 = vunpack.c.l.b16 %v149
      %v230 = vunpack.c.l.b16 %v150
      %v231 = vunpack.c.l.b16 %v151
      %v232 = vunpack.c.l.b16 %v152
      %v233 = vunpack.c.l.b16 %v153
      %v234 = vunpack.c.l.b16 %v154
      %v235 = vunpack.c.l.b16 %v155
      %v236 = vunpack.c.l.b16 %v156
      %v237 = vunpack.c.l.b16 %v157
      %v238 = vunpack.c.l.b16 %v158
      %v239 = vunpack.c.l.b16 %v159
      %v240 = vunpack.c.l.b16 %v160
      %v241 = vunpack.c.l.b16 %v161
      %v242 = vunpack.c.l.b16 %v162
      %v243 = vunpack.c.l.b16 %v163
      %v244 = vunpack.c.l.b16 %v164
      %v245 = vunpack.c.l.b16 %v165
      %v246 = vunpack.c.l.b16 %v166
      %v247 = vunpack.c.l.b16 %v167
      %v248 = vunpack.c.l.b16 %v168
      %v249 = vunpack.c.l.b16 %v169
      %v250 = vunpack.c.l.b16 %v170
      %v251 = vunpack.c.l.b16 %v171
      %v252 = vunpack.c.l.b16 %v172
      %v253 = vunpack.c.l.b16 %v173
      %v254 = vunpack.c.l.b16 %v174
      %v255 = vunpack.c.l.b16 %v175
      %v256 = vunpack.c.l.b16 %v176
      %v257 = vunpack.c.l.b16 %v177
      %v258 = vunpack.c.l.b16 %v178
      %v259 = vunpack.c.l.b16 %v179
      %v260 = vpack.c.b16 %v229, %v228
      %v261 = vpack.c.b16 %v231, %v230
      %v262 = vpack.c.b16 %v233, %v232
      %v263 = vpack.c.b16 %v235, %v234
      %v264 = vpack.c.b16 %v237, %v236
      %v265 = vpack.c.b16 %v239, %v238
      %v266 = vpack.c.b16 %v241, %v240
      %v267 = vpack.c.b16 %v243, %v242
      %v268 = vpack.c.b16 %v245, %v244
      %v269 = vpack.c.b16 %v247, %v246
      %v270 = vpack.c.b16 %v249, %v248
      %v271 = vpack.c.b16 %v251, %v250
      %v272 = vpack.c.b16 %v253, %v252
      %v273 = vpack.c.b16 %v255, %v254
      %v274 = vpack.c.b16 %v257, %v256
      %v275 = vpack.c.b16 %v259, %v258
      %v308 = vunpack.c.l.b16 %v180
      %v309 = vunpack.c.l.b16 %v181
      %v310 = vunpack.c.l.b16 %v182
      %v311 = vunpack.c.l.b16 %v183
      %v312 = vunpack.c.l.b16 %v184
      %v313 = vunpack.c.l.b16 %v185
      %v314 = vunpack.c.l.b16 %v186
      %v315 = vunpack.c.l.b16 %v187
      %v316 = vunpack.c.l.b16 %v188
      %v317 = vunpack.c.l.b16 %v189
      %v318 = vunpack.c.l.b16 %v190
      %v319 = vunpack.c.l.b16 %v191
      %v320 = vunpack.c.l.b16 %v192
      %v321 = vunpack.c.l.b16 %v193
      %v322 = vunpack.c.l.b16 %v194
      %v323 = vunpack.c.l.b16 %v195
      %v324 = vpack.c.b16 %v309, %v308
      %v325 = vpack.c.b16 %v311, %v310
      %v326 = vpack.c.b16 %v313, %v312
      %v327 = vpack.c.b16 %v315, %v314
      %v328 = vpack.c.b16 %v317, %v316
      %v329 = vpack.c.b16 %v319, %v318
      %v330 = vpack.c.b16 %v321, %v320
      %v331 = vpack.c.b16 %v323, %v322
      %340 = vmatprep.subr.bf16.mxu0 0
      %341 = vmatpush1.bf16.msra.mxu0 %v331
      %342 = vmatprep.subr.bf16.mxu0 0
      %343 = vmatpush1.bf16.msra.mxu0 %v330
      %344 = vmatprep.subr.bf16.mxu0 0
      %345 = vmatpush1.bf16.msra.mxu0 %v329
      %346 = vmatprep.subr.bf16.mxu0 0
      %347 = vmatpush1.bf16.msra.mxu0 %v328
      %348 = vmatprep.subr.bf16.mxu0 0
      %349 = vmatpush1.bf16.msra.mxu0 %v327
      %350 = vmatprep.subr.bf16.mxu0 0
      %351 = vmatpush1.bf16.msra.mxu0 %v326
      %352 = vmatprep.subr.bf16.mxu0 0
      %353 = vmatpush1.bf16.msra.mxu0 %v325
      %354 = vmatprep.subr.bf16.mxu0 0
      %355 = vmatpush1.bf16.msra.mxu0 %v324
      %356 = vmatprep.subr.bf16.mxu0 0
      %357 = vmatpush2.bf16.msra.mxu0 0
      %358 = vmatprep.subr.bf16.mxu0 0
      %359 = vmatpush2.bf16.msra.mxu0 0
      %360 = vmatprep.subr.bf16.mxu0 0
      %361 = vmatpush2.bf16.msra.mxu0 0
      %362 = vmatprep.subr.bf16.mxu0 0
      %363 = vmatpush2.bf16.msra.mxu0 0
      %364 = vmatprep.subr.bf16.mxu0 0
      %365 = vmatpush2.bf16.msra.mxu0 0
      %366 = vmatprep.subr.bf16.mxu0 0
      %367 = vmatpush2.bf16.msra.mxu0 0
      %368 = vmatprep.subr.bf16.mxu0 0
      %369 = vmatpush2.bf16.msra.mxu0 0
      %370 = vmatprep.subr.bf16.mxu0 0
      %371 = vmatpush2.bf16.msra.mxu0 0
      %372 = vmatprep.mubr.bf16.mxu0 0
      %373 = vmatmul.mubr.bf16.gmra.mxu0 %v260
      %v374 = vpop.f32.mrf.mxu0
      %v375 = vadd.f32 0.0, %v374
      %v376 = vpop.f32.mrf.mxu0
      %v377 = vpop.f32.mrf.mxu0
      %v378 = vadd.f32 0.0, %v377
      %v379 = vpop.f32.mrf.mxu0
      %380 = vmatprep.mubr.bf16.mxu0 0
      %381 = vmatmul.mubr.bf16.gmra.mxu0 %v261
      %v382 = vpop.f32.mrf.mxu0
      %v383 = vadd.f32 0.0, %v382
      %v384 = vpop.f32.mrf.mxu0
      %v385 = vpop.f32.mrf.mxu0
      %v386 = vadd.f32 0.0, %v385
      %v387 = vpop.f32.mrf.mxu0
      %388 = vmatprep.mubr.bf16.mxu0 0
      %389 = vmatmul.mubr.bf16.gmra.mxu0 %v262
      %v390 = vpop.f32.mrf.mxu0
      %v391 = vadd.f32 0.0, %v390
      %v392 = vpop.f32.mrf.mxu0
      %v393 = vpop.f32.mrf.mxu0
      %v394 = vadd.f32 0.0, %v393
      %v395 = vpop.f32.mrf.mxu0
      %396 = vmatprep.mubr.bf16.mxu0 0
      %397 = vmatmul.mubr.bf16.gmra.mxu0 %v263
      %v398 = vpop.f32.mrf.mxu0
      %v399 = vadd.f32 0.0, %v398
      %v400 = vpop.f32.mrf.mxu0
      %v401 = vpop.f32.mrf.mxu0
      %v402 = vadd.f32 0.0, %v401
      %v403 = vpop.f32.mrf.mxu0
      %404 = vmatprep.mubr.bf16.mxu0 0
      %405 = vmatmul.mubr.bf16.gmra.mxu0 %v264
      %v406 = vpop.f32.mrf.mxu0
      %v407 = vadd.f32 0.0, %v406
      %v408 = vpop.f32.mrf.mxu0
      %v409 = vpop.f32.mrf.mxu0
      %v410 = vadd.f32 0.0, %v409
      %v411 = vpop.f32.mrf.mxu0
      %412 = vmatprep.mubr.bf16.mxu0 0
      %413 = vmatmul.mubr.bf16.gmra.mxu0 %v265
      %v414 = vpop.f32.mrf.mxu0
      %v415 = vadd.f32 0.0, %v414
      %v416 = vpop.f32.mrf.mxu0
      %v417 = vpop.f32.mrf.mxu0
      %v418 = vadd.f32 0.0, %v417
      %v419 = vpop.f32.mrf.mxu0
      %420 = vmatprep.mubr.bf16.mxu0 0
      %421 = vmatmul.mubr.bf16.gmra.mxu0 %v266
      %v422 = vpop.f32.mrf.mxu0
      %v423 = vadd.f32 0.0, %v422
      %v424 = vpop.f32.mrf.mxu0
      %v425 = vpop.f32.mrf.mxu0
      %v426 = vadd.f32 0.0, %v425
      %v427 = vpop.f32.mrf.mxu0
      %428 = vmatprep.mubr.bf16.mxu0 0
      %429 = vmatmul.mubr.bf16.gmra.mxu0 %v267
      %v430 = vpop.f32.mrf.mxu0
      %v431 = vadd.f32 0.0, %v430
      %v432 = vpop.f32.mrf.mxu0
      %v433 = vpop.f32.mrf.mxu0
      %v434 = vadd.f32 0.0, %v433
      %v435 = vpop.f32.mrf.mxu0
      %436 = vmatprep.mubr.bf16.mxu0 0
      %437 = vmatmul.mubr.bf16.gmra.mxu0 %v268
      %v438 = vpop.f32.mrf.mxu0
      %v439 = vadd.f32 0.0, %v438
      %v440 = vpop.f32.mrf.mxu0
      %v441 = vpop.f32.mrf.mxu0
      %v442 = vadd.f32 0.0, %v441
      %v443 = vpop.f32.mrf.mxu0
      %444 = vmatprep.mubr.bf16.mxu0 0
      %445 = vmatmul.mubr.bf16.gmra.mxu0 %v269
      %v446 = vpop.f32.mrf.mxu0
      %v447 = vadd.f32 0.0, %v446
      %v448 = vpop.f32.mrf.mxu0
      %v449 = vpop.f32.mrf.mxu0
      %v450 = vadd.f32 0.0, %v449
      %v451 = vpop.f32.mrf.mxu0
      %452 = vmatprep.mubr.bf16.mxu0 0
      %453 = vmatmul.mubr.bf16.gmra.mxu0 %v270
      %v454 = vpop.f32.mrf.mxu0
      %v455 = vadd.f32 0.0, %v454
      %v456 = vpop.f32.mrf.mxu0
      %v457 = vpop.f32.mrf.mxu0
      %v458 = vadd.f32 0.0, %v457
      %v459 = vpop.f32.mrf.mxu0
      %460 = vmatprep.mubr.bf16.mxu0 0
      %461 = vmatmul.mubr.bf16.gmra.mxu0 %v271
      %v462 = vpop.f32.mrf.mxu0
      %v463 = vadd.f32 0.0, %v462
      %v464 = vpop.f32.mrf.mxu0
      %v465 = vpop.f32.mrf.mxu0
      %v466 = vadd.f32 0.0, %v465
      %v467 = vpop.f32.mrf.mxu0
      %468 = vmatprep.mubr.bf16.mxu0 0
      %469 = vmatmul.mubr.bf16.gmra.mxu0 %v272
      %v470 = vpop.f32.mrf.mxu0
      %v471 = vadd.f32 0.0, %v470
      %v472 = vpop.f32.mrf.mxu0
      %v473 = vpop.f32.mrf.mxu0
      %v474 = vadd.f32 0.0, %v473
      %v475 = vpop.f32.mrf.mxu0
      %476 = vmatprep.mubr.bf16.mxu0 0
      %477 = vmatmul.mubr.bf16.gmra.mxu0 %v273
      %v478 = vpop.f32.mrf.mxu0
      %v479 = vadd.f32 0.0, %v478
      %v480 = vpop.f32.mrf.mxu0
      %v481 = vpop.f32.mrf.mxu0
      %v482 = vadd.f32 0.0, %v481
      %v483 = vpop.f32.mrf.mxu0
      %484 = vmatprep.mubr.bf16.mxu0 0
      %485 = vmatmul.mubr.bf16.gmra.mxu0 %v274
      %v486 = vpop.f32.mrf.mxu0
      %v487 = vadd.f32 0.0, %v486
      %v488 = vpop.f32.mrf.mxu0
      %v489 = vpop.f32.mrf.mxu0
      %v490 = vadd.f32 0.0, %v489
      %v491 = vpop.f32.mrf.mxu0
      %492 = vmatprep.mubr.bf16.mxu0 0
      %493 = vmatmul.mubr.bf16.gmra.mxu0 %v275
      %v494 = vpop.f32.mrf.mxu0
      %v495 = vadd.f32 0.0, %v494
      %v496 = vpop.f32.mrf.mxu0
      %v497 = vpop.f32.mrf.mxu0
      %v498 = vadd.f32 0.0, %v497
      %v499 = vpop.f32.mrf.mxu0
      %500 = vdwg.mxu0
      %v501 = vpack.c.bf16 %v378, %v375
      %v502 = vpack.c.bf16 %v386, %v383
      %v503 = vpack.c.bf16 %v394, %v391
      %v504 = vpack.c.bf16 %v402, %v399
      %v505 = vpack.c.bf16 %v410, %v407
      %v506 = vpack.c.bf16 %v418, %v415
      %v507 = vpack.c.bf16 %v426, %v423
      %v508 = vpack.c.bf16 %v434, %v431
      %v509 = vpack.c.bf16 %v442, %v439
      %v510 = vpack.c.bf16 %v450, %v447
      %v511 = vpack.c.bf16 %v458, %v455
      %v512 = vpack.c.bf16 %v466, %v463
      %v513 = vpack.c.bf16 %v474, %v471
      %v514 = vpack.c.bf16 %v482, %v479
      %v515 = vpack.c.bf16 %v490, %v487
      %v516 = vpack.c.bf16 %v498, %v495
      %v533 = vunpack.c.l.b16 %v501
      %v534 = vunpack.c.h.b16 %v501
      %v535 = vunpack.c.l.b16 %v502
      %v536 = vunpack.c.h.b16 %v502
      %v537 = vunpack.c.l.b16 %v503
      %v538 = vunpack.c.h.b16 %v503
      %v539 = vunpack.c.l.b16 %v504
      %v540 = vunpack.c.h.b16 %v504
      %v541 = vunpack.c.l.b16 %v505
      %v542 = vunpack.c.h.b16 %v505
      %v543 = vunpack.c.l.b16 %v506
      %v544 = vunpack.c.h.b16 %v506
      %v545 = vunpack.c.l.b16 %v507
      %v546 = vunpack.c.h.b16 %v507
      %v547 = vunpack.c.l.b16 %v508
      %v548 = vunpack.c.h.b16 %v508
      %v549 = vunpack.c.l.b16 %v509
      %v550 = vunpack.c.h.b16 %v509
      %v551 = vunpack.c.l.b16 %v510
      %v552 = vunpack.c.h.b16 %v510
      %v553 = vunpack.c.l.b16 %v511
      %v554 = vunpack.c.h.b16 %v511
      %v555 = vunpack.c.l.b16 %v512
      %v556 = vunpack.c.h.b16 %v512
      %v557 = vunpack.c.l.b16 %v513
      %v558 = vunpack.c.h.b16 %v513
      %v559 = vunpack.c.l.b16 %v514
      %v560 = vunpack.c.h.b16 %v514
      %v561 = vunpack.c.l.b16 %v515
      %v562 = vunpack.c.h.b16 %v515
      %v563 = vunpack.c.l.b16 %v516
      %v564 = vunpack.c.h.b16 %v516
      %v565 = vpack.c.b16 %v533, %v533
      %v566 = vpack.c.b16 %v534, %v534
      %v567 = vpack.c.b16 %v535, %v535
      %v568 = vpack.c.b16 %v536, %v536
      %v569 = vpack.c.b16 %v537, %v537
      %v570 = vpack.c.b16 %v538, %v538
      %v571 = vpack.c.b16 %v539, %v539
      %v572 = vpack.c.b16 %v540, %v540
      %v573 = vpack.c.b16 %v541, %v541
      %v574 = vpack.c.b16 %v542, %v542
      %v575 = vpack.c.b16 %v543, %v543
      %v576 = vpack.c.b16 %v544, %v544
      %v577 = vpack.c.b16 %v545, %v545
      %v578 = vpack.c.b16 %v546, %v546
      %v579 = vpack.c.b16 %v547, %v547
      %v580 = vpack.c.b16 %v548, %v548
      %v581 = vpack.c.b16 %v549, %v549
      %v582 = vpack.c.b16 %v550, %v550
      %v583 = vpack.c.b16 %v551, %v551
      %v584 = vpack.c.b16 %v552, %v552
      %v585 = vpack.c.b16 %v553, %v553
      %v586 = vpack.c.b16 %v554, %v554
      %v587 = vpack.c.b16 %v555, %v555
      %v588 = vpack.c.b16 %v556, %v556
      %v589 = vpack.c.b16 %v557, %v557
      %v590 = vpack.c.b16 %v558, %v558
      %v591 = vpack.c.b16 %v559, %v559
      %v592 = vpack.c.b16 %v560, %v560
      %v593 = vpack.c.b16 %v561, %v561
      %v594 = vpack.c.b16 %v562, %v562
      %v595 = vpack.c.b16 %v563, %v563
      %v596 = vpack.c.b16 %v564, %v564
      %629 = vst [vmem:[%s145] sm:$0xf] %v565
      %630 = vst [vmem:[%s145 + $0x4] sm:$0xf] %v566
      %631 = vst [vmem:[%s145 + $0x8] sm:$0xf] %v567
      %632 = vst [vmem:[%s145 + $0xc] sm:$0xf] %v568
      %633 = vst [vmem:[%s145 + $0x10] sm:$0xf] %v569
      %634 = vst [vmem:[%s145 + $0x14] sm:$0xf] %v570
      %635 = vst [vmem:[%s145 + $0x18] sm:$0xf] %v571
      %636 = vst [vmem:[%s145 + $0x1c] sm:$0xf] %v572
      %637 = vst [vmem:[%s145 + $0x20] sm:$0xf] %v573
      %638 = vst [vmem:[%s145 + $0x24] sm:$0xf] %v574
      %639 = vst [vmem:[%s145 + $0x28] sm:$0xf] %v575
      %640 = vst [vmem:[%s145 + $0x2c] sm:$0xf] %v576
      %641 = vst [vmem:[%s145 + $0x30] sm:$0xf] %v577
      %642 = vst [vmem:[%s145 + $0x34] sm:$0xf] %v578
      %643 = vst [vmem:[%s145 + $0x38] sm:$0xf] %v579
      %644 = vst [vmem:[%s145 + $0x3c] sm:$0xf] %v580
      %645 = vst [vmem:[%s145 + $0x40] sm:$0xf] %v581
      %646 = vst [vmem:[%s145 + $0x44] sm:$0xf] %v582
      %647 = vst [vmem:[%s145 + $0x48] sm:$0xf] %v583
      %648 = vst [vmem:[%s145 + $0x4c] sm:$0xf] %v584
      %649 = vst [vmem:[%s145 + $0x50] sm:$0xf] %v585
      %650 = vst [vmem:[%s145 + $0x54] sm:$0xf] %v586
      %651 = vst [vmem:[%s145 + $0x58] sm:$0xf] %v587
      %652 = vst [vmem:[%s145 + $0x5c] sm:$0xf] %v588
      %653 = vst [vmem:[%s145 + $0x60] sm:$0xf] %v589
      %654 = vst [vmem:[%s145 + $0x64] sm:$0xf] %v590
      %655 = vst [vmem:[%s145 + $0x68] sm:$0xf] %v591
      %656 = vst [vmem:[%s145 + $0x6c] sm:$0xf] %v592
      %657 = vst [vmem:[%s145 + $0x70] sm:$0xf] %v593
      %658 = vst [vmem:[%s145 + $0x74] sm:$0xf] %v594
      %659 = vst [vmem:[%s145 + $0x78] sm:$0xf] %v595
      %660 = vst [vmem:[%s145 + $0x7c] sm:$0xf] %v596
      %s661 = smul.u32 32, %s13
      %p662 = scmp.lt.s32.totalorder %s661, 63
      %s663 = scalar_select %p662, %s661, 63
      %s664 = smul.addr %s663, 4
      %s665 = scalar_lea.vmem %s2, %s664
      // Predicated region
      $region29: #{fwd.6} parent=27 // pred_check
        %p666 = pneg %p78
      $region30: #{fwd.6} parent=27 // pred_check_branch
        %668 = sbr.rel (%p666) target = $region32
      $region31: #{fwd.6} parent=27 // pred_region
        %s669 = smul.u32 32, %s13
      $region32: #{fwd.6} parent=27 // pred_fallthru
        _
    $region28: #{fwd.6} parent=5 // pred_fallthru
      _
    %p670 = scmp.le.s32.totalorder 2, %s8
    // Predicated region
    $region33: #{fwd.6} parent=5 // pred_check
      %p671 = pneg %p670
    $region34: #{fwd.6} parent=5 // pred_check_branch
      %673 = sbr.rel (%p671) target = $region36
    $region35: #{fwd.6} parent=5 // pred_region
      %s674 = ssub.s32 %s8, 2
      // Predicated region
      $region37: #{fwd.6} parent=35 // pred_check
        %p675 = pneg %p84
      $region38: #{fwd.6} parent=35 // pred_check_branch
        %677 = sbr.rel (%p675) target = $region40
      $region39: #{fwd.6} parent=35 // pred_region
        %s678 = smul.u32 32, %s14
        %p679 = scmp.lt.s32.totalorder %s678, 63
        %s680 = scalar_select %p679, %s678, 63
        %s681 = smul.addr %s680, 4
        %s682 = scalar_lea.vmem %s2, %s681
      $region40: #{fwd.6} parent=35 // pred_fallthru
        _
    $region36: #{fwd.6} parent=5 // pred_fallthru
      _
  $region6: #{fwd.6} parent=0 // loop_footer
    %s12 = sadd.s32 1, %s8
  $region7: #{fwd.6} parent=0 // loop_footer_branch
    %7 = sbr.rel target = $region3
  $region8: #{fwd.6} parent=0 // loop_exit
    _

// kernel: fwd.11
$region0: #{fwd.11}
  #allocation0 [shape = 'u32[]', space=smem, size = 0x4, offset = 0x4, fixed_abs, tag = 'smem constant byte address 0x4 - core index']
  #allocation1 [shape = 'u32[144,128]{1,0:T(1,128)}', space=vmem, size = 0x12000, scoped, tag = 'internal scratch']
  %s0 = inlined_call_operand.vmem [shape: bf16[8,128], index: 0, kind: input, shape index: {}]
  %s1 = inlined_call_operand.vmem [shape: bf16[512,128], index: 1, kind: input, shape index: {}]
  %s2 = inlined_call_operand.vmem [shape: f32[8,512], index: 2, kind: output, shape index: {}]
  %s3 = sld [smem:[#allocation0]]
  $region41: #{fwd.11} parent=0
    _
  %s5 = ssub.s32 1, %s3
  %s6 = scalar_select 0, %s5, %s3
  loop: start=0, step=1, limit=4
  $region2: #{fwd.11} parent=0 // loop_pre_header
    _
  $region3: #{fwd.11} parent=0 // loop_header
    %s8 = sphi 0, %s12
    %p9 = scmp.ge.s32.totalorder %s8, 4
    %s16 = sphi 0, %s16
    %s18 = sphi 0, %s16
    %s19 = sphi 0, %s18
    %s33 = sphi 0, %s19
    %s39 = sphi 0, %s41
    %s42 = sphi 0, %s39
    %s43 = sphi 0, %s42
    %s59 = sphi 0, %s43
    %s65 = sphi 0, %s67
    %s68 = sphi 0, %s65
    %s69 = sphi 0, %s68
    %s85 = sphi 0, %s69
  $region4: #{fwd.11} parent=0 // loop_header_branch
    %11 = sbr.rel (%p9) target = $region8
  $region5: #{fwd.11} parent=0 // loop_body
    %s13 = ssub.s32 %s8, 1
    %s14 = ssub.s32 %s8, 2
    %s15 = sadd.s32 %s8, 1
    %s17 = sadd.s32 %s16, 1
    %p20 = scmp.eq.s32.totalorder %s8, 1
    %p21 = scmp.ne.s32.totalorder %s16, %s18
    %p22 = scmp.eq.s32.totalorder %s8, 0
    %p23 = por %p21, %p22
    %p24 = scmp.ne.s32.totalorder %s16, %s18
    %p25 = scmp.eq.s32.totalorder %s13, 1
    %p26 = por %p24, %p25
    %p27 = scmp.ne.s32.totalorder %s18, %s19
    %p28 = scmp.eq.s32.totalorder %s13, 0
    %p29 = por %p27, %p28
    %p30 = scmp.ne.s32.totalorder %s18, %s19
    %p31 = scmp.eq.s32.totalorder %s14, 1
    %p32 = por %p30, %p31
    %p34 = scmp.ne.s32.totalorder %s19, %s33
    %p35 = scmp.eq.s32.totalorder %s14, 0
    %p36 = por %p34, %p35
    %s37 = ssub.s32 %s8, %s15
    %p38 = scmp.eq.s32.totalorder %s37, 0
    %s40 = sadd.s32 %s39, 1
    %s41 = scalar_select %p38, %s39, %s40
    %p44 = pneg %p38
    %p45 = scmp.eq.s32.totalorder %s8, 1
    %p46 = por %p44, %p45
    %p47 = scmp.ne.s32.totalorder %s39, %s42
    %p48 = scmp.eq.s32.totalorder %s8, 0
    %p49 = por %p47, %p48
    %p50 = scmp.ne.s32.totalorder %s39, %s42
    %p51 = scmp.eq.s32.totalorder %s13, 1
    %p52 = por %p50, %p51
    %p53 = scmp.ne.s32.totalorder %s42, %s43
    %p54 = scmp.eq.s32.totalorder %s13, 0
    %p55 = por %p53, %p54
    %p56 = scmp.ne.s32.totalorder %s42, %s43
    %p57 = scmp.eq.s32.totalorder %s14, 1
    %p58 = por %p56, %p57
    %p60 = scmp.ne.s32.totalorder %s43, %s59
    %p61 = scmp.eq.s32.totalorder %s14, 0
    %p62 = por %p60, %p61
    %s63 = ssub.s32 %s8, %s15
    %p64 = scmp.eq.s32.totalorder %s63, 0
    %s66 = sadd.s32 %s65, 1
    %s67 = scalar_select %p64, %s65, %s66
    %p70 = pneg %p64
    %p71 = scmp.eq.s32.totalorder %s8, 1
    %p72 = por %p70, %p71
    %p73 = scmp.ne.s32.totalorder %s65, %s68
    %p74 = scmp.eq.s32.totalorder %s8, 0
    %p75 = por %p73, %p74
    %p76 = scmp.ne.s32.totalorder %s65, %s68
    %p77 = scmp.eq.s32.totalorder %s13, 1
    %p78 = por %p76, %p77
    %p79 = scmp.ne.s32.totalorder %s68, %s69
    %p80 = scmp.eq.s32.totalorder %s13, 0
    %p81 = por %p79, %p80
    %p82 = scmp.ne.s32.totalorder %s68, %s69
    %p83 = scmp.eq.s32.totalorder %s14, 1
    %p84 = por %p82, %p83
    %p86 = scmp.ne.s32.totalorder %s69, %s85
    %p87 = scmp.eq.s32.totalorder %s14, 0
    %p88 = por %p86, %p87
    %p89 = scmp.le.s32.totalorder 1, %s8
    %p90 = scmp.lt.s32.totalorder %s8, 3
    %p91 = pnand %p89, %p90
    %p92 = pneg %p91
    // Predicated region
    $region9: #{fwd.11} parent=5 // pred_check
      _
    $region10: #{fwd.11} parent=5 // pred_check_branch
      %94 = sbr.rel (%p91) target = $region12
    $region11: #{fwd.11} parent=5 // pred_region
      %s95 = ssub.s32 %s8, 1
      // Predicated region
      $region13: #{fwd.11} parent=11 // pred_check
        %p96 = pneg %p29
      $region14: #{fwd.11} parent=11 // pred_check_branch
        %98 = sbr.rel (%p96) target = $region16
      $region15: #{fwd.11} parent=11 // pred_region
        _
      $region16: #{fwd.11} parent=11 // pred_fallthru
        _
    $region12: #{fwd.11} parent=5 // pred_fallthru
      _
    %p99 = scmp.lt.s32.totalorder %s8, 2
    // Predicated region
    $region17: #{fwd.11} parent=5 // pred_check
      %p100 = pneg %p99
    $region18: #{fwd.11} parent=5 // pred_check_branch
      %102 = sbr.rel (%p100) target = $region20
    $region19: #{fwd.11} parent=5 // pred_region
      // Predicated region
      $region21: #{fwd.11} parent=19 // pred_check
        %p103 = pneg %p49
      $region22: #{fwd.11} parent=19 // pred_check_branch
        %105 = sbr.rel (%p103) target = $region24
      $region23: #{fwd.11} parent=19 // pred_region
        %s106 = smul.u32 32, %s8
        %p107 = scmp.lt.s32.totalorder %s106, 63
        %s108 = scalar_select %p107, %s106, 63
        %s109 = smul.addr %s108, 4
        %s110 = scalar_lea.vmem %s1, %s109
        %s111 = smul.u32 32, %s8
      $region24: #{fwd.11} parent=19 // pred_fallthru
        _
    $region20: #{fwd.11} parent=5 // pred_fallthru
      _
    %p112 = scmp.le.s32.totalorder 1, %s8
    %p113 = scmp.lt.s32.totalorder %s8, 3
    %p114 = pnand %p112, %p113
    %p115 = pneg %p114
    // Predicated region
    $region25: #{fwd.11} parent=5 // pred_check
      _
    $region26: #{fwd.11} parent=5 // pred_check_branch
      %117 = sbr.rel (%p114) target = $region28
    $region27: #{fwd.11} parent=5 // pred_region
      %s118 = ssub.s32 %s8, 1
      %p119 = pneg %p29
      %p120 = pneg %p26
      %s121 = smul.u32 32, %s13
      %p122 = scmp.lt.s32.totalorder %s121, 63
      %s123 = scalar_select %p122, %s121, 63
      %s124 = smul.addr %s123, 4
      %s125 = scalar_lea.vmem %s1, %s124
      %p126 = pneg %p55
      %p127 = pneg %p52
      %p128 = pneg %p81
      %p129 = pneg %p78
      %s130 = smul.u32 2, %s13
      %p131 = scmp.lt.s32.totalorder %s130, 3
      %s132 = scalar_select %p131, %s130, 3
      %s133 = smul.addr %s132, 8
      %s134 = scalar_lea.vmem %s2, %s133
      %s135 = smul.u32 32, %s13
      %p136 = scmp.lt.s32.totalorder %s135, 63
      %s137 = scalar_select %p136, %s135, 63
      %s138 = smul.addr %s137, 4
      %s139 = scalar_lea.vmem %s1, %s138
      %s140 = smul.u32 32, %s13
      %s141 = smul.u32 2, %s13
      %p142 = scmp.lt.s32.totalorder %s141, 3
      %s143 = scalar_select %p142, %s141, 3
      %s144 = smul.addr %s143, 8
      %s145 = scalar_lea.vmem %s2, %s144
      %s146 = smul.u32 2, %s13
      %v148 = vld [vmem:[%s0] sm:$0xf]
      %v149 = vld [vmem:[%s139] sm:$0xf]
      %v150 = vld [vmem:[%s139 + $0x4] sm:$0xf]
      %v151 = vld [vmem:[%s139 + $0x8] sm:$0xf]
      %v152 = vld [vmem:[%s139 + $0xc] sm:$0xf]
      %v153 = vld [vmem:[%s139 + $0x10] sm:$0xf]
      %v154 = vld [vmem:[%s139 + $0x14] sm:$0xf]
      %v155 = vld [vmem:[%s139 + $0x18] sm:$0xf]
      %v156 = vld [vmem:[%s139 + $0x1c] sm:$0xf]
      %v157 = vld [vmem:[%s139 + $0x20] sm:$0xf]
      %v158 = vld [vmem:[%s139 + $0x24] sm:$0xf]
      %v159 = vld [vmem:[%s139 + $0x28] sm:$0xf]
      %v160 = vld [vmem:[%s139 + $0x2c] sm:$0xf]
      %v161 = vld [vmem:[%s139 + $0x30] sm:$0xf]
      %v162 = vld [vmem:[%s139 + $0x34] sm:$0xf]
      %v163 = vld [vmem:[%s139 + $0x38] sm:$0xf]
      %v164 = vld [vmem:[%s139 + $0x3c] sm:$0xf]
      %v165 = vld [vmem:[%s139 + $0x40] sm:$0xf]
      %v166 = vld [vmem:[%s139 + $0x44] sm:$0xf]
      %v167 = vld [vmem:[%s139 + $0x48] sm:$0xf]
      %v168 = vld [vmem:[%s139 + $0x4c] sm:$0xf]
      %v169 = vld [vmem:[%s139 + $0x50] sm:$0xf]
      %v170 = vld [vmem:[%s139 + $0x54] sm:$0xf]
      %v171 = vld [vmem:[%s139 + $0x58] sm:$0xf]
      %v172 = vld [vmem:[%s139 + $0x5c] sm:$0xf]
      %v173 = vld [vmem:[%s139 + $0x60] sm:$0xf]
      %v174 = vld [vmem:[%s139 + $0x64] sm:$0xf]
      %v175 = vld [vmem:[%s139 + $0x68] sm:$0xf]
      %v176 = vld [vmem:[%s139 + $0x6c] sm:$0xf]
      %v177 = vld [vmem:[%s139 + $0x70] sm:$0xf]
      %v178 = vld [vmem:[%s139 + $0x74] sm:$0xf]
      %v179 = vld [vmem:[%s139 + $0x78] sm:$0xf]
      %v180 = vld [vmem:[%s139 + $0x7c] sm:$0xf]
      %v213 = vunpack.c.l.b16 %v149
      %v214 = vunpack.c.l.b16 %v150
      %v215 = vunpack.c.l.b16 %v151
      %v216 = vunpack.c.l.b16 %v152
      %v217 = vunpack.c.l.b16 %v153
      %v218 = vunpack.c.l.b16 %v154
      %v219 = vunpack.c.l.b16 %v155
      %v220 = vunpack.c.l.b16 %v156
      %v221 = vunpack.c.l.b16 %v157
      %v222 = vunpack.c.l.b16 %v158
      %v223 = vunpack.c.l.b16 %v159
      %v224 = vunpack.c.l.b16 %v160
      %v225 = vunpack.c.l.b16 %v161
      %v226 = vunpack.c.l.b16 %v162
      %v227 = vunpack.c.l.b16 %v163
      %v228 = vunpack.c.l.b16 %v164
      %v229 = vunpack.c.l.b16 %v165
      %v230 = vunpack.c.l.b16 %v166
      %v231 = vunpack.c.l.b16 %v167
      %v232 = vunpack.c.l.b16 %v168
      %v233 = vunpack.c.l.b16 %v169
      %v234 = vunpack.c.l.b16 %v170
      %v235 = vunpack.c.l.b16 %v171
      %v236 = vunpack.c.l.b16 %v172
      %v237 = vunpack.c.l.b16 %v173
      %v238 = vunpack.c.l.b16 %v174
      %v239 = vunpack.c.l.b16 %v175
      %v240 = vunpack.c.l.b16 %v176
      %v241 = vunpack.c.l.b16 %v177
      %v242 = vunpack.c.l.b16 %v178
      %v243 = vunpack.c.l.b16 %v179
      %v244 = vunpack.c.l.b16 %v180
      %v245 = vpack.c.b16 %v214, %v213
      %v246 = vpack.c.b16 %v216, %v215
      %v247 = vpack.c.b16 %v218, %v217
      %v248 = vpack.c.b16 %v220, %v219
      %v249 = vpack.c.b16 %v222, %v221
      %v250 = vpack.c.b16 %v224, %v223
      %v251 = vpack.c.b16 %v226, %v225
      %v252 = vpack.c.b16 %v228, %v227
      %v253 = vpack.c.b16 %v230, %v229
      %v254 = vpack.c.b16 %v232, %v231
      %v255 = vpack.c.b16 %v234, %v233
      %v256 = vpack.c.b16 %v236, %v235
      %v257 = vpack.c.b16 %v238, %v237
      %v258 = vpack.c.b16 %v240, %v239
      %v259 = vpack.c.b16 %v242, %v241
      %v260 = vpack.c.b16 %v244, %v243
      %277 = vmatprep.subr.bf16.mxu0 0
      %278 = vmatpush1.bf16.xpose.msra.mxu0 %v252
      %279 = vmatprep.subr.bf16.mxu0 0
      %280 = vmatpush1.bf16.xpose.msra.mxu0 %v251
      %281 = vmatprep.subr.bf16.mxu0 0
      %282 = vmatpush1.bf16.xpose.msra.mxu0 %v250
      %283 = vmatprep.subr.bf16.mxu0 0
      %284 = vmatpush1.bf16.xpose.msra.mxu0 %v249
      %285 = vmatprep.subr.bf16.mxu0 0
      %286 = vmatpush1.bf16.xpose.msra.mxu0 %v248
      %287 = vmatprep.subr.bf16.mxu0 0
      %288 = vmatpush1.bf16.xpose.msra.mxu0 %v247
      %289 = vmatprep.subr.bf16.mxu0 0
      %290 = vmatpush1.bf16.xpose.msra.mxu0 %v246
      %291 = vmatprep.subr.bf16.mxu0 0
      %292 = vmatpush1.bf16.xpose.msra.mxu0 %v245
      %293 = vmatprep.subr.bf16.mxu0 0
      %294 = vmatpush2.bf16.xpose.msra.mxu0 %v260
      %295 = vmatprep.subr.bf16.mxu0 0
      %296 = vmatpush2.bf16.xpose.msra.mxu0 %v259
      %297 = vmatprep.subr.bf16.mxu0 0
      %298 = vmatpush2.bf16.xpose.msra.mxu0 %v258
      %299 = vmatprep.subr.bf16.mxu0 0
      %300 = vmatpush2.bf16.xpose.msra.mxu0 %v257
      %301 = vmatprep.subr.bf16.mxu0 0
      %302 = vmatpush2.bf16.xpose.msra.mxu0 %v256
      %303 = vmatprep.subr.bf16.mxu0 0
      %304 = vmatpush2.bf16.xpose.msra.mxu0 %v255
      %305 = vmatprep.subr.bf16.mxu0 0
      %306 = vmatpush2.bf16.xpose.msra.mxu0 %v254
      %307 = vmatprep.subr.bf16.mxu0 0
      %308 = vmatpush2.bf16.xpose.msra.mxu0 %v253
      %309 = vmatprep.mubr.bf16.mxu0 0
      %310 = vmatmul.mubr.bf16.gmra.mxu0 %v148
      %v311 = vpop.f32.mrf.mxu0
      %v312 = vadd.f32 0.0, %v311
      %v313 = vpop.f32.mrf.mxu0
      %v314 = vadd.f32 0.0, %v313
      %v315 = vpop.f32.mrf.mxu0
      %v316 = vpop.f32.mrf.mxu0
      %317 = vdwg.mxu0
      %v318 = vxor.u32 %v312, 2147483648
      %v319 = vxor.u32 %v314, 2147483648
      %v320 = vmul.f32 %v318, 1.442695
      %v321 = vpow.pop %v320
      %v322 = vmul.f32 %v319, 1.442695
      %v323 = vpow.pop %v322
      %v324 = vadd.f32 %v321, 1.0
      %v325 = vadd.f32 %v323, 1.0
      %v326 = vrcp.pop %v324
      %v327 = vmul.f32 1.0, %v326
      %v328 = vrcp.pop %v325
      %v329 = vmul.f32 1.0, %v328
      %330 = vst [vmem:[%s145] sm:$0xff] %v327
      %331 = vst [vmem:[%s145 + $0x8] sm:$0xff] %v329
      %s332 = smul.u32 2, %s13
      %p333 = scmp.lt.s32.totalorder %s332, 3
      %s334 = scalar_select %p333, %s332, 3
      %s335 = smul.addr %s334, 8
      %s336 = scalar_lea.vmem %s2, %s335
      // Predicated region
      $region29: #{fwd.11} parent=27 // pred_check
        %p337 = pneg %p78
      $region30: #{fwd.11} parent=27 // pred_check_branch
        %339 = sbr.rel (%p337) target = $region32
      $region31: #{fwd.11} parent=27 // pred_region
        %s340 = smul.u32 2, %s13
      $region32: #{fwd.11} parent=27 // pred_fallthru
        _
    $region28: #{fwd.11} parent=5 // pred_fallthru
      _
    %p341 = scmp.le.s32.totalorder 2, %s8
    // Predicated region
    $region33: #{fwd.11} parent=5 // pred_check
      %p342 = pneg %p341
    $region34: #{fwd.11} parent=5 // pred_check_branch
      %344 = sbr.rel (%p342) target = $region36
    $region35: #{fwd.11} parent=5 // pred_region
      %s345 = ssub.s32 %s8, 2
      // Predicated region
      $region37: #{fwd.11} parent=35 // pred_check
        %p346 = pneg %p84
      $region38: #{fwd.11} parent=35 // pred_check_branch
        %348 = sbr.rel (%p346) target = $region40
      $region39: #{fwd.11} parent=35 // pred_region
        %s349 = smul.u32 2, %s14
        %p350 = scmp.lt.s32.totalorder %s349, 3
        %s351 = scalar_select %p350, %s349, 3
        %s352 = smul.addr %s351, 8
        %s353 = scalar_lea.vmem %s2, %s352
      $region40: #{fwd.11} parent=35 // pred_fallthru
        _
    $region36: #{fwd.11} parent=5 // pred_fallthru
      _
  $region6: #{fwd.11} parent=0 // loop_footer
    %s12 = sadd.s32 1, %s8
  $region7: #{fwd.11} parent=0 // loop_footer_branch
    %7 = sbr.rel target = $region3
  $region8: #{fwd.11} parent=0 // loop_exit
    _

// kernel: fwd.10
$region0: #{fwd.10}
  #allocation0 [shape = 'u32[]', space=smem, size = 0x4, offset = 0x4, fixed_abs, tag = 'smem constant byte address 0x4 - core index']
  #allocation1 [shape = 'u32[144,128]{1,0:T(1,128)}', space=vmem, size = 0x12000, scoped, tag = 'internal scratch']
  %s0 = inlined_call_operand.vmem [shape: f32[24], index: 0, kind: input, shape index: {}]
  %s1 = inlined_call_operand.vmem [shape: f32[4], index: 1, kind: input, shape index: {}]
  %s2 = inlined_call_operand.vmem [shape: bf16[8,128], index: 2, kind: input, shape index: {}]
  %s3 = inlined_call_operand.vmem [shape: bf16[8,128], index: 3, kind: input, shape index: {}]
  %s4 = inlined_call_operand.vmem [shape: bf16[512,128], index: 4, kind: input, shape index: {}]
  %s5 = inlined_call_operand.vmem [shape: f32[1,128], index: 5, kind: input, shape index: {}]
  %s6 = inlined_call_operand.vmem [shape: bf16[8,128], index: 6, kind: output, shape index: {}]
  %s7 = sld [smem:[#allocation0]]
  $region42: #{fwd.10} parent=0
    _
  %s9 = ssub.s32 1, %s7
  %s10 = scalar_select 0, %s9, %s7
  $region1: #{fwd.10} parent=0
    #allocation2 [shape = 'u8[512]{0}', space=smem, size = 0x200, scoped, tag = 'input window, operand 0, single buffered']
    #allocation3 [shape = 's32[1]{0}', space=sflag, size = 0x4, scoped, tag = 'scoped memory for fwd.10']
    #allocation4 [shape = 'u8[512]{0}', space=smem, size = 0x200, scoped, tag = 'input window, operand 1, single buffered']
    #allocation5 [shape = 's32[1]{0}', space=sflag, size = 0x4, scoped, tag = 'scoped memory for fwd.10']
    %11 = vsyncpa [#allocation3], 0
    %12 = vsyncpa [#allocation5], 0
    // Predicated region
    $region2: #{fwd.10} parent=1 // pred_check
      _
    $region3: #{fwd.10} parent=1 // pred_check_branch
      %14 = sbr.rel (0) target = $region5
    $region4: #{fwd.10} parent=1 // pred_region
      %s16 = ssub.s32 16, 16
      %17 = vsyncadd [#allocation3], %s16
      %s19 = sshll.u32 %s0, 4
      %s20 = int_to_ptr.vmem [resolvable:$true] %s19
      %22 = dma.vmem_to_smem %s20, 16, [#allocation2], [#allocation3]
    $region5: #{fwd.10} parent=1 // pred_fallthru
      _
    // Predicated region
    $region6: #{fwd.10} parent=1 // pred_check
      _
    $region7: #{fwd.10} parent=1 // pred_check_branch
      %24 = sbr.rel (0) target = $region9
    $region8: #{fwd.10} parent=1 // pred_region
      %s26 = ssub.s32 16, 16
      %27 = vsyncadd [#allocation5], %s26
      %s29 = sshll.u32 %s1, 4
      %s30 = int_to_ptr.vmem [resolvable:$true] %s29
      %32 = dma.vmem_to_smem %s30, 16, [#allocation4], [#allocation5]
    $region9: #{fwd.10} parent=1 // pred_fallthru
      _
    // Predicated region
    $region10: #{fwd.10} parent=1 // pred_check
      _
    $region11: #{fwd.10} parent=1 // pred_check_branch
      %34 = sbr.rel (0) target = $region13
    $region12: #{fwd.10} parent=1 // pred_region
      _
    $region13: #{fwd.10} parent=1 // pred_fallthru
      _
    // Predicated region
    $region14: #{fwd.10} parent=1 // pred_check
      _
    $region15: #{fwd.10} parent=1 // pred_check_branch
      %36 = sbr.rel (0) target = $region17
    $region16: #{fwd.10} parent=1 // pred_region
      _
    $region17: #{fwd.10} parent=1 // pred_fallthru
      _
    // Predicated region
    $region18: #{fwd.10} parent=1 // pred_check
      _
    $region19: #{fwd.10} parent=1 // pred_check_branch
      %38 = sbr.rel (0) target = $region21
    $region20: #{fwd.10} parent=1 // pred_region
      _
    $region21: #{fwd.10} parent=1 // pred_fallthru
      _
    // Predicated region
    $region22: #{fwd.10} parent=1 // pred_check
      _
    $region23: #{fwd.10} parent=1 // pred_check_branch
      %40 = sbr.rel (0) target = $region25
    $region24: #{fwd.10} parent=1 // pred_region
      _
    $region25: #{fwd.10} parent=1 // pred_fallthru
      _
    // Predicated region
    $region26: #{fwd.10} parent=1 // pred_check
      _
    $region27: #{fwd.10} parent=1 // pred_check_branch
      %42 = sbr.rel (0) target = $region29
    $region28: #{fwd.10} parent=1 // pred_region
      %43 = dma.done [#allocation3], 16
    $region29: #{fwd.10} parent=1 // pred_fallthru
      _
    // Predicated region
    $region30: #{fwd.10} parent=1 // pred_check
      _
    $region31: #{fwd.10} parent=1 // pred_check_branch
      %45 = sbr.rel (0) target = $region33
    $region32: #{fwd.10} parent=1 // pred_region
      %46 = dma.done [#allocation5], 16
    $region33: #{fwd.10} parent=1 // pred_fallthru
      _
    %47 = sfence
    %v49 = vld [vmem:[%s2] sm:$0xf]
    %v50 = vunpack.c.l.bf16 %v49
    %v51 = vld [vmem:[%s3] sm:$0xf]
    %v52 = vunpack.c.l.bf16 %v51
    %v53 = vlaneseq
    %v54 = vand.u32 %v53, 127
    %55 = vrot.lane.b32.xlu0 %v50, 1
    %v56 = vpop.permute.xlu0 %55
    %v57 = vadd.s32 %v54, 4294967295
    %vm58 = vcmp.ge.s32.totalorder %v57, 0
    %vm59 = vcmp.lt.s32.totalorder %v57, 16
    %vm60 = vmand %vm58, %vm59
    %v61 = vsel %vm60, %v56, 0.0
    %vm62 = vcmp.ge.s32.totalorder %v54, 0
    %vm63 = vcmp.lt.s32.totalorder %v54, 16
    %vm64 = vmand %vm62, %vm63
    %v65 = vsel %vm64, %v50, 0.0
    %66 = vrot.lane.b32.xlu0 %v50, 127
    %v67 = vpop.permute.xlu0 %66
    %v68 = vadd.s32 %v54, 1
    %vm69 = vcmp.ge.s32.totalorder %v68, 0
    %vm70 = vcmp.lt.s32.totalorder %v68, 16
    %vm71 = vmand %vm69, %vm70
    %v72 = vsel %vm71, %v67, 0.0
    %73 = vrot.lane.b32.xlu0 %v52, 1
    %v74 = vpop.permute.xlu0 %73
    %v75 = vsel %vm60, %v74, 0.0
    %v76 = vsel %vm64, %v52, 0.0
    %77 = vrot.lane.b32.xlu0 %v52, 127
    %v78 = vpop.permute.xlu0 %77
    %v79 = vsel %vm71, %v78, 0.0
    %s80 = sld [smem:[#allocation2]]
    %v81 = vstv %s80
    %v82 = vmul.f32 %v81, %v61
    %v83 = vadd.f32 %v82, 0.0
    %s84 = sld [smem:[#allocation2 + $0x3]]
    %v85 = vstv %s84
    %v86 = vmul.f32 %v85, %v75
    %v87 = vadd.f32 %v83, %v86
    %s88 = sld [smem:[#allocation2 + $0x1]]
    %v89 = vstv %s88
    %v90 = vmul.f32 %v89, %v65
    %v91 = vadd.f32 %v87, %v90
    %s92 = sld [smem:[#allocation2 + $0x4]]
    %v93 = vstv %s92
    %v94 = vmul.f32 %v93, %v76
    %v95 = vadd.f32 %v91, %v94
    %s96 = sld [smem:[#allocation2 + $0x2]]
    %v97 = vstv %s96
    %v98 = vmul.f32 %v97, %v72
    %v99 = vadd.f32 %v95, %v98
    %s100 = sld [smem:[#allocation2 + $0x5]]
    %v101 = vstv %s100
    %v102 = vmul.f32 %v101, %v79
    %v103 = vadd.f32 %v99, %v102
    %s104 = sld [smem:[#allocation4]]
    %v105 = vstv %s104
    %v106 = vadd.f32 %v103, %v105
    %v107 = vmax.f32 %v106, 0.0
    %s108 = sld [smem:[#allocation2 + $0x6]]
    %v109 = vstv %s108
    %v110 = vmul.f32 %v109, %v61
    %v111 = vadd.f32 %v110, 0.0
    %s112 = sld [smem:[#allocation2 + $0x9]]
    %v113 = vstv %s112
    %v114 = vmul.f32 %v113, %v75
    %v115 = vadd.f32 %v111, %v114
    %s116 = sld [smem:[#allocation2 + $0x7]]
    %v117 = vstv %s116
    %v118 = vmul.f32 %v117, %v65
    %v119 = vadd.f32 %v115, %v118
    %s120 = sld [smem:[#allocation2 + $0xa]]
    %v121 = vstv %s120
    %v122 = vmul.f32 %v121, %v76
    %v123 = vadd.f32 %v119, %v122
    %s124 = sld [smem:[#allocation2 + $0x8]]
    %v125 = vstv %s124
    %v126 = vmul.f32 %v125, %v72
    %v127 = vadd.f32 %v123, %v126
    %s128 = sld [smem:[#allocation2 + $0xb]]
    %v129 = vstv %s128
    %v130 = vmul.f32 %v129, %v79
    %v131 = vadd.f32 %v127, %v130
    %s132 = sld [smem:[#allocation4 + $0x1]]
    %v133 = vstv %s132
    %v134 = vadd.f32 %v131, %v133
    %v135 = vmax.f32 %v134, 0.0
    %s136 = sld [smem:[#allocation2 + $0xc]]
    %v137 = vstv %s136
    %v138 = vmul.f32 %v137, %v61
    %v139 = vadd.f32 %v138, 0.0
    %s140 = sld [smem:[#allocation2 + $0xf]]
    %v141 = vstv %s140
    %v142 = vmul.f32 %v141, %v75
    %v143 = vadd.f32 %v139, %v142
    %s144 = sld [smem:[#allocation2 + $0xd]]
    %v145 = vstv %s144
    %v146 = vmul.f32 %v145, %v65
    %v147 = vadd.f32 %v143, %v146
    %s148 = sld [smem:[#allocation2 + $0x10]]
    %v149 = vstv %s148
    %v150 = vmul.f32 %v149, %v76
    %v151 = vadd.f32 %v147, %v150
    %s152 = sld [smem:[#allocation2 + $0xe]]
    %v153 = vstv %s152
    %v154 = vmul.f32 %v153, %v72
    %v155 = vadd.f32 %v151, %v154
    %s156 = sld [smem:[#allocation2 + $0x11]]
    %v157 = vstv %s156
    %v158 = vmul.f32 %v157, %v79
    %v159 = vadd.f32 %v155, %v158
    %s160 = sld [smem:[#allocation4 + $0x2]]
    %v161 = vstv %s160
    %v162 = vadd.f32 %v159, %v161
    %v163 = vmax.f32 %v162, 0.0
    %s164 = sld [smem:[#allocation2 + $0x12]]
    %v165 = vstv %s164
    %v166 = vmul.f32 %v165, %v61
    %v167 = vadd.f32 %v166, 0.0
    %s168 = sld [smem:[#allocation2 + $0x15]]
    %v169 = vstv %s168
    %v170 = vmul.f32 %v169, %v75
    %v171 = vadd.f32 %v167, %v170
    %s172 = sld [smem:[#allocation2 + $0x13]]
    %v173 = vstv %s172
    %v174 = vmul.f32 %v173, %v65
    %v175 = vadd.f32 %v171, %v174
    %s176 = sld [smem:[#allocation2 + $0x16]]
    %v177 = vstv %s176
    %v178 = vmul.f32 %v177, %v76
    %v179 = vadd.f32 %v175, %v178
    %s180 = sld [smem:[#allocation2 + $0x14]]
    %v181 = vstv %s180
    %v182 = vmul.f32 %v181, %v72
    %v183 = vadd.f32 %v179, %v182
    %s184 = sld [smem:[#allocation2 + $0x17]]
    %v185 = vstv %s184
    %v186 = vmul.f32 %v185, %v79
    %v187 = vadd.f32 %v183, %v186
    %s188 = sld [smem:[#allocation4 + $0x3]]
    %v189 = vstv %s188
    %v190 = vadd.f32 %v187, %v189
    %v191 = vmax.f32 %v190, 0.0
    %v192 = vpack.c.bf16 %v107, %v107
    %v193 = vpack.c.bf16 %v135, %v135
    %v194 = vpack.c.bf16 %v163, %v163
    %v195 = vpack.c.bf16 %v191, %v191
    %v196 = vld [vmem:[%s4] sm:$0xf]
    %v197 = vld [vmem:[%s4 + $0x4] sm:$0xf]
    %v198 = vld [vmem:[%s4 + $0x8] sm:$0xf]
    %v199 = vld [vmem:[%s4 + $0xc] sm:$0xf]
    %v200 = vld [vmem:[%s4 + $0x10] sm:$0xf]
    %v201 = vld [vmem:[%s4 + $0x14] sm:$0xf]
    %v202 = vld [vmem:[%s4 + $0x18] sm:$0xf]
    %v203 = vld [vmem:[%s4 + $0x1c] sm:$0xf]
    %v204 = vld [vmem:[%s4 + $0x20] sm:$0xf]
    %v205 = vld [vmem:[%s4 + $0x24] sm:$0xf]
    %v206 = vld [vmem:[%s4 + $0x28] sm:$0xf]
    %v207 = vld [vmem:[%s4 + $0x2c] sm:$0xf]
    %v208 = vld [vmem:[%s4 + $0x30] sm:$0xf]
    %v209 = vld [vmem:[%s4 + $0x34] sm:$0xf]
    %v210 = vld [vmem:[%s4 + $0x38] sm:$0xf]
    %v211 = vld [vmem:[%s4 + $0x3c] sm:$0xf]
    %v212 = vld [vmem:[%s4 + $0x40] sm:$0xf]
    %v213 = vld [vmem:[%s4 + $0x44] sm:$0xf]
    %v214 = vld [vmem:[%s4 + $0x48] sm:$0xf]
    %v215 = vld [vmem:[%s4 + $0x4c] sm:$0xf]
    %v216 = vld [vmem:[%s4 + $0x50] sm:$0xf]
    %v217 = vld [vmem:[%s4 + $0x54] sm:$0xf]
    %v218 = vld [vmem:[%s4 + $0x58] sm:$0xf]
    %v219 = vld [vmem:[%s4 + $0x5c] sm:$0xf]
    %v220 = vld [vmem:[%s4 + $0x60] sm:$0xf]
    %v221 = vld [vmem:[%s4 + $0x64] sm:$0xf]
    %v222 = vld [vmem:[%s4 + $0x68] sm:$0xf]
    %v223 = vld [vmem:[%s4 + $0x6c] sm:$0xf]
    %v224 = vld [vmem:[%s4 + $0x70] sm:$0xf]
    %v225 = vld [vmem:[%s4 + $0x74] sm:$0xf]
    %v226 = vld [vmem:[%s4 + $0x78] sm:$0xf]
    %v227 = vld [vmem:[%s4 + $0x7c] sm:$0xf]
    %v228 = vld [vmem:[%s4 + $0x80] sm:$0xf]
    %v229 = vld [vmem:[%s4 + $0x84] sm:$0xf]
    %v230 = vld [vmem:[%s4 + $0x88] sm:$0xf]
    %v231 = vld [vmem:[%s4 + $0x8c] sm:$0xf]
    %v232 = vld [vmem:[%s4 + $0x90] sm:$0xf]
    %v233 = vld [vmem:[%s4 + $0x94] sm:$0xf]
    %v234 = vld [vmem:[%s4 + $0x98] sm:$0xf]
    %v235 = vld [vmem:[%s4 + $0x9c] sm:$0xf]
    %v236 = vld [vmem:[%s4 + $0xa0] sm:$0xf]
    %v237 = vld [vmem:[%s4 + $0xa4] sm:$0xf]
    %v238 = vld [vmem:[%s4 + $0xa8] sm:$0xf]
    %v239 = vld [vmem:[%s4 + $0xac] sm:$0xf]
    %v240 = vld [vmem:[%s4 + $0xb0] sm:$0xf]
    %v241 = vld [vmem:[%s4 + $0xb4] sm:$0xf]
    %v242 = vld [vmem:[%s4 + $0xb8] sm:$0xf]
    %v243 = vld [vmem:[%s4 + $0xbc] sm:$0xf]
    %v244 = vld [vmem:[%s4 + $0xc0] sm:$0xf]
    %v245 = vld [vmem:[%s4 + $0xc4] sm:$0xf]
    %v246 = vld [vmem:[%s4 + $0xc8] sm:$0xf]
    %v247 = vld [vmem:[%s4 + $0xcc] sm:$0xf]
    %v248 = vld [vmem:[%s4 + $0xd0] sm:$0xf]
    %v249 = vld [vmem:[%s4 + $0xd4] sm:$0xf]
    %v250 = vld [vmem:[%s4 + $0xd8] sm:$0xf]
    %v251 = vld [vmem:[%s4 + $0xdc] sm:$0xf]
    %v252 = vld [vmem:[%s4 + $0xe0] sm:$0xf]
    %v253 = vld [vmem:[%s4 + $0xe4] sm:$0xf]
    %v254 = vld [vmem:[%s4 + $0xe8] sm:$0xf]
    %v255 = vld [vmem:[%s4 + $0xec] sm:$0xf]
    %v256 = vld [vmem:[%s4 + $0xf0] sm:$0xf]
    %v257 = vld [vmem:[%s4 + $0xf4] sm:$0xf]
    %v258 = vld [vmem:[%s4 + $0xf8] sm:$0xf]
    %v259 = vld [vmem:[%s4 + $0xfc] sm:$0xf]
    %v260 = vld [vmem:[%s5] sm:$0x1]
    %v262 = vlaneseq
    %v263 = vshrl.u32 %v262, 7
    %v264 = vsub.s32 0, %v263
    %v265 = vrot.slane %v260, %v264
    %v331 = vunpack.c.l.b16 %v196
    %v332 = vunpack.c.l.b16 %v197
    %v333 = vunpack.c.l.b16 %v198
    %v334 = vunpack.c.l.b16 %v199
    %v335 = vunpack.c.l.b16 %v200
    %v336 = vunpack.c.l.b16 %v201
    %v337 = vunpack.c.l.b16 %v202
    %v338 = vunpack.c.l.b16 %v203
    %v339 = vunpack.c.l.b16 %v204
    %v340 = vunpack.c.l.b16 %v205
    %v341 = vunpack.c.l.b16 %v206
    %v342 = vunpack.c.l.b16 %v207
    %v343 = vunpack.c.l.b16 %v208
    %v344 = vunpack.c.l.b16 %v209
    %v345 = vunpack.c.l.b16 %v210
    %v346 = vunpack.c.l.b16 %v211
    %v347 = vunpack.c.l.b16 %v212
    %v348 = vunpack.c.l.b16 %v213
    %v349 = vunpack.c.l.b16 %v214
    %v350 = vunpack.c.l.b16 %v215
    %v351 = vunpack.c.l.b16 %v216
    %v352 = vunpack.c.l.b16 %v217
    %v353 = vunpack.c.l.b16 %v218
    %v354 = vunpack.c.l.b16 %v219
    %v355 = vunpack.c.l.b16 %v220
    %v356 = vunpack.c.l.b16 %v221
    %v357 = vunpack.c.l.b16 %v222
    %v358 = vunpack.c.l.b16 %v223
    %v359 = vunpack.c.l.b16 %v224
    %v360 = vunpack.c.l.b16 %v225
    %v361 = vunpack.c.l.b16 %v226
    %v362 = vunpack.c.l.b16 %v227
    %v363 = vunpack.c.l.b16 %v228
    %v364 = vunpack.c.l.b16 %v229
    %v365 = vunpack.c.l.b16 %v230
    %v366 = vunpack.c.l.b16 %v231
    %v367 = vunpack.c.l.b16 %v232
    %v368 = vunpack.c.l.b16 %v233
    %v369 = vunpack.c.l.b16 %v234
    %v370 = vunpack.c.l.b16 %v235
    %v371 = vunpack.c.l.b16 %v236
    %v372 = vunpack.c.l.b16 %v237
    %v373 = vunpack.c.l.b16 %v238
    %v374 = vunpack.c.l.b16 %v239
    %v375 = vunpack.c.l.b16 %v240
    %v376 = vunpack.c.l.b16 %v241
    %v377 = vunpack.c.l.b16 %v242
    %v378 = vunpack.c.l.b16 %v243
    %v379 = vunpack.c.l.b16 %v244
    %v380 = vunpack.c.l.b16 %v245
    %v381 = vunpack.c.l.b16 %v246
    %v382 = vunpack.c.l.b16 %v247
    %v383 = vunpack.c.l.b16 %v248
    %v384 = vunpack.c.l.b16 %v249
    %v385 = vunpack.c.l.b16 %v250
    %v386 = vunpack.c.l.b16 %v251
    %v387 = vunpack.c.l.b16 %v252
    %v388 = vunpack.c.l.b16 %v253
    %v389 = vunpack.c.l.b16 %v254
    %v390 = vunpack.c.l.b16 %v255
    %v391 = vunpack.c.l.b16 %v256
    %v392 = vunpack.c.l.b16 %v257
    %v393 = vunpack.c.l.b16 %v258
    %v394 = vunpack.c.l.b16 %v259
    %v395 = vpack.c.b16 %v332, %v331
    %v396 = vpack.c.b16 %v334, %v333
    %v397 = vpack.c.b16 %v336, %v335
    %v398 = vpack.c.b16 %v338, %v337
    %v399 = vpack.c.b16 %v340, %v339
    %v400 = vpack.c.b16 %v342, %v341
    %v401 = vpack.c.b16 %v344, %v343
    %v402 = vpack.c.b16 %v346, %v345
    %v403 = vpack.c.b16 %v348, %v347
    %v404 = vpack.c.b16 %v350, %v349
    %v405 = vpack.c.b16 %v352, %v351
    %v406 = vpack.c.b16 %v354, %v353
    %v407 = vpack.c.b16 %v356, %v355
    %v408 = vpack.c.b16 %v358, %v357
    %v409 = vpack.c.b16 %v360, %v359
    %v410 = vpack.c.b16 %v362, %v361
    %v411 = vpack.c.b16 %v364, %v363
    %v412 = vpack.c.b16 %v366, %v365
    %v413 = vpack.c.b16 %v368, %v367
    %v414 = vpack.c.b16 %v370, %v369
    %v415 = vpack.c.b16 %v372, %v371
    %v416 = vpack.c.b16 %v374, %v373
    %v417 = vpack.c.b16 %v376, %v375
    %v418 = vpack.c.b16 %v378, %v377
    %v419 = vpack.c.b16 %v380, %v379
    %v420 = vpack.c.b16 %v382, %v381
    %v421 = vpack.c.b16 %v384, %v383
    %v422 = vpack.c.b16 %v386, %v385
    %v423 = vpack.c.b16 %v388, %v387
    %v424 = vpack.c.b16 %v390, %v389
    %v425 = vpack.c.b16 %v392, %v391
    %v426 = vpack.c.b16 %v394, %v393
    %459 = vmatprep.subr.bf16.mxu0 0
    %460 = vmatpush1.bf16.msra.mxu0 %v402
    %461 = vmatprep.subr.bf16.mxu0 0
    %462 = vmatpush1.bf16.msra.mxu0 %v401
    %463 = vmatprep.subr.bf16.mxu0 0
    %464 = vmatpush1.bf16.msra.mxu0 %v400
    %465 = vmatprep.subr.bf16.mxu0 0
    %466 = vmatpush1.bf16.msra.mxu0 %v399
    %467 = vmatprep.subr.bf16.mxu0 0
    %468 = vmatpush1.bf16.msra.mxu0 %v398
    %469 = vmatprep.subr.bf16.mxu0 0
    %470 = vmatpush1.bf16.msra.mxu0 %v397
    %471 = vmatprep.subr.bf16.mxu0 0
    %472 = vmatpush1.bf16.msra.mxu0 %v396
    %473 = vmatprep.subr.bf16.mxu0 0
    %474 = vmatpush1.bf16.msra.mxu0 %v395
    %475 = vmatprep.subr.bf16.mxu0 0
    %476 = vmatpush2.bf16.msra.mxu0 %v410
    %477 = vmatprep.subr.bf16.mxu0 0
    %478 = vmatpush2.bf16.msra.mxu0 %v409
    %479 = vmatprep.subr.bf16.mxu0 0
    %480 = vmatpush2.bf16.msra.mxu0 %v408
    %481 = vmatprep.subr.bf16.mxu0 0
    %482 = vmatpush2.bf16.msra.mxu0 %v407
    %483 = vmatprep.subr.bf16.mxu0 0
    %484 = vmatpush2.bf16.msra.mxu0 %v406
    %485 = vmatprep.subr.bf16.mxu0 0
    %486 = vmatpush2.bf16.msra.mxu0 %v405
    %487 = vmatprep.subr.bf16.mxu0 0
    %488 = vmatpush2.bf16.msra.mxu0 %v404
    %489 = vmatprep.subr.bf16.mxu0 0
    %490 = vmatpush2.bf16.msra.mxu0 %v403
    %491 = vmatprep.mubr.bf16.mxu0 %v193
    %492 = vmatmul.mubr.bf16.gmra.mxu0 %v192
    %v493 = vpop.f32.mrf.mxu0
    %v494 = vadd.f32 %v265, %v493
    %v495 = vpop.f32.mrf.mxu0
    %v496 = vpop.f32.mrf.mxu0
    %v497 = vpop.f32.mrf.mxu0
    %498 = vdwg.mxu0
    %499 = vmatprep.subr.bf16.mxu0 0
    %500 = vmatpush1.bf16.msra.mxu0 %v418
    %501 = vmatprep.subr.bf16.mxu0 0
    %502 = vmatpush1.bf16.msra.mxu0 %v417
    %503 = vmatprep.subr.bf16.mxu0 0
    %504 = vmatpush1.bf16.msra.mxu0 %v416
    %505 = vmatprep.subr.bf16.mxu0 0
    %506 = vmatpush1.bf16.msra.mxu0 %v415
    %507 = vmatprep.subr.bf16.mxu0 0
    %508 = vmatpush1.bf16.msra.mxu0 %v414
    %509 = vmatprep.subr.bf16.mxu0 0
    %510 = vmatpush1.bf16.msra.mxu0 %v413
    %511 = vmatprep.subr.bf16.mxu0 0
    %512 = vmatpush1.bf16.msra.mxu0 %v412
    %513 = vmatprep.subr.bf16.mxu0 0
    %514 = vmatpush1.bf16.msra.mxu0 %v411
    %515 = vmatprep.subr.bf16.mxu0 0
    %516 = vmatpush2.bf16.msra.mxu0 %v426
    %517 = vmatprep.subr.bf16.mxu0 0
    %518 = vmatpush2.bf16.msra.mxu0 %v425
    %519 = vmatprep.subr.bf16.mxu0 0
    %520 = vmatpush2.bf16.msra.mxu0 %v424
    %521 = vmatprep.subr.bf16.mxu0 0
    %522 = vmatpush2.bf16.msra.mxu0 %v423
    %523 = vmatprep.subr.bf16.mxu0 0
    %524 = vmatpush2.bf16.msra.mxu0 %v422
    %525 = vmatprep.subr.bf16.mxu0 0
    %526 = vmatpush2.bf16.msra.mxu0 %v421
    %527 = vmatprep.subr.bf16.mxu0 0
    %528 = vmatpush2.bf16.msra.mxu0 %v420
    %529 = vmatprep.subr.bf16.mxu0 0
    %530 = vmatpush2.bf16.msra.mxu0 %v419
    %531 = vmatprep.mubr.bf16.mxu0 %v195
    %532 = vmatmul.mubr.bf16.gmra.mxu0 %v194
    %v533 = vpop.f32.mrf.mxu0
    %v534 = vadd.f32 %v494, %v533
    %v535 = vpop.f32.mrf.mxu0
    %v536 = vpop.f32.mrf.mxu0
    %v537 = vpop.f32.mrf.mxu0
    %538 = vdwg.mxu0
    %v539 = vmax.f32 %v534, 0.0
    %v540 = vpack.c.bf16 %v539, %v539
    %541 = vst [vmem:[%s6] sm:$0xf] %v540
    // Predicated region
    $region34: #{fwd.10} parent=1 // pred_check
      _
    $region35: #{fwd.10} parent=1 // pred_check_branch
      %543 = sbr.rel (0) target = $region37
    $region36: #{fwd.10} parent=1 // pred_region
      _
    $region37: #{fwd.10} parent=1 // pred_fallthru
      _
    // Predicated region
    $region38: #{fwd.10} parent=1 // pred_check
      _
    $region39: #{fwd.10} parent=1 // pred_check_branch
      %545 = sbr.rel (0) target = $region41
    $region40: #{fwd.10} parent=1 // pred_region
      _
    $region41: #{fwd.10} parent=1 // pred_fallthru
      _
    %546 = vsyncpa [#allocation3], 1
    %547 = vsyncpa [#allocation5], 1

// kernel: fwd.7
$region0: #{fwd.7}
  #allocation0 [shape = 'u32[]', space=smem, size = 0x4, offset = 0x4, fixed_abs, tag = 'smem constant byte address 0x4 - core index']
  #allocation1 [shape = 'u32[144,128]{1,0:T(1,128)}', space=vmem, size = 0x12000, scoped, tag = 'internal scratch']
  #allocation2 [shape = 'f32[256,128]{1,0:T(8,128)}', space=vmem, size = 0x20000, scoped, tag = 'scratch operand']
  %s0 = inlined_call_operand.vmem [shape: bf16[512,128], index: 0, kind: input, shape index: {}]
  %s1 = inlined_call_operand.vmem [shape: bf16[512,512], index: 1, kind: input, shape index: {}]
  %s2 = inlined_call_operand.vmem [shape: f32[1,128], index: 2, kind: input, shape index: {}]
  %s3 = inlined_call_operand.vmem [shape: bf16[512,128], index: 3, kind: output, shape index: {}]
  %s4 = sld [smem:[#allocation0]]
  $region53: #{fwd.7} parent=0
    _
  %s6 = ssub.s32 1, %s4
  %s7 = scalar_select 0, %s6, %s4
  loop: start=0, step=1, limit=4
  $region2: #{fwd.7} parent=0 // loop_pre_header
    _
  $region3: #{fwd.7} parent=0 // loop_header
    %s9 = sphi 0, %s13
    %p10 = scmp.ge.s32.totalorder %s9, 4
    %s16 = sphi 0, %s28
    %s17 = sphi 0, %s24
    %s18 = sphi 0, %s16
    %s19 = sphi 0, %s17
    %s20 = sphi 0, %s18
    %s21 = sphi 0, %s19
    %s31 = sphi 0, %s33
    %s34 = sphi 0, %s31
    %s35 = sphi 0, %s34
    %s51 = sphi 0, %s35
    %s59 = sphi 0, %s61
    %s62 = sphi 0, %s59
    %s63 = sphi 0, %s62
    %s79 = sphi 0, %s63
    %s83 = sphi 0, %s83
    %s85 = sphi 0, %s83
    %s86 = sphi 0, %s85
    %s100 = sphi 0, %s86
    %s106 = sphi 0, %s108
    %s109 = sphi 0, %s106
    %s110 = sphi 0, %s109
    %s126 = sphi 0, %s110
  $region4: #{fwd.7} parent=0 // loop_header_branch
    %12 = sbr.rel (%p10) target = $region8
  $region5: #{fwd.7} parent=0 // loop_body
    %s14 = ssub.s32 %s9, 1
    %s15 = ssub.s32 %s9, 2
    %s22 = sadd.s32 1, %s17
    %p23 = scmp.ge.s32.totalorder %s22, 1
    %s24 = scalar_select %p23, 0, %s22
    %s25 = sadd.s32 1, %s16
    %s26 = scalar_select %p23, %s25, %s16
    %p27 = scmp.ge.s32.totalorder %s26, 2
    %s28 = scalar_select %p27, 0, %s26
    %s29 = ssub.s32 %s17, %s24
    %p30 = scmp.eq.s32.totalorder %s29, 0
    %s32 = sadd.s32 %s31, 1
    %s33 = scalar_select %p30, %s31, %s32
    %p36 = pneg %p30
    %p37 = scmp.eq.s32.totalorder %s9, 1
    %p38 = por %p36, %p37
    %p39 = scmp.ne.s32.totalorder %s31, %s34
    %p40 = scmp.eq.s32.totalorder %s9, 0
    %p41 = por %p39, %p40
    %p42 = scmp.ne.s32.totalorder %s31, %s34
    %p43 = scmp.eq.s32.totalorder %s14, 1
    %p44 = por %p42, %p43
    %p45 = scmp.ne.s32.totalorder %s34, %s35
    %p46 = scmp.eq.s32.totalorder %s14, 0
    %p47 = por %p45, %p46
    %p48 = scmp.ne.s32.totalorder %s34, %s35
    %p49 = scmp.eq.s32.totalorder %s15, 1
    %p50 = por %p48, %p49
    %p52 = scmp.ne.s32.totalorder %s35, %s51
    %p53 = scmp.eq.s32.totalorder %s15, 0
    %p54 = por %p52, %p53
    %s55 = ssub.s32 %s16, %s28
    %s56 = ssub.s32 %s17, %s24
    %s57 = sor.u32 %s55, %s56
    %p58 = scmp.eq.s32.totalorder %s57, 0
    %s60 = sadd.s32 %s59, 1
    %s61 = scalar_select %p58, %s59, %s60
    %p64 = pneg %p58
    %p65 = scmp.eq.s32.totalorder %s9, 1
    %p66 = por %p64, %p65
    %p67 = scmp.ne.s32.totalorder %s59, %s62
    %p68 = scmp.eq.s32.totalorder %s9, 0
    %p69 = por %p67, %p68
    %p70 = scmp.ne.s32.totalorder %s59, %s62
    %p71 = scmp.eq.s32.totalorder %s14, 1
    %p72 = por %p70, %p71
    %p73 = scmp.ne.s32.totalorder %s62, %s63
    %p74 = scmp.eq.s32.totalorder %s14, 0
    %p75 = por %p73, %p74
    %p76 = scmp.ne.s32.totalorder %s62, %s63
    %p77 = scmp.eq.s32.totalorder %s15, 1
    %p78 = por %p76, %p77
    %p80 = scmp.ne.s32.totalorder %s63, %s79
    %p81 = scmp.eq.s32.totalorder %s15, 0
    %p82 = por %p80, %p81
    %s84 = sadd.s32 %s83, 1
    %p87 = scmp.eq.s32.totalorder %s9, 1
    %p88 = scmp.ne.s32.totalorder %s83, %s85
    %p89 = scmp.eq.s32.totalorder %s9, 0
    %p90 = por %p88, %p89
    %p91 = scmp.ne.s32.totalorder %s83, %s85
    %p92 = scmp.eq.s32.totalorder %s14, 1
    %p93 = por %p91, %p92
    %p94 = scmp.ne.s32.totalorder %s85, %s86
    %p95 = scmp.eq.s32.totalorder %s14, 0
    %p96 = por %p94, %p95
    %p97 = scmp.ne.s32.totalorder %s85, %s86
    %p98 = scmp.eq.s32.totalorder %s15, 1
    %p99 = por %p97, %p98
    %p101 = scmp.ne.s32.totalorder %s86, %s100
    %p102 = scmp.eq.s32.totalorder %s15, 0
    %p103 = por %p101, %p102
    %s104 = ssub.s32 %s16, %s28
    %p105 = scmp.eq.s32.totalorder %s104, 0
    %s107 = sadd.s32 %s106, 1
    %s108 = scalar_select %p105, %s106, %s107
    %p111 = pneg %p105
    %p112 = scmp.eq.s32.totalorder %s9, 1
    %p113 = por %p111, %p112
    %p114 = scmp.ne.s32.totalorder %s106, %s109
    %p115 = scmp.eq.s32.totalorder %s9, 0
    %p116 = por %p114, %p115
    %p117 = scmp.ne.s32.totalorder %s106, %s109
    %p118 = scmp.eq.s32.totalorder %s14, 1
    %p119 = por %p117, %p118
    %p120 = scmp.ne.s32.totalorder %s109, %s110
    %p121 = scmp.eq.s32.totalorder %s14, 0
    %p122 = por %p120, %p121
    %p123 = scmp.ne.s32.totalorder %s109, %s110
    %p124 = scmp.eq.s32.totalorder %s15, 1
    %p125 = por %p123, %p124
    %p127 = scmp.ne.s32.totalorder %s110, %s126
    %p128 = scmp.eq.s32.totalorder %s15, 0
    %p129 = por %p127, %p128
    %p130 = scmp.le.s32.totalorder 1, %s9
    %p131 = scmp.lt.s32.totalorder %s9, 3
    %p132 = pnand %p130, %p131
    %p133 = pneg %p132
    // Predicated region
    $region9: #{fwd.7} parent=5 // pred_check
      _
    $region10: #{fwd.7} parent=5 // pred_check_branch
      %135 = sbr.rel (%p132) target = $region12
    $region11: #{fwd.7} parent=5 // pred_region
      %s136 = ssub.s32 %s9, 1
      // Predicated region
      $region13: #{fwd.7} parent=11 // pred_check
        %p137 = pneg %p47
      $region14: #{fwd.7} parent=11 // pred_check_branch
        %139 = sbr.rel (%p137) target = $region16
      $region15: #{fwd.7} parent=11 // pred_region
        %s140 = smul.u32 64, %s19
        %p141 = scmp.lt.s32.totalorder %s140, 63
        %s142 = scalar_select %p141, %s140, 63
        %s143 = smul.addr %s142, 4
        %s144 = scalar_lea.vmem %s0, %s143
        %s145 = smul.u32 64, %s19
      $region16: #{fwd.7} parent=11 // pred_fallthru
        _
      // Predicated region
      $region17: #{fwd.7} parent=11 // pred_check
        %p146 = pneg %p96
      $region18: #{fwd.7} parent=11 // pred_check_branch
        %148 = sbr.rel (%p146) target = $region20
      $region19: #{fwd.7} parent=11 // pred_region
        _
      $region20: #{fwd.7} parent=11 // pred_fallthru
        _
    $region12: #{fwd.7} parent=5 // pred_fallthru
      _
    %p149 = scmp.lt.s32.totalorder %s9, 2
    // Predicated region
    $region21: #{fwd.7} parent=5 // pred_check
      %p150 = pneg %p149
    $region22: #{fwd.7} parent=5 // pred_check_branch
      %152 = sbr.rel (%p150) target = $region24
    $region23: #{fwd.7} parent=5 // pred_region
      // Predicated region
      $region25: #{fwd.7} parent=23 // pred_check
        %p153 = pneg %p69
      $region26: #{fwd.7} parent=23 // pred_check_branch
        %155 = sbr.rel (%p153) target = $region28
      $region27: #{fwd.7} parent=23 // pred_region
        %s156 = smul.u32 32, %s16
        %s157 = smul.u32 4, %s17
        %p158 = scmp.lt.s32.totalorder %s156, 63
        %s159 = scalar_select %p158, %s156, 63
        %p160 = scmp.lt.s32.totalorder %s157, 3
        %s161 = scalar_select %p160, %s157, 3
        %s162 = smul.addr %s159, 4
        %s163 = sadd.s32 %s161, %s162
        %s164 = smul.addr %s163, 4
        %s165 = scalar_lea.vmem %s1, %s164
        %s166 = smul.u32 32, %s16
        %s167 = smul.u32 4, %s17
      $region28: #{fwd.7} parent=23 // pred_fallthru
        _
    $region24: #{fwd.7} parent=5 // pred_fallthru
      _
    %p168 = scmp.le.s32.totalorder 1, %s9
    %p169 = scmp.lt.s32.totalorder %s9, 3
    %p170 = pnand %p168, %p169
    %p171 = pneg %p170
    // Predicated region
    $region29: #{fwd.7} parent=5 // pred_check
      _
    $region30: #{fwd.7} parent=5 // pred_check_branch
      %173 = sbr.rel (%p170) target = $region32
    $region31: #{fwd.7} parent=5 // pred_region
      %s174 = ssub.s32 %s9, 1
      %s175 = smul.u32 64, %s19
      %p176 = scmp.lt.s32.totalorder %s175, 63
      %s177 = scalar_select %p176, %s175, 63
      %s178 = smul.addr %s177, 4
      %s179 = scalar_lea.vmem %s0, %s178
      %p180 = pneg %p47
      %p181 = pneg %p44
      %s182 = smul.u32 32, %s18
      %s183 = smul.u32 4, %s19
      %p184 = scmp.lt.s32.totalorder %s182, 63
      %s185 = scalar_select %p184, %s182, 63
      %p186 = scmp.lt.s32.totalorder %s183, 3
      %s187 = scalar_select %p186, %s183, 3
      %s188 = smul.addr %s185, 4
      %s189 = sadd.s32 %s187, %s188
      %s190 = smul.addr %s189, 4
      %s191 = scalar_lea.vmem %s1, %s190
      %p192 = pneg %p75
      %p193 = pneg %p72
      %p194 = pneg %p96
      %p195 = pneg %p93
      %p196 = pneg %p122
      %p197 = pneg %p119
      %s198 = smul.u32 32, %s18
      %p199 = scmp.lt.s32.totalorder %s198, 63
      %s200 = scalar_select %p199, %s198, 63
      %s201 = smul.addr %s200, 4
      %s202 = scalar_lea.vmem %s3, %s201
      %s203 = smul.u32 64, %s19
      %p204 = scmp.lt.s32.totalorder %s203, 63
      %s205 = scalar_select %p204, %s203, 63
      %s206 = smul.addr %s205, 4
      %s207 = scalar_lea.vmem %s0, %s206
      %s208 = smul.u32 64, %s19
      %s209 = smul.u32 32, %s18
      %s210 = smul.u32 4, %s19
      %p211 = scmp.lt.s32.totalorder %s209, 63
      %s212 = scalar_select %p211, %s209, 63
      %p213 = scmp.lt.s32.totalorder %s210, 3
      %s214 = scalar_select %p213, %s210, 3
      %s215 = smul.addr %s212, 4
      %s216 = sadd.s32 %s214, %s215
      %s217 = smul.addr %s216, 4
      %s218 = scalar_lea.vmem %s1, %s217
      %s219 = smul.u32 32, %s18
      %s220 = smul.u32 4, %s19
      %s221 = smul.u32 32, %s18
      %p222 = scmp.lt.s32.totalorder %s221, 63
      %s223 = scalar_select %p222, %s221, 63
      %s224 = smul.addr %s223, 4
      %s225 = scalar_lea.vmem %s3, %s224
      %s226 = smul.u32 32, %s18
      %p228 = scmp.eq.s32.totalorder %s19, 0
      // Predicated region
      $region33: #{fwd.7} parent=31 // pred_check
        %p229 = pneg %p228
      $region34: #{fwd.7} parent=31 // pred_check_branch
        %231 = sbr.rel (%p229) target = $region36
      $region35: #{fwd.7} parent=31 // pred_region
        %232 = vst [vmem:[#allocation2] sm:$0xff] 0.0
        %233 = vst [vmem:[#allocation2 + $0x8] sm:$0xff] 0.0
        %234 = vst [vmem:[#allocation2 + $0x10] sm:$0xff] 0.0
        %235 = vst [vmem:[#allocation2 + $0x18] sm:$0xff] 0.0
        %236 = vst [vmem:[#allocation2 + $0x20] sm:$0xff] 0.0
        %237 = vst [vmem:[#allocation2 + $0x28] sm:$0xff] 0.0
        %238 = vst [vmem:[#allocation2 + $0x30] sm:$0xff] 0.0
        %239 = vst [vmem:[#allocation2 + $0x38] sm:$0xff] 0.0
        %240 = vst [vmem:[#allocation2 + $0x40] sm:$0xff] 0.0
        %241 = vst [vmem:[#allocation2 + $0x48] sm:$0xff] 0.0
        %242 = vst [vmem:[#allocation2 + $0x50] sm:$0xff] 0.0
        %243 = vst [vmem:[#allocation2 + $0x58] sm:$0xff] 0.0
        %244 = vst [vmem:[#allocation2 + $0x60] sm:$0xff] 0.0
        %245 = vst [vmem:[#allocation2 + $0x68] sm:$0xff] 0.0
        %246 = vst [vmem:[#allocation2 + $0x70] sm:$0xff] 0.0
        %247 = vst [vmem:[#allocation2 + $0x78] sm:$0xff] 0.0
        %248 = vst [vmem:[#allocation2 + $0x80] sm:$0xff] 0.0
        %249 = vst [vmem:[#allocation2 + $0x88] sm:$0xff] 0.0
        %250 = vst [vmem:[#allocation2 + $0x90] sm:$0xff] 0.0
        %251 = vst [vmem:[#allocation2 + $0x98] sm:$0xff] 0.0
        %252 = vst [vmem:[#allocation2 + $0xa0] sm:$0xff] 0.0
        %253 = vst [vmem:[#allocation2 + $0xa8] sm:$0xff] 0.0
        %254 = vst [vmem:[#allocation2 + $0xb0] sm:$0xff] 0.0
        %255 = vst [vmem:[#allocation2 + $0xb8] sm:$0xff] 0.0
        %256 = vst [vmem:[#allocation2 + $0xc0] sm:$0xff] 0.0
        %257 = vst [vmem:[#allocation2 + $0xc8] sm:$0xff] 0.0
        %258 = vst [vmem:[#allocation2 + $0xd0] sm:$0xff] 0.0
        %259 = vst [vmem:[#allocation2 + $0xd8] sm:$0xff] 0.0
        %260 = vst [vmem:[#allocation2 + $0xe0] sm:$0xff] 0.0
        %261 = vst [vmem:[#allocation2 + $0xe8] sm:$0xff] 0.0
        %262 = vst [vmem:[#allocation2 + $0xf0] sm:$0xff] 0.0
        %263 = vst [vmem:[#allocation2 + $0xf8] sm:$0xff] 0.0
      $region36: #{fwd.7} parent=31 // pred_fallthru
        _
      %v264 = vld [vmem:[#allocation2] sm:$0xff]
      %v265 = vld [vmem:[#allocation2 + $0x8] sm:$0xff]
      %v266 = vld [vmem:[#allocation2 + $0x10] sm:$0xff]
      %v267 = vld [vmem:[#allocation2 + $0x18] sm:$0xff]
      %v268 = vld [vmem:[#allocation2 + $0x20] sm:$0xff]
      %v269 = vld [vmem:[#allocation2 + $0x28] sm:$0xff]
      %v270 = vld [vmem:[#allocation2 + $0x30] sm:$0xff]
      %v271 = vld [vmem:[#allocation2 + $0x38] sm:$0xff]
      %v272 = vld [vmem:[#allocation2 + $0x40] sm:$0xff]
      %v273 = vld [vmem:[#allocation2 + $0x48] sm:$0xff]
      %v274 = vld [vmem:[#allocation2 + $0x50] sm:$0xff]
      %v275 = vld [vmem:[#allocation2 + $0x58] sm:$0xff]
      %v276 = vld [vmem:[#allocation2 + $0x60] sm:$0xff]
      %v277 = vld [vmem:[#allocation2 + $0x68] sm:$0xff]
      %v278 = vld [vmem:[#allocation2 + $0x70] sm:$0xff]
      %v279 = vld [vmem:[#allocation2 + $0x78] sm:$0xff]
      %v280 = vld [vmem:[#allocation2 + $0x80] sm:$0xff]
      %v281 = vld [vmem:[#allocation2 + $0x88] sm:$0xff]
      %v282 = vld [vmem:[#allocation2 + $0x90] sm:$0xff]
      %v283 = vld [vmem:[#allocation2 + $0x98] sm:$0xff]
      %v284 = vld [vmem:[#allocation2 + $0xa0] sm:$0xff]
      %v285 = vld [vmem:[#allocation2 + $0xa8] sm:$0xff]
      %v286 = vld [vmem:[#allocation2 + $0xb0] sm:$0xff]
      %v287 = vld [vmem:[#allocation2 + $0xb8] sm:$0xff]
      %v288 = vld [vmem:[#allocation2 + $0xc0] sm:$0xff]
      %v289 = vld [vmem:[#allocation2 + $0xc8] sm:$0xff]
      %v290 = vld [vmem:[#allocation2 + $0xd0] sm:$0xff]
      %v291 = vld [vmem:[#allocation2 + $0xd8] sm:$0xff]
      %v292 = vld [vmem:[#allocation2 + $0xe0] sm:$0xff]
      %v293 = vld [vmem:[#allocation2 + $0xe8] sm:$0xff]
      %v294 = vld [vmem:[#allocation2 + $0xf0] sm:$0xff]
      %v295 = vld [vmem:[#allocation2 + $0xf8] sm:$0xff]
      %v296 = vld [vmem:[%s218] sm:$0xff]
      %v297 = vld [vmem:[%s218 + $0x8] sm:$0xff]
      %v298 = vld [vmem:[%s218 + $0x10] sm:$0xff]
      %v299 = vld [vmem:[%s218 + $0x18] sm:$0xff]
      %v300 = vld [vmem:[%s218 + $0x20] sm:$0xff]
      %v301 = vld [vmem:[%s218 + $0x28] sm:$0xff]
      %v302 = vld [vmem:[%s218 + $0x30] sm:$0xff]
      %v303 = vld [vmem:[%s218 + $0x38] sm:$0xff]
      %v304 = vld [vmem:[%s218 + $0x40] sm:$0xff]
      %v305 = vld [vmem:[%s218 + $0x48] sm:$0xff]
      %v306 = vld [vmem:[%s218 + $0x50] sm:$0xff]
      %v307 = vld [vmem:[%s218 + $0x58] sm:$0xff]
      %v308 = vld [vmem:[%s218 + $0x60] sm:$0xff]
      %v309 = vld [vmem:[%s218 + $0x68] sm:$0xff]
      %v310 = vld [vmem:[%s218 + $0x70] sm:$0xff]
      %v311 = vld [vmem:[%s218 + $0x78] sm:$0xff]
      %v312 = vld [vmem:[%s218 + $0x80] sm:$0xff]
      %v313 = vld [vmem:[%s218 + $0x88] sm:$0xff]
      %v314 = vld [vmem:[%s218 + $0x90] sm:$0xff]
      %v315 = vld [vmem:[%s218 + $0x98] sm:$0xff]
      %v316 = vld [vmem:[%s218 + $0xa0] sm:$0xff]
      %v317 = vld [vmem:[%s218 + $0xa8] sm:$0xff]
      %v318 = vld [vmem:[%s218 + $0xb0] sm:$0xff]
      %v319 = vld [vmem:[%s218 + $0xb8] sm:$0xff]
      %v320 = vld [vmem:[%s218 + $0xc0] sm:$0xff]
      %v321 = vld [vmem:[%s218 + $0xc8] sm:$0xff]
      %v322 = vld [vmem:[%s218 + $0xd0] sm:$0xff]
      %v323 = vld [vmem:[%s218 + $0xd8] sm:$0xff]
      %v324 = vld [vmem:[%s218 + $0xe0] sm:$0xff]
      %v325 = vld [vmem:[%s218 + $0xe8] sm:$0xff]
      %v326 = vld [vmem:[%s218 + $0xf0] sm:$0xff]
      %v327 = vld [vmem:[%s218 + $0xf8] sm:$0xff]
      %v328 = vld [vmem:[%s218 + $0x100] sm:$0xff]
      %v329 = vld [vmem:[%s218 + $0x108] sm:$0xff]
      %v330 = vld [vmem:[%s218 + $0x110] sm:$0xff]
      %v331 = vld [vmem:[%s218 + $0x118] sm:$0xff]
      %v332 = vld [vmem:[%s218 + $0x120] sm:$0xff]
      %v333 = vld [vmem:[%s218 + $0x128] sm:$0xff]
      %v334 = vld [vmem:[%s218 + $0x130] sm:$0xff]
      %v335 = vld [vmem:[%s218 + $0x138] sm:$0xff]
      %v336 = vld [vmem:[%s218 + $0x140] sm:$0xff]
      %v337 = vld [vmem:[%s218 + $0x148] sm:$0xff]
      %v338 = vld [vmem:[%s218 + $0x150] sm:$0xff]
      %v339 = vld [vmem:[%s218 + $0x158] sm:$0xff]
      %v340 = vld [vmem:[%s218 + $0x160] sm:$0xff]
      %v341 = vld [vmem:[%s218 + $0x168] sm:$0xff]
      %v342 = vld [vmem:[%s218 + $0x170] sm:$0xff]
      %v343 = vld [vmem:[%s218 + $0x178] sm:$0xff]
      %v344 = vld [vmem:[%s218 + $0x180] sm:$0xff]
      %v345 = vld [vmem:[%s218 + $0x188] sm:$0xff]
      %v346 = vld [vmem:[%s218 + $0x190] sm:$0xff]
      %v347 = vld [vmem:[%s218 + $0x198] sm:$0xff]
      %v348 = vld [vmem:[%s218 + $0x1a0] sm:$0xff]
      %v349 = vld [vmem:[%s218 + $0x1a8] sm:$0xff]
      %v350 = vld [vmem:[%s218 + $0x1b0] sm:$0xff]
      %v351 = vld [vmem:[%s218 + $0x1b8] sm:$0xff]
      %v352 = vld [vmem:[%s218 + $0x1c0] sm:$0xff]
      %v353 = vld [vmem:[%s218 + $0x1c8] sm:$0xff]
      %v354 = vld [vmem:[%s218 + $0x1d0] sm:$0xff]
      %v355 = vld [vmem:[%s218 + $0x1d8] sm:$0xff]
      %v356 = vld [vmem:[%s218 + $0x1e0] sm:$0xff]
      %v357 = vld [vmem:[%s218 + $0x1e8] sm:$0xff]
      %v358 = vld [vmem:[%s218 + $0x1f0] sm:$0xff]
      %v359 = vld [vmem:[%s218 + $0x1f8] sm:$0xff]
      %v360 = vld [vmem:[%s207] sm:$0xf]
      %v361 = vld [vmem:[%s207 + $0x4] sm:$0xf]
      %v362 = vld [vmem:[%s207 + $0x8] sm:$0xf]
      %v363 = vld [vmem:[%s207 + $0xc] sm:$0xf]
      %v364 = vld [vmem:[%s207 + $0x10] sm:$0xf]
      %v365 = vld [vmem:[%s207 + $0x14] sm:$0xf]
      %v366 = vld [vmem:[%s207 + $0x18] sm:$0xf]
      %v367 = vld [vmem:[%s207 + $0x1c] sm:$0xf]
      %v368 = vld [vmem:[%s207 + $0x20] sm:$0xf]
      %v369 = vld [vmem:[%s207 + $0x24] sm:$0xf]
      %v370 = vld [vmem:[%s207 + $0x28] sm:$0xf]
      %v371 = vld [vmem:[%s207 + $0x2c] sm:$0xf]
      %v372 = vld [vmem:[%s207 + $0x30] sm:$0xf]
      %v373 = vld [vmem:[%s207 + $0x34] sm:$0xf]
      %v374 = vld [vmem:[%s207 + $0x38] sm:$0xf]
      %v375 = vld [vmem:[%s207 + $0x3c] sm:$0xf]
      %v376 = vld [vmem:[%s207 + $0x40] sm:$0xf]
      %v377 = vld [vmem:[%s207 + $0x44] sm:$0xf]
      %v378 = vld [vmem:[%s207 + $0x48] sm:$0xf]
      %v379 = vld [vmem:[%s207 + $0x4c] sm:$0xf]
      %v380 = vld [vmem:[%s207 + $0x50] sm:$0xf]
      %v381 = vld [vmem:[%s207 + $0x54] sm:$0xf]
      %v382 = vld [vmem:[%s207 + $0x58] sm:$0xf]
      %v383 = vld [vmem:[%s207 + $0x5c] sm:$0xf]
      %v384 = vld [vmem:[%s207 + $0x60] sm:$0xf]
      %v385 = vld [vmem:[%s207 + $0x64] sm:$0xf]
      %v386 = vld [vmem:[%s207 + $0x68] sm:$0xf]
      %v387 = vld [vmem:[%s207 + $0x6c] sm:$0xf]
      %v388 = vld [vmem:[%s207 + $0x70] sm:$0xf]
      %v389 = vld [vmem:[%s207 + $0x74] sm:$0xf]
      %v390 = vld [vmem:[%s207 + $0x78] sm:$0xf]
      %v391 = vld [vmem:[%s207 + $0x7c] sm:$0xf]
      %v392 = vld [vmem:[%s207 + $0x80] sm:$0xf]
      %v393 = vld [vmem:[%s207 + $0x84] sm:$0xf]
      %v394 = vld [vmem:[%s207 + $0x88] sm:$0xf]
      %v395 = vld [vmem:[%s207 + $0x8c] sm:$0xf]
      %v396 = vld [vmem:[%s207 + $0x90] sm:$0xf]
      %v397 = vld [vmem:[%s207 + $0x94] sm:$0xf]
      %v398 = vld [vmem:[%s207 + $0x98] sm:$0xf]
      %v399 = vld [vmem:[%s207 + $0x9c] sm:$0xf]
      %v400 = vld [vmem:[%s207 + $0xa0] sm:$0xf]
      %v401 = vld [vmem:[%s207 + $0xa4] sm:$0xf]
      %v402 = vld [vmem:[%s207 + $0xa8] sm:$0xf]
      %v403 = vld [vmem:[%s207 + $0xac] sm:$0xf]
      %v404 = vld [vmem:[%s207 + $0xb0] sm:$0xf]
      %v405 = vld [vmem:[%s207 + $0xb4] sm:$0xf]
      %v406 = vld [vmem:[%s207 + $0xb8] sm:$0xf]
      %v407 = vld [vmem:[%s207 + $0xbc] sm:$0xf]
      %v408 = vld [vmem:[%s207 + $0xc0] sm:$0xf]
      %v409 = vld [vmem:[%s207 + $0xc4] sm:$0xf]
      %v410 = vld [vmem:[%s207 + $0xc8] sm:$0xf]
      %v411 = vld [vmem:[%s207 + $0xcc] sm:$0xf]
      %v412 = vld [vmem:[%s207 + $0xd0] sm:$0xf]
      %v413 = vld [vmem:[%s207 + $0xd4] sm:$0xf]
      %v414 = vld [vmem:[%s207 + $0xd8] sm:$0xf]
      %v415 = vld [vmem:[%s207 + $0xdc] sm:$0xf]
      %v416 = vld [vmem:[%s207 + $0xe0] sm:$0xf]
      %v417 = vld [vmem:[%s207 + $0xe4] sm:$0xf]
      %v418 = vld [vmem:[%s207 + $0xe8] sm:$0xf]
      %v419 = vld [vmem:[%s207 + $0xec] sm:$0xf]
      %v420 = vld [vmem:[%s207 + $0xf0] sm:$0xf]
      %v421 = vld [vmem:[%s207 + $0xf4] sm:$0xf]
      %v422 = vld [vmem:[%s207 + $0xf8] sm:$0xf]
      %v423 = vld [vmem:[%s207 + $0xfc] sm:$0xf]
      %v488 = vunpack.c.l.b16 %v296
      %v489 = vunpack.c.h.b16 %v296
      %v490 = vunpack.c.l.b16 %v297
      %v491 = vunpack.c.h.b16 %v297
      %v492 = vunpack.c.l.b16 %v298
      %v493 = vunpack.c.h.b16 %v298
      %v494 = vunpack.c.l.b16 %v299
      %v495 = vunpack.c.h.b16 %v299
      %v496 = vunpack.c.l.b16 %v300
      %v497 = vunpack.c.h.b16 %v300
      %v498 = vunpack.c.l.b16 %v301
      %v499 = vunpack.c.h.b16 %v301
      %v500 = vunpack.c.l.b16 %v302
      %v501 = vunpack.c.h.b16 %v302
      %v502 = vunpack.c.l.b16 %v303
      %v503 = vunpack.c.h.b16 %v303
      %v504 = vunpack.c.l.b16 %v304
      %v505 = vunpack.c.h.b16 %v304
      %v506 = vunpack.c.l.b16 %v305
      %v507 = vunpack.c.h.b16 %v305
      %v508 = vunpack.c.l.b16 %v306
      %v509 = vunpack.c.h.b16 %v306
      %v510 = vunpack.c.l.b16 %v307
      %v511 = vunpack.c.h.b16 %v307
      %v512 = vunpack.c.l.b16 %v308
      %v513 = vunpack.c.h.b16 %v308
      %v514 = vunpack.c.l.b16 %v309
      %v515 = vunpack.c.h.b16 %v309
      %v516 = vunpack.c.l.b16 %v310
      %v517 = vunpack.c.h.b16 %v310
      %v518 = vunpack.c.l.b16 %v311
      %v519 = vunpack.c.h.b16 %v311
      %v520 = vunpack.c.l.b16 %v312
      %v521 = vunpack.c.h.b16 %v312
      %v522 = vunpack.c.l.b16 %v313
      %v523 = vunpack.c.h.b16 %v313
      %v524 = vunpack.c.l.b16 %v314
      %v525 = vunpack.c.h.b16 %v314
      %v526 = vunpack.c.l.b16 %v315
      %v527 = vunpack.c.h.b16 %v315
      %v528 = vunpack.c.l.b16 %v316
      %v529 = vunpack.c.h.b16 %v316
      %v530 = vunpack.c.l.b16 %v317
      %v531 = vunpack.c.h.b16 %v317
      %v532 = vunpack.c.l.b16 %v318
      %v533 = vunpack.c.h.b16 %v318
      %v534 = vunpack.c.l.b16 %v319
      %v535 = vunpack.c.h.b16 %v319
      %v536 = vunpack.c.l.b16 %v320
      %v537 = vunpack.c.h.b16 %v320
      %v538 = vunpack.c.l.b16 %v321
      %v539 = vunpack.c.h.b16 %v321
      %v540 = vunpack.c.l.b16 %v322
      %v541 = vunpack.c.h.b16 %v322
      %v542 = vunpack.c.l.b16 %v323
      %v543 = vunpack.c.h.b16 %v323
      %v544 = vunpack.c.l.b16 %v324
      %v545 = vunpack.c.h.b16 %v324
      %v546 = vunpack.c.l.b16 %v325
      %v547 = vunpack.c.h.b16 %v325
      %v548 = vunpack.c.l.b16 %v326
      %v549 = vunpack.c.h.b16 %v326
      %v550 = vunpack.c.l.b16 %v327
      %v551 = vunpack.c.h.b16 %v327
      %v552 = vunpack.c.l.b16 %v328
      %v553 = vunpack.c.h.b16 %v328
      %v554 = vunpack.c.l.b16 %v329
      %v555 = vunpack.c.h.b16 %v329
      %v556 = vunpack.c.l.b16 %v330
      %v557 = vunpack.c.h.b16 %v330
      %v558 = vunpack.c.l.b16 %v331
      %v559 = vunpack.c.h.b16 %v331
      %v560 = vunpack.c.l.b16 %v332
      %v561 = vunpack.c.h.b16 %v332
      %v562 = vunpack.c.l.b16 %v333
      %v563 = vunpack.c.h.b16 %v333
      %v564 = vunpack.c.l.b16 %v334
      %v565 = vunpack.c.h.b16 %v334
      %v566 = vunpack.c.l.b16 %v335
      %v567 = vunpack.c.h.b16 %v335
      %v568 = vunpack.c.l.b16 %v336
      %v569 = vunpack.c.h.b16 %v336
      %v570 = vunpack.c.l.b16 %v337
      %v571 = vunpack.c.h.b16 %v337
      %v572 = vunpack.c.l.b16 %v338
      %v573 = vunpack.c.h.b16 %v338
      %v574 = vunpack.c.l.b16 %v339
      %v575 = vunpack.c.h.b16 %v339
      %v576 = vunpack.c.l.b16 %v340
      %v577 = vunpack.c.h.b16 %v340
      %v578 = vunpack.c.l.b16 %v341
      %v579 = vunpack.c.h.b16 %v341
      %v580 = vunpack.c.l.b16 %v342
      %v581 = vunpack.c.h.b16 %v342
      %v582 = vunpack.c.l.b16 %v343
      %v583 = vunpack.c.h.b16 %v343
      %v584 = vunpack.c.l.b16 %v344
      %v585 = vunpack.c.h.b16 %v344
      %v586 = vunpack.c.l.b16 %v345
      %v587 = vunpack.c.h.b16 %v345
      %v588 = vunpack.c.l.b16 %v346
      %v589 = vunpack.c.h.b16 %v346
      %v590 = vunpack.c.l.b16 %v347
      %v591 = vunpack.c.h.b16 %v347
      %v592 = vunpack.c.l.b16 %v348
      %v593 = vunpack.c.h.b16 %v348
      %v594 = vunpack.c.l.b16 %v349
      %v595 = vunpack.c.h.b16 %v349
      %v596 = vunpack.c.l.b16 %v350
      %v597 = vunpack.c.h.b16 %v350
      %v598 = vunpack.c.l.b16 %v351
      %v599 = vunpack.c.h.b16 %v351
      %v600 = vunpack.c.l.b16 %v352
      %v601 = vunpack.c.h.b16 %v352
      %v602 = vunpack.c.l.b16 %v353
      %v603 = vunpack.c.h.b16 %v353
      %v604 = vunpack.c.l.b16 %v354
      %v605 = vunpack.c.h.b16 %v354
      %v606 = vunpack.c.l.b16 %v355
      %v607 = vunpack.c.h.b16 %v355
      %v608 = vunpack.c.l.b16 %v356
      %v609 = vunpack.c.h.b16 %v356
      %v610 = vunpack.c.l.b16 %v357
      %v611 = vunpack.c.h.b16 %v357
      %v612 = vunpack.c.l.b16 %v358
      %v613 = vunpack.c.h.b16 %v358
      %v614 = vunpack.c.l.b16 %v359
      %v615 = vunpack.c.h.b16 %v359
      %v616 = vpack.c.b16 %v492, %v488
      %v617 = vpack.c.b16 %v493, %v489
      %v618 = vpack.c.b16 %v494, %v490
      %v619 = vpack.c.b16 %v495, %v491
      %v620 = vpack.c.b16 %v500, %v496
      %v621 = vpack.c.b16 %v501, %v497
      %v622 = vpack.c.b16 %v502, %v498
      %v623 = vpack.c.b16 %v503, %v499
      %v624 = vpack.c.b16 %v508, %v504
      %v625 = vpack.c.b16 %v509, %v505
      %v626 = vpack.c.b16 %v510, %v506
      %v627 = vpack.c.b16 %v511, %v507
      %v628 = vpack.c.b16 %v516, %v512
      %v629 = vpack.c.b16 %v517, %v513
      %v630 = vpack.c.b16 %v518, %v514
      %v631 = vpack.c.b16 %v519, %v515
      %v632 = vpack.c.b16 %v524, %v520
      %v633 = vpack.c.b16 %v525, %v521
      %v634 = vpack.c.b16 %v526, %v522
      %v635 = vpack.c.b16 %v527, %v523
      %v636 = vpack.c.b16 %v532, %v528
      %v637 = vpack.c.b16 %v533, %v529
      %v638 = vpack.c.b16 %v534, %v530
      %v639 = vpack.c.b16 %v535, %v531
      %v640 = vpack.c.b16 %v540, %v536
      %v641 = vpack.c.b16 %v541, %v537
      %v642 = vpack.c.b16 %v542, %v538
      %v643 = vpack.c.b16 %v543, %v539
      %v644 = vpack.c.b16 %v548, %v544
      %v645 = vpack.c.b16 %v549, %v545
      %v646 = vpack.c.b16 %v550, %v546
      %v647 = vpack.c.b16 %v551, %v547
      %v648 = vpack.c.b16 %v556, %v552
      %v649 = vpack.c.b16 %v557, %v553
      %v650 = vpack.c.b16 %v558, %v554
      %v651 = vpack.c.b16 %v559, %v555
      %v652 = vpack.c.b16 %v564, %v560
      %v653 = vpack.c.b16 %v565, %v561
      %v654 = vpack.c.b16 %v566, %v562
      %v655 = vpack.c.b16 %v567, %v563
      %v656 = vpack.c.b16 %v572, %v568
      %v657 = vpack.c.b16 %v573, %v569
      %v658 = vpack.c.b16 %v574, %v570
      %v659 = vpack.c.b16 %v575, %v571
      %v660 = vpack.c.b16 %v580, %v576
      %v661 = vpack.c.b16 %v581, %v577
      %v662 = vpack.c.b16 %v582, %v578
      %v663 = vpack.c.b16 %v583, %v579
      %v664 = vpack.c.b16 %v588, %v584
      %v665 = vpack.c.b16 %v589, %v585
      %v666 = vpack.c.b16 %v590, %v586
      %v667 = vpack.c.b16 %v591, %v587
      %v668 = vpack.c.b16 %v596, %v592
      %v669 = vpack.c.b16 %v597, %v593
      %v670 = vpack.c.b16 %v598, %v594
      %v671 = vpack.c.b16 %v599, %v595
      %v672 = vpack.c.b16 %v604, %v600
      %v673 = vpack.c.b16 %v605, %v601
      %v674 = vpack.c.b16 %v606, %v602
      %v675 = vpack.c.b16 %v607, %v603
      %v676 = vpack.c.b16 %v612, %v608
      %v677 = vpack.c.b16 %v613, %v609
      %v678 = vpack.c.b16 %v614, %v610
      %v679 = vpack.c.b16 %v615, %v611
      %v808 = vunpack.c.l.b16 %v360
      %v809 = vunpack.c.l.b16 %v361
      %v810 = vunpack.c.l.b16 %v362
      %v811 = vunpack.c.l.b16 %v363
      %v812 = vunpack.c.l.b16 %v364
      %v813 = vunpack.c.l.b16 %v365
      %v814 = vunpack.c.l.b16 %v366
      %v815 = vunpack.c.l.b16 %v367
      %v816 = vunpack.c.l.b16 %v368
      %v817 = vunpack.c.l.b16 %v369
      %v818 = vunpack.c.l.b16 %v370
      %v819 = vunpack.c.l.b16 %v371
      %v820 = vunpack.c.l.b16 %v372
      %v821 = vunpack.c.l.b16 %v373
      %v822 = vunpack.c.l.b16 %v374
      %v823 = vunpack.c.l.b16 %v375
      %v824 = vunpack.c.l.b16 %v376
      %v825 = vunpack.c.l.b16 %v377
      %v826 = vunpack.c.l.b16 %v378
      %v827 = vunpack.c.l.b16 %v379
      %v828 = vunpack.c.l.b16 %v380
      %v829 = vunpack.c.l.b16 %v381
      %v830 = vunpack.c.l.b16 %v382
      %v831 = vunpack.c.l.b16 %v383
      %v832 = vunpack.c.l.b16 %v384
      %v833 = vunpack.c.l.b16 %v385
      %v834 = vunpack.c.l.b16 %v386
      %v835 = vunpack.c.l.b16 %v387
      %v836 = vunpack.c.l.b16 %v388
      %v837 = vunpack.c.l.b16 %v389
      %v838 = vunpack.c.l.b16 %v390
      %v839 = vunpack.c.l.b16 %v391
      %v840 = vunpack.c.l.b16 %v392
      %v841 = vunpack.c.l.b16 %v393
      %v842 = vunpack.c.l.b16 %v394
      %v843 = vunpack.c.l.b16 %v395
      %v844 = vunpack.c.l.b16 %v396
      %v845 = vunpack.c.l.b16 %v397
      %v846 = vunpack.c.l.b16 %v398
      %v847 = vunpack.c.l.b16 %v399
      %v848 = vunpack.c.l.b16 %v400
      %v849 = vunpack.c.l.b16 %v401
      %v850 = vunpack.c.l.b16 %v402
      %v851 = vunpack.c.l.b16 %v403
      %v852 = vunpack.c.l.b16 %v404
      %v853 = vunpack.c.l.b16 %v405
      %v854 = vunpack.c.l.b16 %v406
      %v855 = vunpack.c.l.b16 %v407
      %v856 = vunpack.c.l.b16 %v408
      %v857 = vunpack.c.l.b16 %v409
      %v858 = vunpack.c.l.b16 %v410
      %v859 = vunpack.c.l.b16 %v411
      %v860 = vunpack.c.l.b16 %v412
      %v861 = vunpack.c.l.b16 %v413
      %v862 = vunpack.c.l.b16 %v414
      %v863 = vunpack.c.l.b16 %v415
      %v864 = vunpack.c.l.b16 %v416
      %v865 = vunpack.c.l.b16 %v417
      %v866 = vunpack.c.l.b16 %v418
      %v867 = vunpack.c.l.b16 %v419
      %v868 = vunpack.c.l.b16 %v420
      %v869 = vunpack.c.l.b16 %v421
      %v870 = vunpack.c.l.b16 %v422
      %v871 = vunpack.c.l.b16 %v423
      %v872 = vpack.c.b16 %v809, %v808
      %v873 = vpack.c.b16 %v811, %v810
      %v874 = vpack.c.b16 %v813, %v812
      %v875 = vpack.c.b16 %v815, %v814
      %v876 = vpack.c.b16 %v817, %v816
      %v877 = vpack.c.b16 %v819, %v818
      %v878 = vpack.c.b16 %v821, %v820
      %v879 = vpack.c.b16 %v823, %v822
      %v880 = vpack.c.b16 %v825, %v824
      %v881 = vpack.c.b16 %v827, %v826
      %v882 = vpack.c.b16 %v829, %v828
      %v883 = vpack.c.b16 %v831, %v830
      %v884 = vpack.c.b16 %v833, %v832
      %v885 = vpack.c.b16 %v835, %v834
      %v886 = vpack.c.b16 %v837, %v836
      %v887 = vpack.c.b16 %v839, %v838
      %v888 = vpack.c.b16 %v841, %v840
      %v889 = vpack.c.b16 %v843, %v842
      %v890 = vpack.c.b16 %v845, %v844
      %v891 = vpack.c.b16 %v847, %v846
      %v892 = vpack.c.b16 %v849, %v848
      %v893 = vpack.c.b16 %v851, %v850
      %v894 = vpack.c.b16 %v853, %v852
      %v895 = vpack.c.b16 %v855, %v854
      %v896 = vpack.c.b16 %v857, %v856
      %v897 = vpack.c.b16 %v859, %v858
      %v898 = vpack.c.b16 %v861, %v860
      %v899 = vpack.c.b16 %v863, %v862
      %v900 = vpack.c.b16 %v865, %v864
      %v901 = vpack.c.b16 %v867, %v866
      %v902 = vpack.c.b16 %v869, %v868
      %v903 = vpack.c.b16 %v871, %v870
      %936 = vmatprep.subr.bf16.mxu0 0
      %937 = vmatpush1.bf16.msra.mxu0 %v879
      %938 = vmatprep.subr.bf16.mxu0 0
      %939 = vmatpush1.bf16.msra.mxu0 %v878
      %940 = vmatprep.subr.bf16.mxu0 0
      %941 = vmatpush1.bf16.msra.mxu0 %v877
      %942 = vmatprep.subr.bf16.mxu0 0
      %943 = vmatpush1.bf16.msra.mxu0 %v876
      %944 = vmatprep.subr.bf16.mxu0 0
      %945 = vmatpush1.bf16.msra.mxu0 %v875
      %946 = vmatprep.subr.bf16.mxu0 0
      %947 = vmatpush1.bf16.msra.mxu0 %v874
      %948 = vmatprep.subr.bf16.mxu0 0
      %949 = vmatpush1.bf16.msra.mxu0 %v873
      %950 = vmatprep.subr.bf16.mxu0 0
      %951 = vmatpush1.bf16.msra.mxu0 %v872
      %952 = vmatprep.subr.bf16.mxu0 0
      %953 = vmatpush2.bf16.msra.mxu0 %v887
      %954 = vmatprep.subr.bf16.mxu0 0
      %955 = vmatpush2.bf16.msra.mxu0 %v886
      %956 = vmatprep.subr.bf16.mxu0 0
      %957 = vmatpush2.bf16.msra.mxu0 %v885
      %958 = vmatprep.subr.bf16.mxu0 0
      %959 = vmatpush2.bf16.msra.mxu0 %v884
      %960 = vmatprep.subr.bf16.mxu0 0
      %961 = vmatpush2.bf16.msra.mxu0 %v883
      %962 = vmatprep.subr.bf16.mxu0 0
      %963 = vmatpush2.bf16.msra.mxu0 %v882
      %964 = vmatprep.subr.bf16.mxu0 0
      %965 = vmatpush2.bf16.msra.mxu0 %v881
      %966 = vmatprep.subr.bf16.mxu0 0
      %967 = vmatpush2.bf16.msra.mxu0 %v880
      %968 = vmatprep.mubr.bf16.mxu0 %v617
      %969 = vmatmul.mubr.bf16.gmra.mxu0 %v616
      %v970 = vpop.f32.mrf.mxu0
      %v971 = vadd.f32 0.0, %v970
      %v972 = vpop.f32.mrf.mxu0
      %v973 = vpop.f32.mrf.mxu0
      %v974 = vadd.f32 0.0, %v973
      %v975 = vpop.f32.mrf.mxu0
      %976 = vmatprep.mubr.bf16.mxu0 %v621
      %977 = vmatmul.mubr.bf16.gmra.mxu0 %v620
      %v978 = vpop.f32.mrf.mxu0
      %v979 = vadd.f32 0.0, %v978
      %v980 = vpop.f32.mrf.mxu0
      %v981 = vpop.f32.mrf.mxu0
      %v982 = vadd.f32 0.0, %v981
      %v983 = vpop.f32.mrf.mxu0
      %984 = vmatprep.mubr.bf16.mxu0 %v625
      %985 = vmatmul.mubr.bf16.gmra.mxu0 %v624
      %v986 = vpop.f32.mrf.mxu0
      %v987 = vadd.f32 0.0, %v986
      %v988 = vpop.f32.mrf.mxu0
      %v989 = vpop.f32.mrf.mxu0
      %v990 = vadd.f32 0.0, %v989
      %v991 = vpop.f32.mrf.mxu0
      %992 = vmatprep.mubr.bf16.mxu0 %v629
      %993 = vmatmul.mubr.bf16.gmra.mxu0 %v628
      %v994 = vpop.f32.mrf.mxu0
      %v995 = vadd.f32 0.0, %v994
      %v996 = vpop.f32.mrf.mxu0
      %v997 = vpop.f32.mrf.mxu0
      %v998 = vadd.f32 0.0, %v997
      %v999 = vpop.f32.mrf.mxu0
      %1000 = vmatprep.mubr.bf16.mxu0 %v633
      %1001 = vmatmul.mubr.bf16.gmra.mxu0 %v632
      %v1002 = vpop.f32.mrf.mxu0
      %v1003 = vadd.f32 0.0, %v1002
      %v1004 = vpop.f32.mrf.mxu0
      %v1005 = vpop.f32.mrf.mxu0
      %v1006 = vadd.f32 0.0, %v1005
      %v1007 = vpop.f32.mrf.mxu0
      %1008 = vmatprep.mubr.bf16.mxu0 %v637
      %1009 = vmatmul.mubr.bf16.gmra.mxu0 %v636
      %v1010 = vpop.f32.mrf.mxu0
      %v1011 = vadd.f32 0.0, %v1010
      %v1012 = vpop.f32.mrf.mxu0
      %v1013 = vpop.f32.mrf.mxu0
      %v1014 = vadd.f32 0.0, %v1013
      %v1015 = vpop.f32.mrf.mxu0
      %1016 = vmatprep.mubr.bf16.mxu0 %v641
      %1017 = vmatmul.mubr.bf16.gmra.mxu0 %v640
      %v1018 = vpop.f32.mrf.mxu0
      %v1019 = vadd.f32 0.0, %v1018
      %v1020 = vpop.f32.mrf.mxu0
      %v1021 = vpop.f32.mrf.mxu0
      %v1022 = vadd.f32 0.0, %v1021
      %v1023 = vpop.f32.mrf.mxu0
      %1024 = vmatprep.mubr.bf16.mxu0 %v645
      %1025 = vmatmul.mubr.bf16.gmra.mxu0 %v644
      %v1026 = vpop.f32.mrf.mxu0
      %v1027 = vadd.f32 0.0, %v1026
      %v1028 = vpop.f32.mrf.mxu0
      %v1029 = vpop.f32.mrf.mxu0
      %v1030 = vadd.f32 0.0, %v1029
      %v1031 = vpop.f32.mrf.mxu0
      %1032 = vmatprep.mubr.bf16.mxu0 %v649
      %1033 = vmatmul.mubr.bf16.gmra.mxu0 %v648
      %v1034 = vpop.f32.mrf.mxu0
      %v1035 = vadd.f32 0.0, %v1034
      %v1036 = vpop.f32.mrf.mxu0
      %v1037 = vpop.f32.mrf.mxu0
      %v1038 = vadd.f32 0.0, %v1037
      %v1039 = vpop.f32.mrf.mxu0
      %1040 = vmatprep.mubr.bf16.mxu0 %v653
      %1041 = vmatmul.mubr.bf16.gmra.mxu0 %v652
      %v1042 = vpop.f32.mrf.mxu0
      %v1043 = vadd.f32 0.0, %v1042
      %v1044 = vpop.f32.mrf.mxu0
      %v1045 = vpop.f32.mrf.mxu0
      %v1046 = vadd.f32 0.0, %v1045
      %v1047 = vpop.f32.mrf.mxu0
      %1048 = vmatprep.mubr.bf16.mxu0 %v657
      %1049 = vmatmul.mubr.bf16.gmra.mxu0 %v656
      %v1050 = vpop.f32.mrf.mxu0
      %v1051 = vadd.f32 0.0, %v1050
      %v1052 = vpop.f32.mrf.mxu0
      %v1053 = vpop.f32.mrf.mxu0
      %v1054 = vadd.f32 0.0, %v1053
      %v1055 = vpop.f32.mrf.mxu0
      %1056 = vmatprep.mubr.bf16.mxu0 %v661
      %1057 = vmatmul.mubr.bf16.gmra.mxu0 %v660
      %v1058 = vpop.f32.mrf.mxu0
      %v1059 = vadd.f32 0.0, %v1058
      %v1060 = vpop.f32.mrf.mxu0
      %v1061 = vpop.f32.mrf.mxu0
      %v1062 = vadd.f32 0.0, %v1061
      %v1063 = vpop.f32.mrf.mxu0
      %1064 = vmatprep.mubr.bf16.mxu0 %v665
      %1065 = vmatmul.mubr.bf16.gmra.mxu0 %v664
      %v1066 = vpop.f32.mrf.mxu0
      %v1067 = vadd.f32 0.0, %v1066
      %v1068 = vpop.f32.mrf.mxu0
      %v1069 = vpop.f32.mrf.mxu0
      %v1070 = vadd.f32 0.0, %v1069
      %v1071 = vpop.f32.mrf.mxu0
      %1072 = vmatprep.mubr.bf16.mxu0 %v669
      %1073 = vmatmul.mubr.bf16.gmra.mxu0 %v668
      %v1074 = vpop.f32.mrf.mxu0
      %v1075 = vadd.f32 0.0, %v1074
      %v1076 = vpop.f32.mrf.mxu0
      %v1077 = vpop.f32.mrf.mxu0
      %v1078 = vadd.f32 0.0, %v1077
      %v1079 = vpop.f32.mrf.mxu0
      %1080 = vmatprep.mubr.bf16.mxu0 %v673
      %1081 = vmatmul.mubr.bf16.gmra.mxu0 %v672
      %v1082 = vpop.f32.mrf.mxu0
      %v1083 = vadd.f32 0.0, %v1082
      %v1084 = vpop.f32.mrf.mxu0
      %v1085 = vpop.f32.mrf.mxu0
      %v1086 = vadd.f32 0.0, %v1085
      %v1087 = vpop.f32.mrf.mxu0
      %1088 = vmatprep.mubr.bf16.mxu0 %v677
      %1089 = vmatmul.mubr.bf16.gmra.mxu0 %v676
      %v1090 = vpop.f32.mrf.mxu0
      %v1091 = vadd.f32 0.0, %v1090
      %v1092 = vpop.f32.mrf.mxu0
      %v1093 = vpop.f32.mrf.mxu0
      %v1094 = vadd.f32 0.0, %v1093
      %v1095 = vpop.f32.mrf.mxu0
      %1096 = vdwg.mxu0
      %1097 = vmatprep.subr.bf16.mxu0 0
      %1098 = vmatpush1.bf16.msra.mxu0 %v895
      %1099 = vmatprep.subr.bf16.mxu0 0
      %1100 = vmatpush1.bf16.msra.mxu0 %v894
      %1101 = vmatprep.subr.bf16.mxu0 0
      %1102 = vmatpush1.bf16.msra.mxu0 %v893
      %1103 = vmatprep.subr.bf16.mxu0 0
      %1104 = vmatpush1.bf16.msra.mxu0 %v892
      %1105 = vmatprep.subr.bf16.mxu0 0
      %1106 = vmatpush1.bf16.msra.mxu0 %v891
      %1107 = vmatprep.subr.bf16.mxu0 0
      %1108 = vmatpush1.bf16.msra.mxu0 %v890
      %1109 = vmatprep.subr.bf16.mxu0 0
      %1110 = vmatpush1.bf16.msra.mxu0 %v889
      %1111 = vmatprep.subr.bf16.mxu0 0
      %1112 = vmatpush1.bf16.msra.mxu0 %v888
      %1113 = vmatprep.subr.bf16.mxu0 0
      %1114 = vmatpush2.bf16.msra.mxu0 %v903
      %1115 = vmatprep.subr.bf16.mxu0 0
      %1116 = vmatpush2.bf16.msra.mxu0 %v902
      %1117 = vmatprep.subr.bf16.mxu0 0
      %1118 = vmatpush2.bf16.msra.mxu0 %v901
      %1119 = vmatprep.subr.bf16.mxu0 0
      %1120 = vmatpush2.bf16.msra.mxu0 %v900
      %1121 = vmatprep.subr.bf16.mxu0 0
      %1122 = vmatpush2.bf16.msra.mxu0 %v899
      %1123 = vmatprep.subr.bf16.mxu0 0
      %1124 = vmatpush2.bf16.msra.mxu0 %v898
      %1125 = vmatprep.subr.bf16.mxu0 0
      %1126 = vmatpush2.bf16.msra.mxu0 %v897
      %1127 = vmatprep.subr.bf16.mxu0 0
      %1128 = vmatpush2.bf16.msra.mxu0 %v896
      %1129 = vmatprep.mubr.bf16.mxu0 %v619
      %1130 = vmatmul.mubr.bf16.gmra.mxu0 %v618
      %v1131 = vpop.f32.mrf.mxu0
      %v1132 = vadd.f32 %v971, %v1131
      %v1133 = vpop.f32.mrf.mxu0
      %v1134 = vpop.f32.mrf.mxu0
      %v1135 = vadd.f32 %v974, %v1134
      %v1136 = vpop.f32.mrf.mxu0
      %1137 = vmatprep.mubr.bf16.mxu0 %v623
      %1138 = vmatmul.mubr.bf16.gmra.mxu0 %v622
      %v1139 = vpop.f32.mrf.mxu0
      %v1140 = vadd.f32 %v979, %v1139
      %v1141 = vpop.f32.mrf.mxu0
      %v1142 = vpop.f32.mrf.mxu0
      %v1143 = vadd.f32 %v982, %v1142
      %v1144 = vpop.f32.mrf.mxu0
      %1145 = vmatprep.mubr.bf16.mxu0 %v627
      %1146 = vmatmul.mubr.bf16.gmra.mxu0 %v626
      %v1147 = vpop.f32.mrf.mxu0
      %v1148 = vadd.f32 %v987, %v1147
      %v1149 = vpop.f32.mrf.mxu0
      %v1150 = vpop.f32.mrf.mxu0
      %v1151 = vadd.f32 %v990, %v1150
      %v1152 = vpop.f32.mrf.mxu0
      %1153 = vmatprep.mubr.bf16.mxu0 %v631
      %1154 = vmatmul.mubr.bf16.gmra.mxu0 %v630
      %v1155 = vpop.f32.mrf.mxu0
      %v1156 = vadd.f32 %v995, %v1155
      %v1157 = vpop.f32.mrf.mxu0
      %v1158 = vpop.f32.mrf.mxu0
      %v1159 = vadd.f32 %v998, %v1158
      %v1160 = vpop.f32.mrf.mxu0
      %1161 = vmatprep.mubr.bf16.mxu0 %v635
      %1162 = vmatmul.mubr.bf16.gmra.mxu0 %v634
      %v1163 = vpop.f32.mrf.mxu0
      %v1164 = vadd.f32 %v1003, %v1163
      %v1165 = vpop.f32.mrf.mxu0
      %v1166 = vpop.f32.mrf.mxu0
      %v1167 = vadd.f32 %v1006, %v1166
      %v1168 = vpop.f32.mrf.mxu0
      %1169 = vmatprep.mubr.bf16.mxu0 %v639
      %1170 = vmatmul.mubr.bf16.gmra.mxu0 %v638
      %v1171 = vpop.f32.mrf.mxu0
      %v1172 = vadd.f32 %v1011, %v1171
      %v1173 = vpop.f32.mrf.mxu0
      %v1174 = vpop.f32.mrf.mxu0
      %v1175 = vadd.f32 %v1014, %v1174
      %v1176 = vpop.f32.mrf.mxu0
      %1177 = vmatprep.mubr.bf16.mxu0 %v643
      %1178 = vmatmul.mubr.bf16.gmra.mxu0 %v642
      %v1179 = vpop.f32.mrf.mxu0
      %v1180 = vadd.f32 %v1019, %v1179
      %v1181 = vpop.f32.mrf.mxu0
      %v1182 = vpop.f32.mrf.mxu0
      %v1183 = vadd.f32 %v1022, %v1182
      %v1184 = vpop.f32.mrf.mxu0
      %1185 = vmatprep.mubr.bf16.mxu0 %v647
      %1186 = vmatmul.mubr.bf16.gmra.mxu0 %v646
      %v1187 = vpop.f32.mrf.mxu0
      %v1188 = vadd.f32 %v1027, %v1187
      %v1189 = vpop.f32.mrf.mxu0
      %v1190 = vpop.f32.mrf.mxu0
      %v1191 = vadd.f32 %v1030, %v1190
      %v1192 = vpop.f32.mrf.mxu0
      %1193 = vmatprep.mubr.bf16.mxu0 %v651
      %1194 = vmatmul.mubr.bf16.gmra.mxu0 %v650
      %v1195 = vpop.f32.mrf.mxu0
      %v1196 = vadd.f32 %v1035, %v1195
      %v1197 = vpop.f32.mrf.mxu0
      %v1198 = vpop.f32.mrf.mxu0
      %v1199 = vadd.f32 %v1038, %v1198
      %v1200 = vpop.f32.mrf.mxu0
      %1201 = vmatprep.mubr.bf16.mxu0 %v655
      %1202 = vmatmul.mubr.bf16.gmra.mxu0 %v654
      %v1203 = vpop.f32.mrf.mxu0
      %v1204 = vadd.f32 %v1043, %v1203
      %v1205 = vpop.f32.mrf.mxu0
      %v1206 = vpop.f32.mrf.mxu0
      %v1207 = vadd.f32 %v1046, %v1206
      %v1208 = vpop.f32.mrf.mxu0
      %1209 = vmatprep.mubr.bf16.mxu0 %v659
      %1210 = vmatmul.mubr.bf16.gmra.mxu0 %v658
      %v1211 = vpop.f32.mrf.mxu0
      %v1212 = vadd.f32 %v1051, %v1211
      %v1213 = vpop.f32.mrf.mxu0
      %v1214 = vpop.f32.mrf.mxu0
      %v1215 = vadd.f32 %v1054, %v1214
      %v1216 = vpop.f32.mrf.mxu0
      %1217 = vmatprep.mubr.bf16.mxu0 %v663
      %1218 = vmatmul.mubr.bf16.gmra.mxu0 %v662
      %v1219 = vpop.f32.mrf.mxu0
      %v1220 = vadd.f32 %v1059, %v1219
      %v1221 = vpop.f32.mrf.mxu0
      %v1222 = vpop.f32.mrf.mxu0
      %v1223 = vadd.f32 %v1062, %v1222
      %v1224 = vpop.f32.mrf.mxu0
      %1225 = vmatprep.mubr.bf16.mxu0 %v667
      %1226 = vmatmul.mubr.bf16.gmra.mxu0 %v666
      %v1227 = vpop.f32.mrf.mxu0
      %v1228 = vadd.f32 %v1067, %v1227
      %v1229 = vpop.f32.mrf.mxu0
      %v1230 = vpop.f32.mrf.mxu0
      %v1231 = vadd.f32 %v1070, %v1230
      %v1232 = vpop.f32.mrf.mxu0
      %1233 = vmatprep.mubr.bf16.mxu0 %v671
      %1234 = vmatmul.mubr.bf16.gmra.mxu0 %v670
      %v1235 = vpop.f32.mrf.mxu0
      %v1236 = vadd.f32 %v1075, %v1235
      %v1237 = vpop.f32.mrf.mxu0
      %v1238 = vpop.f32.mrf.mxu0
      %v1239 = vadd.f32 %v1078, %v1238
      %v1240 = vpop.f32.mrf.mxu0
      %1241 = vmatprep.mubr.bf16.mxu0 %v675
      %1242 = vmatmul.mubr.bf16.gmra.mxu0 %v674
      %v1243 = vpop.f32.mrf.mxu0
      %v1244 = vadd.f32 %v1083, %v1243
      %v1245 = vpop.f32.mrf.mxu0
      %v1246 = vpop.f32.mrf.mxu0
      %v1247 = vadd.f32 %v1086, %v1246
      %v1248 = vpop.f32.mrf.mxu0
      %1249 = vmatprep.mubr.bf16.mxu0 %v679
      %1250 = vmatmul.mubr.bf16.gmra.mxu0 %v678
      %v1251 = vpop.f32.mrf.mxu0
      %v1252 = vadd.f32 %v1091, %v1251
      %v1253 = vpop.f32.mrf.mxu0
      %v1254 = vpop.f32.mrf.mxu0
      %v1255 = vadd.f32 %v1094, %v1254
      %v1256 = vpop.f32.mrf.mxu0
      %1257 = vdwg.mxu0
      %v1258 = vadd.f32 %v264, %v1132
      %v1259 = vadd.f32 %v265, %v1135
      %v1260 = vadd.f32 %v266, %v1140
      %v1261 = vadd.f32 %v267, %v1143
      %v1262 = vadd.f32 %v268, %v1148
      %v1263 = vadd.f32 %v269, %v1151
      %v1264 = vadd.f32 %v270, %v1156
      %v1265 = vadd.f32 %v271, %v1159
      %v1266 = vadd.f32 %v272, %v1164
      %v1267 = vadd.f32 %v273, %v1167
      %v1268 = vadd.f32 %v274, %v1172
      %v1269 = vadd.f32 %v275, %v1175
      %v1270 = vadd.f32 %v276, %v1180
      %v1271 = vadd.f32 %v277, %v1183
      %v1272 = vadd.f32 %v278, %v1188
      %v1273 = vadd.f32 %v279, %v1191
      %v1274 = vadd.f32 %v280, %v1196
      %v1275 = vadd.f32 %v281, %v1199
      %v1276 = vadd.f32 %v282, %v1204
      %v1277 = vadd.f32 %v283, %v1207
      %v1278 = vadd.f32 %v284, %v1212
      %v1279 = vadd.f32 %v285, %v1215
      %v1280 = vadd.f32 %v286, %v1220
      %v1281 = vadd.f32 %v287, %v1223
      %v1282 = vadd.f32 %v288, %v1228
      %v1283 = vadd.f32 %v289, %v1231
      %v1284 = vadd.f32 %v290, %v1236
      %v1285 = vadd.f32 %v291, %v1239
      %v1286 = vadd.f32 %v292, %v1244
      %v1287 = vadd.f32 %v293, %v1247
      %v1288 = vadd.f32 %v294, %v1252
      %v1289 = vadd.f32 %v295, %v1255
      %1290 = vst [vmem:[#allocation2] sm:$0xff] %v1258
      %1291 = vst [vmem:[#allocation2 + $0x8] sm:$0xff] %v1259
      %1292 = vst [vmem:[#allocation2 + $0x10] sm:$0xff] %v1260
      %1293 = vst [vmem:[#allocation2 + $0x18] sm:$0xff] %v1261
      %1294 = vst [vmem:[#allocation2 + $0x20] sm:$0xff] %v1262
      %1295 = vst [vmem:[#allocation2 + $0x28] sm:$0xff] %v1263
      %1296 = vst [vmem:[#allocation2 + $0x30] sm:$0xff] %v1264
      %1297 = vst [vmem:[#allocation2 + $0x38] sm:$0xff] %v1265
      %1298 = vst [vmem:[#allocation2 + $0x40] sm:$0xff] %v1266
      %1299 = vst [vmem:[#allocation2 + $0x48] sm:$0xff] %v1267
      %1300 = vst [vmem:[#allocation2 + $0x50] sm:$0xff] %v1268
      %1301 = vst [vmem:[#allocation2 + $0x58] sm:$0xff] %v1269
      %1302 = vst [vmem:[#allocation2 + $0x60] sm:$0xff] %v1270
      %1303 = vst [vmem:[#allocation2 + $0x68] sm:$0xff] %v1271
      %1304 = vst [vmem:[#allocation2 + $0x70] sm:$0xff] %v1272
      %1305 = vst [vmem:[#allocation2 + $0x78] sm:$0xff] %v1273
      %1306 = vst [vmem:[#allocation2 + $0x80] sm:$0xff] %v1274
      %1307 = vst [vmem:[#allocation2 + $0x88] sm:$0xff] %v1275
      %1308 = vst [vmem:[#allocation2 + $0x90] sm:$0xff] %v1276
      %1309 = vst [vmem:[#allocation2 + $0x98] sm:$0xff] %v1277
      %1310 = vst [vmem:[#allocation2 + $0xa0] sm:$0xff] %v1278
      %1311 = vst [vmem:[#allocation2 + $0xa8] sm:$0xff] %v1279
      %1312 = vst [vmem:[#allocation2 + $0xb0] sm:$0xff] %v1280
      %1313 = vst [vmem:[#allocation2 + $0xb8] sm:$0xff] %v1281
      %1314 = vst [vmem:[#allocation2 + $0xc0] sm:$0xff] %v1282
      %1315 = vst [vmem:[#allocation2 + $0xc8] sm:$0xff] %v1283
      %1316 = vst [vmem:[#allocation2 + $0xd0] sm:$0xff] %v1284
      %1317 = vst [vmem:[#allocation2 + $0xd8] sm:$0xff] %v1285
      %1318 = vst [vmem:[#allocation2 + $0xe0] sm:$0xff] %v1286
      %1319 = vst [vmem:[#allocation2 + $0xe8] sm:$0xff] %v1287
      %1320 = vst [vmem:[#allocation2 + $0xf0] sm:$0xff] %v1288
      %1321 = vst [vmem:[#allocation2 + $0xf8] sm:$0xff] %v1289
      // Predicated region
      $region37: #{fwd.7} parent=31 // pred_check
        %p1322 = pneg %p228
      $region38: #{fwd.7} parent=31 // pred_check_branch
        %1324 = sbr.rel (%p1322) target = $region40
      $region39: #{fwd.7} parent=31 // pred_region
        %v1325 = vld [vmem:[#allocation2] sm:$0xff]
        %v1326 = vld [vmem:[#allocation2 + $0x8] sm:$0xff]
        %v1327 = vld [vmem:[#allocation2 + $0x10] sm:$0xff]
        %v1328 = vld [vmem:[#allocation2 + $0x18] sm:$0xff]
        %v1329 = vld [vmem:[#allocation2 + $0x20] sm:$0xff]
        %v1330 = vld [vmem:[#allocation2 + $0x28] sm:$0xff]
        %v1331 = vld [vmem:[#allocation2 + $0x30] sm:$0xff]
        %v1332 = vld [vmem:[#allocation2 + $0x38] sm:$0xff]
        %v1333 = vld [vmem:[#allocation2 + $0x40] sm:$0xff]
        %v1334 = vld [vmem:[#allocation2 + $0x48] sm:$0xff]
        %v1335 = vld [vmem:[#allocation2 + $0x50] sm:$0xff]
        %v1336 = vld [vmem:[#allocation2 + $0x58] sm:$0xff]
        %v1337 = vld [vmem:[#allocation2 + $0x60] sm:$0xff]
        %v1338 = vld [vmem:[#allocation2 + $0x68] sm:$0xff]
        %v1339 = vld [vmem:[#allocation2 + $0x70] sm:$0xff]
        %v1340 = vld [vmem:[#allocation2 + $0x78] sm:$0xff]
        %v1341 = vld [vmem:[#allocation2 + $0x80] sm:$0xff]
        %v1342 = vld [vmem:[#allocation2 + $0x88] sm:$0xff]
        %v1343 = vld [vmem:[#allocation2 + $0x90] sm:$0xff]
        %v1344 = vld [vmem:[#allocation2 + $0x98] sm:$0xff]
        %v1345 = vld [vmem:[#allocation2 + $0xa0] sm:$0xff]
        %v1346 = vld [vmem:[#allocation2 + $0xa8] sm:$0xff]
        %v1347 = vld [vmem:[#allocation2 + $0xb0] sm:$0xff]
        %v1348 = vld [vmem:[#allocation2 + $0xb8] sm:$0xff]
        %v1349 = vld [vmem:[#allocation2 + $0xc0] sm:$0xff]
        %v1350 = vld [vmem:[#allocation2 + $0xc8] sm:$0xff]
        %v1351 = vld [vmem:[#allocation2 + $0xd0] sm:$0xff]
        %v1352 = vld [vmem:[#allocation2 + $0xd8] sm:$0xff]
        %v1353 = vld [vmem:[#allocation2 + $0xe0] sm:$0xff]
        %v1354 = vld [vmem:[#allocation2 + $0xe8] sm:$0xff]
        %v1355 = vld [vmem:[#allocation2 + $0xf0] sm:$0xff]
        %v1356 = vld [vmem:[#allocation2 + $0xf8] sm:$0xff]
        %v1357 = vld [vmem:[%s2] sm:$0x1]
        %v1359 = vlaneseq
        %v1360 = vshrl.u32 %v1359, 7
        %v1361 = vsub.s32 0, %v1360
        %v1362 = vrot.slane %v1357, %v1361
        %v1364 = vadd.f32 %v1325, %v1362
        %v1365 = vadd.f32 %v1326, %v1362
        %v1366 = vadd.f32 %v1327, %v1362
        %v1367 = vadd.f32 %v1328, %v1362
        %v1368 = vadd.f32 %v1329, %v1362
        %v1369 = vadd.f32 %v1330, %v1362
        %v1370 = vadd.f32 %v1331, %v1362
        %v1371 = vadd.f32 %v1332, %v1362
        %v1372 = vadd.f32 %v1333, %v1362
        %v1373 = vadd.f32 %v1334, %v1362
        %v1374 = vadd.f32 %v1335, %v1362
        %v1375 = vadd.f32 %v1336, %v1362
        %v1376 = vadd.f32 %v1337, %v1362
        %v1377 = vadd.f32 %v1338, %v1362
        %v1378 = vadd.f32 %v1339, %v1362
        %v1379 = vadd.f32 %v1340, %v1362
        %v1380 = vadd.f32 %v1341, %v1362
        %v1381 = vadd.f32 %v1342, %v1362
        %v1382 = vadd.f32 %v1343, %v1362
        %v1383 = vadd.f32 %v1344, %v1362
        %v1384 = vadd.f32 %v1345, %v1362
        %v1385 = vadd.f32 %v1346, %v1362
        %v1386 = vadd.f32 %v1347, %v1362
        %v1387 = vadd.f32 %v1348, %v1362
        %v1388 = vadd.f32 %v1349, %v1362
        %v1389 = vadd.f32 %v1350, %v1362
        %v1390 = vadd.f32 %v1351, %v1362
        %v1391 = vadd.f32 %v1352, %v1362
        %v1392 = vadd.f32 %v1353, %v1362
        %v1393 = vadd.f32 %v1354, %v1362
        %v1394 = vadd.f32 %v1355, %v1362
        %v1395 = vadd.f32 %v1356, %v1362
        %v1396 = vtanh.pop %v1364
        %v1397 = vtanh.pop %v1365
        %v1398 = vtanh.pop %v1366
        %v1399 = vtanh.pop %v1367
        %v1400 = vtanh.pop %v1368
        %v1401 = vtanh.pop %v1369
        %v1402 = vtanh.pop %v1370
        %v1403 = vtanh.pop %v1371
        %v1404 = vtanh.pop %v1372
        %v1405 = vtanh.pop %v1373
        %v1406 = vtanh.pop %v1374
        %v1407 = vtanh.pop %v1375
        %v1408 = vtanh.pop %v1376
        %v1409 = vtanh.pop %v1377
        %v1410 = vtanh.pop %v1378
        %v1411 = vtanh.pop %v1379
        %v1412 = vtanh.pop %v1380
        %v1413 = vtanh.pop %v1381
        %v1414 = vtanh.pop %v1382
        %v1415 = vtanh.pop %v1383
        %v1416 = vtanh.pop %v1384
        %v1417 = vtanh.pop %v1385
        %v1418 = vtanh.pop %v1386
        %v1419 = vtanh.pop %v1387
        %v1420 = vtanh.pop %v1388
        %v1421 = vtanh.pop %v1389
        %v1422 = vtanh.pop %v1390
        %v1423 = vtanh.pop %v1391
        %v1424 = vtanh.pop %v1392
        %v1425 = vtanh.pop %v1393
        %v1426 = vtanh.pop %v1394
        %v1427 = vtanh.pop %v1395
        %v1428 = vpack.c.bf16 %v1397, %v1396
        %v1429 = vpack.c.bf16 %v1399, %v1398
        %v1430 = vpack.c.bf16 %v1401, %v1400
        %v1431 = vpack.c.bf16 %v1403, %v1402
        %v1432 = vpack.c.bf16 %v1405, %v1404
        %v1433 = vpack.c.bf16 %v1407, %v1406
        %v1434 = vpack.c.bf16 %v1409, %v1408
        %v1435 = vpack.c.bf16 %v1411, %v1410
        %v1436 = vpack.c.bf16 %v1413, %v1412
        %v1437 = vpack.c.bf16 %v1415, %v1414
        %v1438 = vpack.c.bf16 %v1417, %v1416
        %v1439 = vpack.c.bf16 %v1419, %v1418
        %v1440 = vpack.c.bf16 %v1421, %v1420
        %v1441 = vpack.c.bf16 %v1423, %v1422
        %v1442 = vpack.c.bf16 %v1425, %v1424
        %v1443 = vpack.c.bf16 %v1427, %v1426
        %v1460 = vunpack.c.l.b16 %v1428
        %v1461 = vunpack.c.h.b16 %v1428
        %v1462 = vunpack.c.l.b16 %v1429
        %v1463 = vunpack.c.h.b16 %v1429
        %v1464 = vunpack.c.l.b16 %v1430
        %v1465 = vunpack.c.h.b16 %v1430
        %v1466 = vunpack.c.l.b16 %v1431
        %v1467 = vunpack.c.h.b16 %v1431
        %v1468 = vunpack.c.l.b16 %v1432
        %v1469 = vunpack.c.h.b16 %v1432
        %v1470 = vunpack.c.l.b16 %v1433
        %v1471 = vunpack.c.h.b16 %v1433
        %v1472 = vunpack.c.l.b16 %v1434
        %v1473 = vunpack.c.h.b16 %v1434
        %v1474 = vunpack.c.l.b16 %v1435
        %v1475 = vunpack.c.h.b16 %v1435
        %v1476 = vunpack.c.l.b16 %v1436
        %v1477 = vunpack.c.h.b16 %v1436
        %v1478 = vunpack.c.l.b16 %v1437
        %v1479 = vunpack.c.h.b16 %v1437
        %v1480 = vunpack.c.l.b16 %v1438
        %v1481 = vunpack.c.h.b16 %v1438
        %v1482 = vunpack.c.l.b16 %v1439
        %v1483 = vunpack.c.h.b16 %v1439
        %v1484 = vunpack.c.l.b16 %v1440
        %v1485 = vunpack.c.h.b16 %v1440
        %v1486 = vunpack.c.l.b16 %v1441
        %v1487 = vunpack.c.h.b16 %v1441
        %v1488 = vunpack.c.l.b16 %v1442
        %v1489 = vunpack.c.h.b16 %v1442
        %v1490 = vunpack.c.l.b16 %v1443
        %v1491 = vunpack.c.h.b16 %v1443
        %v1492 = vpack.c.b16 %v1460, %v1460
        %v1493 = vpack.c.b16 %v1461, %v1461
        %v1494 = vpack.c.b16 %v1462, %v1462
        %v1495 = vpack.c.b16 %v1463, %v1463
        %v1496 = vpack.c.b16 %v1464, %v1464
        %v1497 = vpack.c.b16 %v1465, %v1465
        %v1498 = vpack.c.b16 %v1466, %v1466
        %v1499 = vpack.c.b16 %v1467, %v1467
        %v1500 = vpack.c.b16 %v1468, %v1468
        %v1501 = vpack.c.b16 %v1469, %v1469
        %v1502 = vpack.c.b16 %v1470, %v1470
        %v1503 = vpack.c.b16 %v1471, %v1471
        %v1504 = vpack.c.b16 %v1472, %v1472
        %v1505 = vpack.c.b16 %v1473, %v1473
        %v1506 = vpack.c.b16 %v1474, %v1474
        %v1507 = vpack.c.b16 %v1475, %v1475
        %v1508 = vpack.c.b16 %v1476, %v1476
        %v1509 = vpack.c.b16 %v1477, %v1477
        %v1510 = vpack.c.b16 %v1478, %v1478
        %v1511 = vpack.c.b16 %v1479, %v1479
        %v1512 = vpack.c.b16 %v1480, %v1480
        %v1513 = vpack.c.b16 %v1481, %v1481
        %v1514 = vpack.c.b16 %v1482, %v1482
        %v1515 = vpack.c.b16 %v1483, %v1483
        %v1516 = vpack.c.b16 %v1484, %v1484
        %v1517 = vpack.c.b16 %v1485, %v1485
        %v1518 = vpack.c.b16 %v1486, %v1486
        %v1519 = vpack.c.b16 %v1487, %v1487
        %v1520 = vpack.c.b16 %v1488, %v1488
        %v1521 = vpack.c.b16 %v1489, %v1489
        %v1522 = vpack.c.b16 %v1490, %v1490
        %v1523 = vpack.c.b16 %v1491, %v1491
        %1556 = vst [vmem:[%s225] sm:$0xf] %v1492
        %1557 = vst [vmem:[%s225 + $0x4] sm:$0xf] %v1493
        %1558 = vst [vmem:[%s225 + $0x8] sm:$0xf] %v1494
        %1559 = vst [vmem:[%s225 + $0xc] sm:$0xf] %v1495
        %1560 = vst [vmem:[%s225 + $0x10] sm:$0xf] %v1496
        %1561 = vst [vmem:[%s225 + $0x14] sm:$0xf] %v1497
        %1562 = vst [vmem:[%s225 + $0x18] sm:$0xf] %v1498
        %1563 = vst [vmem:[%s225 + $0x1c] sm:$0xf] %v1499
        %1564 = vst [vmem:[%s225 + $0x20] sm:$0xf] %v1500
        %1565 = vst [vmem:[%s225 + $0x24] sm:$0xf] %v1501
        %1566 = vst [vmem:[%s225 + $0x28] sm:$0xf] %v1502
        %1567 = vst [vmem:[%s225 + $0x2c] sm:$0xf] %v1503
        %1568 = vst [vmem:[%s225 + $0x30] sm:$0xf] %v1504
        %1569 = vst [vmem:[%s225 + $0x34] sm:$0xf] %v1505
        %1570 = vst [vmem:[%s225 + $0x38] sm:$0xf] %v1506
        %1571 = vst [vmem:[%s225 + $0x3c] sm:$0xf] %v1507
        %1572 = vst [vmem:[%s225 + $0x40] sm:$0xf] %v1508
        %1573 = vst [vmem:[%s225 + $0x44] sm:$0xf] %v1509
        %1574 = vst [vmem:[%s225 + $0x48] sm:$0xf] %v1510
        %1575 = vst [vmem:[%s225 + $0x4c] sm:$0xf] %v1511
        %1576 = vst [vmem:[%s225 + $0x50] sm:$0xf] %v1512
        %1577 = vst [vmem:[%s225 + $0x54] sm:$0xf] %v1513
        %1578 = vst [vmem:[%s225 + $0x58] sm:$0xf] %v1514
        %1579 = vst [vmem:[%s225 + $0x5c] sm:$0xf] %v1515
        %1580 = vst [vmem:[%s225 + $0x60] sm:$0xf] %v1516
        %1581 = vst [vmem:[%s225 + $0x64] sm:$0xf] %v1517
        %1582 = vst [vmem:[%s225 + $0x68] sm:$0xf] %v1518
        %1583 = vst [vmem:[%s225 + $0x6c] sm:$0xf] %v1519
        %1584 = vst [vmem:[%s225 + $0x70] sm:$0xf] %v1520
        %1585 = vst [vmem:[%s225 + $0x74] sm:$0xf] %v1521
        %1586 = vst [vmem:[%s225 + $0x78] sm:$0xf] %v1522
        %1587 = vst [vmem:[%s225 + $0x7c] sm:$0xf] %v1523
      $region40: #{fwd.7} parent=31 // pred_fallthru
        _
      %s1588 = smul.u32 32, %s18
      %p1589 = scmp.lt.s32.totalorder %s1588, 63
      %s1590 = scalar_select %p1589, %s1588, 63
      %s1591 = smul.addr %s1590, 4
      %s1592 = scalar_lea.vmem %s3, %s1591
      // Predicated region
      $region41: #{fwd.7} parent=31 // pred_check
        %p1593 = pneg %p119
      $region42: #{fwd.7} parent=31 // pred_check_branch
        %1595 = sbr.rel (%p1593) target = $region44
      $region43: #{fwd.7} parent=31 // pred_region
        %s1596 = smul.u32 32, %s18
      $region44: #{fwd.7} parent=31 // pred_fallthru
        _
    $region32: #{fwd.7} parent=5 // pred_fallthru
      _
    %p1597 = scmp.le.s32.totalorder 2, %s9
    // Predicated region
    $region45: #{fwd.7} parent=5 // pred_check
      %p1598 = pneg %p1597
    $region46: #{fwd.7} parent=5 // pred_check_branch
      %1600 = sbr.rel (%p1598) target = $region48
    $region47: #{fwd.7} parent=5 // pred_region
      %s1601 = ssub.s32 %s9, 2
      // Predicated region
      $region49: #{fwd.7} parent=47 // pred_check
        %p1602 = pneg %p125
      $region50: #{fwd.7} parent=47 // pred_check_branch
        %1604 = sbr.rel (%p1602) target = $region52
      $region51: #{fwd.7} parent=47 // pred_region
        %s1605 = smul.u32 32, %s20
        %p1606 = scmp.lt.s32.totalorder %s1605, 63
        %s1607 = scalar_select %p1606, %s1605, 63
        %s1608 = smul.addr %s1607, 4
        %s1609 = scalar_lea.vmem %s3, %s1608
      $region52: #{fwd.7} parent=47 // pred_fallthru
        _
    $region48: #{fwd.7} parent=5 // pred_fallthru
      _
  $region6: #{fwd.7} parent=0 // loop_footer
    %s13 = sadd.s32 1, %s9
  $region7: #{fwd.7} parent=0 // loop_footer_branch
    %8 = sbr.rel target = $region3
  $region8: #{fwd.7} parent=0 // loop_exit
    _

</llo_original>
